<compile_context>
chip_gen: v7x
topology: tpu7x:2x2x1
jax: 0.10.0
libtpu: 0.0.40
codegen_flags: <defaults>
</compile_context>

<pallas_src>
import functools

import jax
import jax.numpy as jnp
from jax import lax
from jax.experimental import pallas as pl
from jax.experimental.pallas import tpu as pltpu


# ----------------------------------------------------------------------------
# Fused Pallas kernel: one grid step == one sample, layout (C, H*W)
# ----------------------------------------------------------------------------
def _flow_step_kernel(
    x_ref, masks_ref, wa_ref, ba_ref, wb_ref, bb_ref,
    w1_ref, b1_ref, w2_ref, b2_ref,
    w3t_ref, b3t_ref, w3s_ref, b3s_ref,
    pa_ref, pb_ref,
    out_ref, ld_ref,
    *, taps, hw,
):
    f32 = jnp.float32
    x = x_ref[0]                         # (C, HW) one sample, pixels on lanes

    # --- ActNorm (pre-folded) + invertible 1x1 conv, split into halves -------
    za = jnp.dot(wa_ref[...], x, preferred_element_type=f32) + ba_ref[...]
    zb = jnp.dot(wb_ref[...], x, preferred_element_type=f32) + bb_ref[...]

    def shifted(v, tap_idx, s):
        # window v[:, p + s] with zero outside the HxW image; the wraparound
        # introduced by the lane rotation lands exactly on masked positions.
        if s == 0:
            return v                     # centre tap: always in-bounds
        win = pltpu.roll(v, shift=(-s) % hw, axis=1)
        return win * masks_ref[tap_idx]

    # --- coupling NN conv1: 3x3 (Ch -> hid) as 9 shifted matmul-accumulates --
    hid = b1_ref.shape[0]
    h = jnp.zeros((hid, hw), f32) + b1_ref[...]
    for ti, s in enumerate(taps):
        h = h + jnp.dot(w1_ref[ti], shifted(za, ti, s),
                        preferred_element_type=f32)
    h = jnp.maximum(h, 0.0)

    # --- conv2: 1x1 (hid -> hid) ---------------------------------------------
    h = jnp.dot(w2_ref[...], h, preferred_element_type=f32) + b2_ref[...]
    h = jnp.maximum(h, 0.0)

    # --- conv3: 3x3 (hid -> C); output channels pre-split into t / log_s -----
    tt = jnp.zeros((b3t_ref.shape[0], hw), f32) + b3t_ref[...]
    ls = jnp.zeros((b3s_ref.shape[0], hw), f32) + b3s_ref[...]
    for ti, s in enumerate(taps):
        win = shifted(h, ti, s)
        tt = tt + jnp.dot(w3t_ref[ti], win, preferred_element_type=f32)
        ls = ls + jnp.dot(w3s_ref[ti], win, preferred_element_type=f32)

    # --- affine coupling: s = sigmoid(log_s + 2); yb = (zb + t) * s ----------
    e = jnp.exp(-(ls + 2.0))
    s_gate = 1.0 / (1.0 + e)
    yb = (zb + tt) * s_gate
    ld = -jnp.sum(jnp.log(1.0 + e))      # == sum(log s), per sample

    # --- assemble [za ; yb] along channels via two placement matmuls ---------
    out_ref[0] = (jnp.dot(pa_ref[...], za, preferred_element_type=f32)
                  + jnp.dot(pb_ref[...], yb, preferred_element_type=f32))
    ld_ref[...] = jnp.zeros(ld_ref.shape, f32) + ld


def _build_tap_tables(H, W):
    # taps: flat pixel shift for each of the 9 (dh, dw) positions of a 3x3 conv
    taps = tuple((dh - 1) * W + (dw - 1) for dh in range(3) for dw in range(3))
    yy, xx = jnp.meshgrid(jnp.arange(H), jnp.arange(W), indexing="ij")
    yy = yy.reshape(-1)
    xx = xx.reshape(-1)
    masks = []
    for dh in range(3):
        for dw in range(3):
            oy, ox = dh - 1, dw - 1
            ok = ((yy + oy >= 0) & (yy + oy < H) &
                  (xx + ox >= 0) & (xx + ox < W))
            masks.append(ok.astype(jnp.float32))
    masks = jnp.stack(masks, axis=0).reshape(9, 1, H * W)
    return taps, masks


# ----------------------------------------------------------------------------
# Wrapper: parameter folding / reshaping (tiny, fused under jit) + pallas_call
# ----------------------------------------------------------------------------
@jax.jit
def flow_step_forward(x, p, log_det=None):
    N, C, H, W = x.shape
    assert C % 2 == 0
    Ch = C // 2
    HW = H * W
    hid = p["w1"].shape[0]

    taps, masks = _build_tap_tables(H, W)

    # Fold ActNorm into the invertible 1x1 conv:  z = Wf @ x_cols + bf
    wf = p["w_conv"] * p["an_scale"][None, :]              # (C, C)  [co, ci]
    bf = p["w_conv"] @ (p["an_scale"] * p["an_bias"])      # (C,)
    wa, wb = wf[:Ch], wf[Ch:]
    ba, bb = bf[:Ch, None], bf[Ch:, None]

    # Coupling-NN weights, tap-major for the 3x3 convs, (out, in) for matmuls.
    w1t = jnp.transpose(p["w1"], (2, 3, 0, 1)).reshape(9, hid, Ch)
    b1r = p["b1"][:, None]
    w2m = p["w2"][:, :, 0, 0]                              # (hid, hid)
    b2r = p["b2"][:, None]
    w3m = jnp.transpose(p["w3"], (2, 3, 0, 1)).reshape(9, C, hid)
    w3t_w, w3s_w = w3m[:, :Ch, :], w3m[:, Ch:, :]
    b3t_b = p["b3"][:Ch, None]
    b3s_b = p["b3"][Ch:, None]

    # Placement matrices: out = Pa @ za + Pb @ yb  ==  [za ; yb] over channels
    eye = jnp.eye(Ch, dtype=jnp.float32)
    zero = jnp.zeros((Ch, Ch), jnp.float32)
    pa = jnp.concatenate([eye, zero], axis=0)              # (C, Ch)
    pb = jnp.concatenate([zero, eye], axis=0)              # (C, Ch)

    x_cols = x.reshape(N, C, HW)                           # NCHW is already (C, HW)

    kern = functools.partial(_flow_step_kernel, taps=taps, hw=HW)
    spec2 = lambda s: pl.BlockSpec(s, lambda i: (0, 0))
    spec3 = lambda s: pl.BlockSpec(s, lambda i: (0, 0, 0))

    out_cols, ld_tile = pl.pallas_call(
        kern,
        out_shape=(jax.ShapeDtypeStruct((N, C, HW), jnp.float32),
                   jax.ShapeDtypeStruct((N, 8, 128), jnp.float32)),
        grid=(N,),
        in_specs=[
            pl.BlockSpec((1, C, HW), lambda i: (i, 0, 0)),   # x (per sample)
            spec3((9, 1, HW)),                               # boundary masks
            spec2((Ch, C)), spec2((Ch, 1)),                  # wa, ba (folded)
            spec2((Ch, C)), spec2((Ch, 1)),                  # wb, bb (folded)
            spec3((9, hid, Ch)), spec2((hid, 1)),            # w1 taps, b1
            spec2((hid, hid)), spec2((hid, 1)),              # w2, b2
            spec3((9, Ch, hid)), spec2((Ch, 1)),             # w3 (t half), b3_t
            spec3((9, Ch, hid)), spec2((Ch, 1)),             # w3 (log_s half), b3_s
            spec2((C, Ch)), spec2((C, Ch)),                  # Pa, Pb placement
        ],
        out_specs=(pl.BlockSpec((1, C, HW), lambda i: (i, 0, 0)),
                   pl.BlockSpec((1, 8, 128), lambda i: (i, 0, 0))),
        compiler_params=pltpu.CompilerParams(
            dimension_semantics=("parallel",)),
    )(x_cols, masks, wa, ba, wb, bb, w1t, b1r, w2m, b2r,
      w3t_w, b3t_b, w3s_w, b3s_b, pa, pb)

    ld_const = H * W * (jnp.sum(jnp.log(jnp.abs(p["an_scale"])))
                        + jnp.linalg.slogdet(p["w_conv"])[1])
    ld = ld_const + ld_tile[:, 0, 0]
    if log_det is not None:
        ld = ld + log_det

    y = out_cols.reshape(N, C, H, W)                        # already NCHW
    return y, ld


# ----------------------------------------------------------------------------
# Pure-JAX reference (NCHW, lax.conv) for a correctness check
# ----------------------------------------------------------------------------
def reference_forward(x, p):
    N, C, H, W = x.shape
    Ch = C // 2
    y = (x + p["an_bias"][None, :, None, None]) * p["an_scale"][None, :, None, None]
    ld = jnp.full((N,), H * W * jnp.sum(jnp.log(jnp.abs(p["an_scale"]))), jnp.float32)
    z = lax.conv_general_dilated(
        y, p["w_conv"][:, :, None, None], (1, 1), "VALID",
        dimension_numbers=("NCHW", "OIHW", "NCHW"))
    ld = ld + H * W * jnp.linalg.slogdet(p["w_conv"])[1]
    za, zb = z[:, :Ch], z[:, Ch:]

    def conv(u, w, b, pad):
        o = lax.conv_general_dilated(u, w, (1, 1), pad,
                                     dimension_numbers=("NCHW", "OIHW", "NCHW"))
        return o + b[None, :, None, None]

    h = jnp.maximum(conv(za, p["w1"], p["b1"], ((1, 1), (1, 1))), 0.0)
    h = jnp.maximum(conv(h, p["w2"], p["b2"], ((0, 0), (0, 0))), 0.0)
    h = conv(h, p["w3"], p["b3"], ((1, 1), (1, 1)))
    t, log_s = h[:, :Ch], h[:, Ch:]
    s = 1.0 / (1.0 + jnp.exp(-(log_s + 2.0)))
    yb = (zb + t) * s
    ld = ld + jnp.sum(jnp.log(s), axis=(1, 2, 3))
    return jnp.concatenate([za, yb], axis=1), ld


# ----------------------------------------------------------------------------
if __name__ == "__main__":
    N, C, H, W = 2, 8, 16, 16   # num_features = 8
    hid = 32                    # hid_layers = 32
    Ch = C // 2

    key = jax.random.PRNGKey(0)
    ks = jax.random.split(key, 10)
    x = jax.random.normal(ks[0], (N, C, H, W), jnp.float32)

    an_bias = 0.1 * jax.random.normal(ks[1], (C,), jnp.float32)
    an_scale = jnp.exp(0.1 * jax.random.normal(ks[2], (C,), jnp.float32))
    w_conv, _ = jnp.linalg.qr(jax.random.normal(ks[3], (C, C), jnp.float32))  # orthogonal
    w1 = 0.1 * jax.random.normal(ks[4], (hid, Ch, 3, 3), jnp.float32)
    b1 = 0.05 * jax.random.normal(ks[5], (hid,), jnp.float32)
    w2 = 0.1 * jax.random.normal(ks[6], (hid, hid, 1, 1), jnp.float32)
    b2 = 0.05 * jax.random.normal(ks[7], (hid,), jnp.float32)
    # TODO(synk): real Glow zero-initialises the last coupling conv; use small
    # deterministic random weights so the kernel does nontrivial work.
    w3 = 0.05 * jax.random.normal(ks[8], (C, hid, 3, 3), jnp.float32)
    b3 = 0.05 * jax.random.normal(ks[9], (C,), jnp.float32)

    params = dict(an_bias=an_bias, an_scale=an_scale, w_conv=w_conv,
                  w1=w1, b1=b1, w2=w2, b2=b2, w3=w3, b3=b3)

    y, ld = flow_step_forward(x, params)
    jax.block_until_ready((y, ld))

    y_ref, ld_ref = reference_forward(x, params)
    assert jnp.allclose(y, y_ref, atol=1e-2, rtol=1e-2), "output mismatch"
    assert jnp.allclose(ld, ld_ref, atol=1e-2, rtol=1e-2), "log-det mismatch"

    print("KERNEL_OK")
</pallas_src>

<mosaic_0001>
module attributes {stable_mosaic.version = 11 : i64} {
  func.func @_flow_step_kernel(%arg0: i32, %arg1: memref<1x8x256xf32, #tpu.memory_space<vmem>>, %arg2: memref<9x1x256xf32, #tpu.memory_space<vmem>>, %arg3: memref<4x8xf32, #tpu.memory_space<vmem>>, %arg4: memref<4x1xf32, #tpu.memory_space<vmem>>, %arg5: memref<4x8xf32, #tpu.memory_space<vmem>>, %arg6: memref<4x1xf32, #tpu.memory_space<vmem>>, %arg7: memref<9x32x4xf32, #tpu.memory_space<vmem>>, %arg8: memref<32x1xf32, #tpu.memory_space<vmem>>, %arg9: memref<32x32xf32, #tpu.memory_space<vmem>>, %arg10: memref<32x1xf32, #tpu.memory_space<vmem>>, %arg11: memref<9x4x32xf32, #tpu.memory_space<vmem>>, %arg12: memref<4x1xf32, #tpu.memory_space<vmem>>, %arg13: memref<9x4x32xf32, #tpu.memory_space<vmem>>, %arg14: memref<4x1xf32, #tpu.memory_space<vmem>>, %arg15: memref<8x4xf32, #tpu.memory_space<vmem>>, %arg16: memref<8x4xf32, #tpu.memory_space<vmem>>, %arg17: memref<1x8x256xf32, #tpu.memory_space<vmem>>, %arg18: memref<1x8x128xf32, #tpu.memory_space<vmem>>) attributes {dimension_semantics = [#tpu.dimension_semantics<parallel>], iteration_bounds = array<i64: 2>, scalar_prefetch = 0 : i64, scratch_operands = 0 : i64, tpu.core_type = #tpu.core_type<tc>, window_params = [{transform_indices = @transform_0, window_bounds = array<i64: 1, 8, 256>}, {pipeline_mode = #tpu.pipeline_mode<synchronous>, transform_indices = @transform_1, window_bounds = array<i64: 9, 1, 256>}, {pipeline_mode = #tpu.pipeline_mode<synchronous>, transform_indices = @transform_2, window_bounds = array<i64: 4, 8>}, {pipeline_mode = #tpu.pipeline_mode<synchronous>, transform_indices = @transform_3, window_bounds = array<i64: 4, 1>}, {pipeline_mode = #tpu.pipeline_mode<synchronous>, transform_indices = @transform_4, window_bounds = array<i64: 4, 8>}, {pipeline_mode = #tpu.pipeline_mode<synchronous>, transform_indices = @transform_5, window_bounds = array<i64: 4, 1>}, {pipeline_mode = #tpu.pipeline_mode<synchronous>, transform_indices = @transform_6, window_bounds = array<i64: 9, 32, 4>}, {pipeline_mode = #tpu.pipeline_mode<synchronous>, transform_indices = @transform_7, window_bounds = array<i64: 32, 1>}, {pipeline_mode = #tpu.pipeline_mode<synchronous>, transform_indices = @transform_8, window_bounds = array<i64: 32, 32>}, {pipeline_mode = #tpu.pipeline_mode<synchronous>, transform_indices = @transform_9, window_bounds = array<i64: 32, 1>}, {pipeline_mode = #tpu.pipeline_mode<synchronous>, transform_indices = @transform_10, window_bounds = array<i64: 9, 4, 32>}, {pipeline_mode = #tpu.pipeline_mode<synchronous>, transform_indices = @transform_11, window_bounds = array<i64: 4, 1>}, {pipeline_mode = #tpu.pipeline_mode<synchronous>, transform_indices = @transform_12, window_bounds = array<i64: 9, 4, 32>}, {pipeline_mode = #tpu.pipeline_mode<synchronous>, transform_indices = @transform_13, window_bounds = array<i64: 4, 1>}, {pipeline_mode = #tpu.pipeline_mode<synchronous>, transform_indices = @transform_14, window_bounds = array<i64: 8, 4>}, {pipeline_mode = #tpu.pipeline_mode<synchronous>, transform_indices = @transform_15, window_bounds = array<i64: 8, 4>}, {transform_indices = @transform_16, window_bounds = array<i64: 1, 8, 256>}, {transform_indices = @transform_17, window_bounds = array<i64: 1, 8, 128>}]} {
    %c0 = arith.constant 0 : index
    %c0_0 = arith.constant 0 : index
    %c0_1 = arith.constant 0 : index
    %0 = vector.load %arg1[%c0, %c0_0, %c0_1] : memref<1x8x256xf32, #tpu.memory_space<vmem>>, vector<1x8x256xf32>
    %1 = vector.shape_cast %0 : vector<1x8x256xf32> to vector<8x256xf32>
    %c0_2 = arith.constant 0 : index
    %c0_3 = arith.constant 0 : index
    %2 = vector.load %arg3[%c0_2, %c0_3] : memref<4x8xf32, #tpu.memory_space<vmem>>, vector<4x8xf32>
    %cst = arith.constant dense<0.000000e+00> : vector<4x256xf32>
    %3 = tpu.matmul %2, %1, %cst {dimension_numbers = #tpu.dot_dimension_numbers<[1], [0], [0], [1], [0, 0, 1, 1], [], []>} : vector<4x8xf32>, vector<8x256xf32>, vector<4x256xf32> -> vector<4x256xf32>
    %c0_4 = arith.constant 0 : index
    %c0_5 = arith.constant 0 : index
    %4 = vector.load %arg4[%c0_4, %c0_5] : memref<4x1xf32, #tpu.memory_space<vmem>>, vector<4x1xf32>
    %5 = vector.broadcast %4 : vector<4x1xf32> to vector<4x256xf32>
    %6 = arith.addf %3, %5 : vector<4x256xf32>
    %c0_6 = arith.constant 0 : index
    %c0_7 = arith.constant 0 : index
    %7 = vector.load %arg5[%c0_6, %c0_7] : memref<4x8xf32, #tpu.memory_space<vmem>>, vector<4x8xf32>
    %cst_8 = arith.constant dense<0.000000e+00> : vector<4x256xf32>
    %8 = tpu.matmul %7, %1, %cst_8 {dimension_numbers = #tpu.dot_dimension_numbers<[1], [0], [0], [1], [0, 0, 1, 1], [], []>} : vector<4x8xf32>, vector<8x256xf32>, vector<4x256xf32> -> vector<4x256xf32>
    %c0_9 = arith.constant 0 : index
    %c0_10 = arith.constant 0 : index
    %9 = vector.load %arg6[%c0_9, %c0_10] : memref<4x1xf32, #tpu.memory_space<vmem>>, vector<4x1xf32>
    %10 = vector.broadcast %9 : vector<4x1xf32> to vector<4x256xf32>
    %11 = arith.addf %8, %10 : vector<4x256xf32>
    %cst_11 = arith.constant 0.000000e+00 : f32
    %12 = vector.broadcast %cst_11 : f32 to vector<32x256xf32>
    %c0_12 = arith.constant 0 : index
    %c0_13 = arith.constant 0 : index
    %13 = vector.load %arg8[%c0_12, %c0_13] : memref<32x1xf32, #tpu.memory_space<vmem>>, vector<32x1xf32>
    %14 = vector.broadcast %13 : vector<32x1xf32> to vector<32x256xf32>
    %15 = arith.addf %12, %14 : vector<32x256xf32>
    %c0_14 = arith.constant 0 : index
    %c0_15 = arith.constant 0 : index
    %c0_16 = arith.constant 0 : index
    %16 = vector.load %arg7[%c0_14, %c0_15, %c0_16] : memref<9x32x4xf32, #tpu.memory_space<vmem>>, vector<1x32x4xf32>
    %17 = vector.shape_cast %16 : vector<1x32x4xf32> to vector<32x4xf32>
    %c17_i32 = arith.constant 17 : i32
    %18 = tpu.dynamic_rotate %6 by %c17_i32 dim 1 : vector<4x256xf32>, i32 -> vector<4x256xf32>
    %c0_17 = arith.constant 0 : index
    %c0_18 = arith.constant 0 : index
    %c0_19 = arith.constant 0 : index
    %19 = vector.load %arg2[%c0_17, %c0_18, %c0_19] : memref<9x1x256xf32, #tpu.memory_space<vmem>>, vector<1x1x256xf32>
    %20 = vector.shape_cast %19 : vector<1x1x256xf32> to vector<1x256xf32>
    %21 = vector.broadcast %20 : vector<1x256xf32> to vector<4x256xf32>
    %22 = arith.mulf %18, %21 : vector<4x256xf32>
    %cst_20 = arith.constant dense<0.000000e+00> : vector<32x256xf32>
    %23 = tpu.matmul %17, %22, %cst_20 {dimension_numbers = #tpu.dot_dimension_numbers<[1], [0], [0], [1], [0, 0, 1, 1], [], []>} : vector<32x4xf32>, vector<4x256xf32>, vector<32x256xf32> -> vector<32x256xf32>
    %24 = arith.addf %15, %23 : vector<32x256xf32>
    %c1 = arith.constant 1 : index
    %c0_21 = arith.constant 0 : index
    %c0_22 = arith.constant 0 : index
    %25 = vector.load %arg7[%c1, %c0_21, %c0_22] : memref<9x32x4xf32, #tpu.memory_space<vmem>>, vector<1x32x4xf32>
    %26 = vector.shape_cast %25 : vector<1x32x4xf32> to vector<32x4xf32>
    %c16_i32 = arith.constant 16 : i32
    %27 = tpu.dynamic_rotate %6 by %c16_i32 dim 1 : vector<4x256xf32>, i32 -> vector<4x256xf32>
    %c1_23 = arith.constant 1 : index
    %c0_24 = arith.constant 0 : index
    %c0_25 = arith.constant 0 : index
    %28 = vector.load %arg2[%c1_23, %c0_24, %c0_25] : memref<9x1x256xf32, #tpu.memory_space<vmem>>, vector<1x1x256xf32>
    %29 = vector.shape_cast %28 : vector<1x1x256xf32> to vector<1x256xf32>
    %30 = vector.broadcast %29 : vector<1x256xf32> to vector<4x256xf32>
    %31 = arith.mulf %27, %30 : vector<4x256xf32>
    %cst_26 = arith.constant dense<0.000000e+00> : vector<32x256xf32>
    %32 = tpu.matmul %26, %31, %cst_26 {dimension_numbers = #tpu.dot_dimension_numbers<[1], [0], [0], [1], [0, 0, 1, 1], [], []>} : vector<32x4xf32>, vector<4x256xf32>, vector<32x256xf32> -> vector<32x256xf32>
    %33 = arith.addf %24, %32 : vector<32x256xf32>
    %c2 = arith.constant 2 : index
    %c0_27 = arith.constant 0 : index
    %c0_28 = arith.constant 0 : index
    %34 = vector.load %arg7[%c2, %c0_27, %c0_28] : memref<9x32x4xf32, #tpu.memory_space<vmem>>, vector<1x32x4xf32>
    %35 = vector.shape_cast %34 : vector<1x32x4xf32> to vector<32x4xf32>
    %c15_i32 = arith.constant 15 : i32
    %36 = tpu.dynamic_rotate %6 by %c15_i32 dim 1 : vector<4x256xf32>, i32 -> vector<4x256xf32>
    %c2_29 = arith.constant 2 : index
    %c0_30 = arith.constant 0 : index
    %c0_31 = arith.constant 0 : index
    %37 = vector.load %arg2[%c2_29, %c0_30, %c0_31] : memref<9x1x256xf32, #tpu.memory_space<vmem>>, vector<1x1x256xf32>
    %38 = vector.shape_cast %37 : vector<1x1x256xf32> to vector<1x256xf32>
    %39 = vector.broadcast %38 : vector<1x256xf32> to vector<4x256xf32>
    %40 = arith.mulf %36, %39 : vector<4x256xf32>
    %cst_32 = arith.constant dense<0.000000e+00> : vector<32x256xf32>
    %41 = tpu.matmul %35, %40, %cst_32 {dimension_numbers = #tpu.dot_dimension_numbers<[1], [0], [0], [1], [0, 0, 1, 1], [], []>} : vector<32x4xf32>, vector<4x256xf32>, vector<32x256xf32> -> vector<32x256xf32>
    %42 = arith.addf %33, %41 : vector<32x256xf32>
    %c3 = arith.constant 3 : index
    %c0_33 = arith.constant 0 : index
    %c0_34 = arith.constant 0 : index
    %43 = vector.load %arg7[%c3, %c0_33, %c0_34] : memref<9x32x4xf32, #tpu.memory_space<vmem>>, vector<1x32x4xf32>
    %44 = vector.shape_cast %43 : vector<1x32x4xf32> to vector<32x4xf32>
    %c1_i32 = arith.constant 1 : i32
    %45 = tpu.dynamic_rotate %6 by %c1_i32 dim 1 : vector<4x256xf32>, i32 -> vector<4x256xf32>
    %c3_35 = arith.constant 3 : index
    %c0_36 = arith.constant 0 : index
    %c0_37 = arith.constant 0 : index
    %46 = vector.load %arg2[%c3_35, %c0_36, %c0_37] : memref<9x1x256xf32, #tpu.memory_space<vmem>>, vector<1x1x256xf32>
    %47 = vector.shape_cast %46 : vector<1x1x256xf32> to vector<1x256xf32>
    %48 = vector.broadcast %47 : vector<1x256xf32> to vector<4x256xf32>
    %49 = arith.mulf %45, %48 : vector<4x256xf32>
    %cst_38 = arith.constant dense<0.000000e+00> : vector<32x256xf32>
    %50 = tpu.matmul %44, %49, %cst_38 {dimension_numbers = #tpu.dot_dimension_numbers<[1], [0], [0], [1], [0, 0, 1, 1], [], []>} : vector<32x4xf32>, vector<4x256xf32>, vector<32x256xf32> -> vector<32x256xf32>
    %51 = arith.addf %42, %50 : vector<32x256xf32>
    %c4 = arith.constant 4 : index
    %c0_39 = arith.constant 0 : index
    %c0_40 = arith.constant 0 : index
    %52 = vector.load %arg7[%c4, %c0_39, %c0_40] : memref<9x32x4xf32, #tpu.memory_space<vmem>>, vector<1x32x4xf32>
    %53 = vector.shape_cast %52 : vector<1x32x4xf32> to vector<32x4xf32>
    %cst_41 = arith.constant dense<0.000000e+00> : vector<32x256xf32>
    %54 = tpu.matmul %53, %6, %cst_41 {dimension_numbers = #tpu.dot_dimension_numbers<[1], [0], [0], [1], [0, 0, 1, 1], [], []>} : vector<32x4xf32>, vector<4x256xf32>, vector<32x256xf32> -> vector<32x256xf32>
    %55 = arith.addf %51, %54 : vector<32x256xf32>
    %c5 = arith.constant 5 : index
    %c0_42 = arith.constant 0 : index
    %c0_43 = arith.constant 0 : index
    %56 = vector.load %arg7[%c5, %c0_42, %c0_43] : memref<9x32x4xf32, #tpu.memory_space<vmem>>, vector<1x32x4xf32>
    %57 = vector.shape_cast %56 : vector<1x32x4xf32> to vector<32x4xf32>
    %c255_i32 = arith.constant 255 : i32
    %58 = tpu.dynamic_rotate %6 by %c255_i32 dim 1 : vector<4x256xf32>, i32 -> vector<4x256xf32>
    %c5_44 = arith.constant 5 : index
    %c0_45 = arith.constant 0 : index
    %c0_46 = arith.constant 0 : index
    %59 = vector.load %arg2[%c5_44, %c0_45, %c0_46] : memref<9x1x256xf32, #tpu.memory_space<vmem>>, vector<1x1x256xf32>
    %60 = vector.shape_cast %59 : vector<1x1x256xf32> to vector<1x256xf32>
    %61 = vector.broadcast %60 : vector<1x256xf32> to vector<4x256xf32>
    %62 = arith.mulf %58, %61 : vector<4x256xf32>
    %cst_47 = arith.constant dense<0.000000e+00> : vector<32x256xf32>
    %63 = tpu.matmul %57, %62, %cst_47 {dimension_numbers = #tpu.dot_dimension_numbers<[1], [0], [0], [1], [0, 0, 1, 1], [], []>} : vector<32x4xf32>, vector<4x256xf32>, vector<32x256xf32> -> vector<32x256xf32>
    %64 = arith.addf %55, %63 : vector<32x256xf32>
    %c6 = arith.constant 6 : index
    %c0_48 = arith.constant 0 : index
    %c0_49 = arith.constant 0 : index
    %65 = vector.load %arg7[%c6, %c0_48, %c0_49] : memref<9x32x4xf32, #tpu.memory_space<vmem>>, vector<1x32x4xf32>
    %66 = vector.shape_cast %65 : vector<1x32x4xf32> to vector<32x4xf32>
    %c241_i32 = arith.constant 241 : i32
    %67 = tpu.dynamic_rotate %6 by %c241_i32 dim 1 : vector<4x256xf32>, i32 -> vector<4x256xf32>
    %c6_50 = arith.constant 6 : index
    %c0_51 = arith.constant 0 : index
    %c0_52 = arith.constant 0 : index
    %68 = vector.load %arg2[%c6_50, %c0_51, %c0_52] : memref<9x1x256xf32, #tpu.memory_space<vmem>>, vector<1x1x256xf32>
    %69 = vector.shape_cast %68 : vector<1x1x256xf32> to vector<1x256xf32>
    %70 = vector.broadcast %69 : vector<1x256xf32> to vector<4x256xf32>
    %71 = arith.mulf %67, %70 : vector<4x256xf32>
    %cst_53 = arith.constant dense<0.000000e+00> : vector<32x256xf32>
    %72 = tpu.matmul %66, %71, %cst_53 {dimension_numbers = #tpu.dot_dimension_numbers<[1], [0], [0], [1], [0, 0, 1, 1], [], []>} : vector<32x4xf32>, vector<4x256xf32>, vector<32x256xf32> -> vector<32x256xf32>
    %73 = arith.addf %64, %72 : vector<32x256xf32>
    %c7 = arith.constant 7 : index
    %c0_54 = arith.constant 0 : index
    %c0_55 = arith.constant 0 : index
    %74 = vector.load %arg7[%c7, %c0_54, %c0_55] : memref<9x32x4xf32, #tpu.memory_space<vmem>>, vector<1x32x4xf32>
    %75 = vector.shape_cast %74 : vector<1x32x4xf32> to vector<32x4xf32>
    %c240_i32 = arith.constant 240 : i32
    %76 = tpu.dynamic_rotate %6 by %c240_i32 dim 1 : vector<4x256xf32>, i32 -> vector<4x256xf32>
    %c7_56 = arith.constant 7 : index
    %c0_57 = arith.constant 0 : index
    %c0_58 = arith.constant 0 : index
    %77 = vector.load %arg2[%c7_56, %c0_57, %c0_58] : memref<9x1x256xf32, #tpu.memory_space<vmem>>, vector<1x1x256xf32>
    %78 = vector.shape_cast %77 : vector<1x1x256xf32> to vector<1x256xf32>
    %79 = vector.broadcast %78 : vector<1x256xf32> to vector<4x256xf32>
    %80 = arith.mulf %76, %79 : vector<4x256xf32>
    %cst_59 = arith.constant dense<0.000000e+00> : vector<32x256xf32>
    %81 = tpu.matmul %75, %80, %cst_59 {dimension_numbers = #tpu.dot_dimension_numbers<[1], [0], [0], [1], [0, 0, 1, 1], [], []>} : vector<32x4xf32>, vector<4x256xf32>, vector<32x256xf32> -> vector<32x256xf32>
    %82 = arith.addf %73, %81 : vector<32x256xf32>
    %c8 = arith.constant 8 : index
    %c0_60 = arith.constant 0 : index
    %c0_61 = arith.constant 0 : index
    %83 = vector.load %arg7[%c8, %c0_60, %c0_61] : memref<9x32x4xf32, #tpu.memory_space<vmem>>, vector<1x32x4xf32>
    %84 = vector.shape_cast %83 : vector<1x32x4xf32> to vector<32x4xf32>
    %c239_i32 = arith.constant 239 : i32
    %85 = tpu.dynamic_rotate %6 by %c239_i32 dim 1 : vector<4x256xf32>, i32 -> vector<4x256xf32>
    %c8_62 = arith.constant 8 : index
    %c0_63 = arith.constant 0 : index
    %c0_64 = arith.constant 0 : index
    %86 = vector.load %arg2[%c8_62, %c0_63, %c0_64] : memref<9x1x256xf32, #tpu.memory_space<vmem>>, vector<1x1x256xf32>
    %87 = vector.shape_cast %86 : vector<1x1x256xf32> to vector<1x256xf32>
    %88 = vector.broadcast %87 : vector<1x256xf32> to vector<4x256xf32>
    %89 = arith.mulf %85, %88 : vector<4x256xf32>
    %cst_65 = arith.constant dense<0.000000e+00> : vector<32x256xf32>
    %90 = tpu.matmul %84, %89, %cst_65 {dimension_numbers = #tpu.dot_dimension_numbers<[1], [0], [0], [1], [0, 0, 1, 1], [], []>} : vector<32x4xf32>, vector<4x256xf32>, vector<32x256xf32> -> vector<32x256xf32>
    %91 = arith.addf %82, %90 : vector<32x256xf32>
    %cst_66 = arith.constant 0.000000e+00 : f32
    %92 = vector.broadcast %cst_66 : f32 to vector<32x256xf32>
    %93 = arith.maximumf %91, %92 : vector<32x256xf32>
    %c0_67 = arith.constant 0 : index
    %c0_68 = arith.constant 0 : index
    %94 = vector.load %arg9[%c0_67, %c0_68] : memref<32x32xf32, #tpu.memory_space<vmem>>, vector<32x32xf32>
    %cst_69 = arith.constant dense<0.000000e+00> : vector<32x256xf32>
    %95 = tpu.matmul %94, %93, %cst_69 {dimension_numbers = #tpu.dot_dimension_numbers<[1], [0], [0], [1], [0, 0, 1, 1], [], []>} : vector<32x32xf32>, vector<32x256xf32>, vector<32x256xf32> -> vector<32x256xf32>
    %c0_70 = arith.constant 0 : index
    %c0_71 = arith.constant 0 : index
    %96 = vector.load %arg10[%c0_70, %c0_71] : memref<32x1xf32, #tpu.memory_space<vmem>>, vector<32x1xf32>
    %97 = vector.broadcast %96 : vector<32x1xf32> to vector<32x256xf32>
    %98 = arith.addf %95, %97 : vector<32x256xf32>
    %cst_72 = arith.constant 0.000000e+00 : f32
    %99 = vector.broadcast %cst_72 : f32 to vector<32x256xf32>
    %100 = arith.maximumf %98, %99 : vector<32x256xf32>
    %cst_73 = arith.constant 0.000000e+00 : f32
    %101 = vector.broadcast %cst_73 : f32 to vector<4x256xf32>
    %c0_74 = arith.constant 0 : index
    %c0_75 = arith.constant 0 : index
    %102 = vector.load %arg12[%c0_74, %c0_75] : memref<4x1xf32, #tpu.memory_space<vmem>>, vector<4x1xf32>
    %103 = vector.broadcast %102 : vector<4x1xf32> to vector<4x256xf32>
    %104 = arith.addf %101, %103 : vector<4x256xf32>
    %cst_76 = arith.constant 0.000000e+00 : f32
    %105 = vector.broadcast %cst_76 : f32 to vector<4x256xf32>
    %c0_77 = arith.constant 0 : index
    %c0_78 = arith.constant 0 : index
    %106 = vector.load %arg14[%c0_77, %c0_78] : memref<4x1xf32, #tpu.memory_space<vmem>>, vector<4x1xf32>
    %107 = vector.broadcast %106 : vector<4x1xf32> to vector<4x256xf32>
    %108 = arith.addf %105, %107 : vector<4x256xf32>
    %c17_i32_79 = arith.constant 17 : i32
    %109 = tpu.dynamic_rotate %100 by %c17_i32_79 dim 1 : vector<32x256xf32>, i32 -> vector<32x256xf32>
    %c0_80 = arith.constant 0 : index
    %c0_81 = arith.constant 0 : index
    %c0_82 = arith.constant 0 : index
    %110 = vector.load %arg2[%c0_80, %c0_81, %c0_82] : memref<9x1x256xf32, #tpu.memory_space<vmem>>, vector<1x1x256xf32>
    %111 = vector.shape_cast %110 : vector<1x1x256xf32> to vector<1x256xf32>
    %112 = vector.broadcast %111 : vector<1x256xf32> to vector<32x256xf32>
    %113 = arith.mulf %109, %112 : vector<32x256xf32>
    %c0_83 = arith.constant 0 : index
    %c0_84 = arith.constant 0 : index
    %c0_85 = arith.constant 0 : index
    %114 = vector.load %arg11[%c0_83, %c0_84, %c0_85] : memref<9x4x32xf32, #tpu.memory_space<vmem>>, vector<1x4x32xf32>
    %115 = vector.shape_cast %114 : vector<1x4x32xf32> to vector<4x32xf32>
    %cst_86 = arith.constant dense<0.000000e+00> : vector<4x256xf32>
    %116 = tpu.matmul %115, %113, %cst_86 {dimension_numbers = #tpu.dot_dimension_numbers<[1], [0], [0], [1], [0, 0, 1, 1], [], []>} : vector<4x32xf32>, vector<32x256xf32>, vector<4x256xf32> -> vector<4x256xf32>
    %117 = arith.addf %104, %116 : vector<4x256xf32>
    %c0_87 = arith.constant 0 : index
    %c0_88 = arith.constant 0 : index
    %c0_89 = arith.constant 0 : index
    %118 = vector.load %arg13[%c0_87, %c0_88, %c0_89] : memref<9x4x32xf32, #tpu.memory_space<vmem>>, vector<1x4x32xf32>
    %119 = vector.shape_cast %118 : vector<1x4x32xf32> to vector<4x32xf32>
    %cst_90 = arith.constant dense<0.000000e+00> : vector<4x256xf32>
    %120 = tpu.matmul %119, %113, %cst_90 {dimension_numbers = #tpu.dot_dimension_numbers<[1], [0], [0], [1], [0, 0, 1, 1], [], []>} : vector<4x32xf32>, vector<32x256xf32>, vector<4x256xf32> -> vector<4x256xf32>
    %121 = arith.addf %108, %120 : vector<4x256xf32>
    %c16_i32_91 = arith.constant 16 : i32
    %122 = tpu.dynamic_rotate %100 by %c16_i32_91 dim 1 : vector<32x256xf32>, i32 -> vector<32x256xf32>
    %c1_92 = arith.constant 1 : index
    %c0_93 = arith.constant 0 : index
    %c0_94 = arith.constant 0 : index
    %123 = vector.load %arg2[%c1_92, %c0_93, %c0_94] : memref<9x1x256xf32, #tpu.memory_space<vmem>>, vector<1x1x256xf32>
    %124 = vector.shape_cast %123 : vector<1x1x256xf32> to vector<1x256xf32>
    %125 = vector.broadcast %124 : vector<1x256xf32> to vector<32x256xf32>
    %126 = arith.mulf %122, %125 : vector<32x256xf32>
    %c1_95 = arith.constant 1 : index
    %c0_96 = arith.constant 0 : index
    %c0_97 = arith.constant 0 : index
    %127 = vector.load %arg11[%c1_95, %c0_96, %c0_97] : memref<9x4x32xf32, #tpu.memory_space<vmem>>, vector<1x4x32xf32>
    %128 = vector.shape_cast %127 : vector<1x4x32xf32> to vector<4x32xf32>
    %cst_98 = arith.constant dense<0.000000e+00> : vector<4x256xf32>
    %129 = tpu.matmul %128, %126, %cst_98 {dimension_numbers = #tpu.dot_dimension_numbers<[1], [0], [0], [1], [0, 0, 1, 1], [], []>} : vector<4x32xf32>, vector<32x256xf32>, vector<4x256xf32> -> vector<4x256xf32>
    %130 = arith.addf %117, %129 : vector<4x256xf32>
    %c1_99 = arith.constant 1 : index
    %c0_100 = arith.constant 0 : index
    %c0_101 = arith.constant 0 : index
    %131 = vector.load %arg13[%c1_99, %c0_100, %c0_101] : memref<9x4x32xf32, #tpu.memory_space<vmem>>, vector<1x4x32xf32>
    %132 = vector.shape_cast %131 : vector<1x4x32xf32> to vector<4x32xf32>
    %cst_102 = arith.constant dense<0.000000e+00> : vector<4x256xf32>
    %133 = tpu.matmul %132, %126, %cst_102 {dimension_numbers = #tpu.dot_dimension_numbers<[1], [0], [0], [1], [0, 0, 1, 1], [], []>} : vector<4x32xf32>, vector<32x256xf32>, vector<4x256xf32> -> vector<4x256xf32>
    %134 = arith.addf %121, %133 : vector<4x256xf32>
    %c15_i32_103 = arith.constant 15 : i32
    %135 = tpu.dynamic_rotate %100 by %c15_i32_103 dim 1 : vector<32x256xf32>, i32 -> vector<32x256xf32>
    %c2_104 = arith.constant 2 : index
    %c0_105 = arith.constant 0 : index
    %c0_106 = arith.constant 0 : index
    %136 = vector.load %arg2[%c2_104, %c0_105, %c0_106] : memref<9x1x256xf32, #tpu.memory_space<vmem>>, vector<1x1x256xf32>
    %137 = vector.shape_cast %136 : vector<1x1x256xf32> to vector<1x256xf32>
    %138 = vector.broadcast %137 : vector<1x256xf32> to vector<32x256xf32>
    %139 = arith.mulf %135, %138 : vector<32x256xf32>
    %c2_107 = arith.constant 2 : index
    %c0_108 = arith.constant 0 : index
    %c0_109 = arith.constant 0 : index
    %140 = vector.load %arg11[%c2_107, %c0_108, %c0_109] : memref<9x4x32xf32, #tpu.memory_space<vmem>>, vector<1x4x32xf32>
    %141 = vector.shape_cast %140 : vector<1x4x32xf32> to vector<4x32xf32>
    %cst_110 = arith.constant dense<0.000000e+00> : vector<4x256xf32>
    %142 = tpu.matmul %141, %139, %cst_110 {dimension_numbers = #tpu.dot_dimension_numbers<[1], [0], [0], [1], [0, 0, 1, 1], [], []>} : vector<4x32xf32>, vector<32x256xf32>, vector<4x256xf32> -> vector<4x256xf32>
    %143 = arith.addf %130, %142 : vector<4x256xf32>
    %c2_111 = arith.constant 2 : index
    %c0_112 = arith.constant 0 : index
    %c0_113 = arith.constant 0 : index
    %144 = vector.load %arg13[%c2_111, %c0_112, %c0_113] : memref<9x4x32xf32, #tpu.memory_space<vmem>>, vector<1x4x32xf32>
    %145 = vector.shape_cast %144 : vector<1x4x32xf32> to vector<4x32xf32>
    %cst_114 = arith.constant dense<0.000000e+00> : vector<4x256xf32>
    %146 = tpu.matmul %145, %139, %cst_114 {dimension_numbers = #tpu.dot_dimension_numbers<[1], [0], [0], [1], [0, 0, 1, 1], [], []>} : vector<4x32xf32>, vector<32x256xf32>, vector<4x256xf32> -> vector<4x256xf32>
    %147 = arith.addf %134, %146 : vector<4x256xf32>
    %c1_i32_115 = arith.constant 1 : i32
    %148 = tpu.dynamic_rotate %100 by %c1_i32_115 dim 1 : vector<32x256xf32>, i32 -> vector<32x256xf32>
    %c3_116 = arith.constant 3 : index
    %c0_117 = arith.constant 0 : index
    %c0_118 = arith.constant 0 : index
    %149 = vector.load %arg2[%c3_116, %c0_117, %c0_118] : memref<9x1x256xf32, #tpu.memory_space<vmem>>, vector<1x1x256xf32>
    %150 = vector.shape_cast %149 : vector<1x1x256xf32> to vector<1x256xf32>
    %151 = vector.broadcast %150 : vector<1x256xf32> to vector<32x256xf32>
    %152 = arith.mulf %148, %151 : vector<32x256xf32>
    %c3_119 = arith.constant 3 : index
    %c0_120 = arith.constant 0 : index
    %c0_121 = arith.constant 0 : index
    %153 = vector.load %arg11[%c3_119, %c0_120, %c0_121] : memref<9x4x32xf32, #tpu.memory_space<vmem>>, vector<1x4x32xf32>
    %154 = vector.shape_cast %153 : vector<1x4x32xf32> to vector<4x32xf32>
    %cst_122 = arith.constant dense<0.000000e+00> : vector<4x256xf32>
    %155 = tpu.matmul %154, %152, %cst_122 {dimension_numbers = #tpu.dot_dimension_numbers<[1], [0], [0], [1], [0, 0, 1, 1], [], []>} : vector<4x32xf32>, vector<32x256xf32>, vector<4x256xf32> -> vector<4x256xf32>
    %156 = arith.addf %143, %155 : vector<4x256xf32>
    %c3_123 = arith.constant 3 : index
    %c0_124 = arith.constant 0 : index
    %c0_125 = arith.constant 0 : index
    %157 = vector.load %arg13[%c3_123, %c0_124, %c0_125] : memref<9x4x32xf32, #tpu.memory_space<vmem>>, vector<1x4x32xf32>
    %158 = vector.shape_cast %157 : vector<1x4x32xf32> to vector<4x32xf32>
    %cst_126 = arith.constant dense<0.000000e+00> : vector<4x256xf32>
    %159 = tpu.matmul %158, %152, %cst_126 {dimension_numbers = #tpu.dot_dimension_numbers<[1], [0], [0], [1], [0, 0, 1, 1], [], []>} : vector<4x32xf32>, vector<32x256xf32>, vector<4x256xf32> -> vector<4x256xf32>
    %160 = arith.addf %147, %159 : vector<4x256xf32>
    %c4_127 = arith.constant 4 : index
    %c0_128 = arith.constant 0 : index
    %c0_129 = arith.constant 0 : index
    %161 = vector.load %arg11[%c4_127, %c0_128, %c0_129] : memref<9x4x32xf32, #tpu.memory_space<vmem>>, vector<1x4x32xf32>
    %162 = vector.shape_cast %161 : vector<1x4x32xf32> to vector<4x32xf32>
    %cst_130 = arith.constant dense<0.000000e+00> : vector<4x256xf32>
    %163 = tpu.matmul %162, %100, %cst_130 {dimension_numbers = #tpu.dot_dimension_numbers<[1], [0], [0], [1], [0, 0, 1, 1], [], []>} : vector<4x32xf32>, vector<32x256xf32>, vector<4x256xf32> -> vector<4x256xf32>
    %164 = arith.addf %156, %163 : vector<4x256xf32>
    %c4_131 = arith.constant 4 : index
    %c0_132 = arith.constant 0 : index
    %c0_133 = arith.constant 0 : index
    %165 = vector.load %arg13[%c4_131, %c0_132, %c0_133] : memref<9x4x32xf32, #tpu.memory_space<vmem>>, vector<1x4x32xf32>
    %166 = vector.shape_cast %165 : vector<1x4x32xf32> to vector<4x32xf32>
    %cst_134 = arith.constant dense<0.000000e+00> : vector<4x256xf32>
    %167 = tpu.matmul %166, %100, %cst_134 {dimension_numbers = #tpu.dot_dimension_numbers<[1], [0], [0], [1], [0, 0, 1, 1], [], []>} : vector<4x32xf32>, vector<32x256xf32>, vector<4x256xf32> -> vector<4x256xf32>
    %168 = arith.addf %160, %167 : vector<4x256xf32>
    %c255_i32_135 = arith.constant 255 : i32
    %169 = tpu.dynamic_rotate %100 by %c255_i32_135 dim 1 : vector<32x256xf32>, i32 -> vector<32x256xf32>
    %c5_136 = arith.constant 5 : index
    %c0_137 = arith.constant 0 : index
    %c0_138 = arith.constant 0 : index
    %170 = vector.load %arg2[%c5_136, %c0_137, %c0_138] : memref<9x1x256xf32, #tpu.memory_space<vmem>>, vector<1x1x256xf32>
    %171 = vector.shape_cast %170 : vector<1x1x256xf32> to vector<1x256xf32>
    %172 = vector.broadcast %171 : vector<1x256xf32> to vector<32x256xf32>
    %173 = arith.mulf %169, %172 : vector<32x256xf32>
    %c5_139 = arith.constant 5 : index
    %c0_140 = arith.constant 0 : index
    %c0_141 = arith.constant 0 : index
    %174 = vector.load %arg11[%c5_139, %c0_140, %c0_141] : memref<9x4x32xf32, #tpu.memory_space<vmem>>, vector<1x4x32xf32>
    %175 = vector.shape_cast %174 : vector<1x4x32xf32> to vector<4x32xf32>
    %cst_142 = arith.constant dense<0.000000e+00> : vector<4x256xf32>
    %176 = tpu.matmul %175, %173, %cst_142 {dimension_numbers = #tpu.dot_dimension_numbers<[1], [0], [0], [1], [0, 0, 1, 1], [], []>} : vector<4x32xf32>, vector<32x256xf32>, vector<4x256xf32> -> vector<4x256xf32>
    %177 = arith.addf %164, %176 : vector<4x256xf32>
    %c5_143 = arith.constant 5 : index
    %c0_144 = arith.constant 0 : index
    %c0_145 = arith.constant 0 : index
    %178 = vector.load %arg13[%c5_143, %c0_144, %c0_145] : memref<9x4x32xf32, #tpu.memory_space<vmem>>, vector<1x4x32xf32>
    %179 = vector.shape_cast %178 : vector<1x4x32xf32> to vector<4x32xf32>
    %cst_146 = arith.constant dense<0.000000e+00> : vector<4x256xf32>
    %180 = tpu.matmul %179, %173, %cst_146 {dimension_numbers = #tpu.dot_dimension_numbers<[1], [0], [0], [1], [0, 0, 1, 1], [], []>} : vector<4x32xf32>, vector<32x256xf32>, vector<4x256xf32> -> vector<4x256xf32>
    %181 = arith.addf %168, %180 : vector<4x256xf32>
    %c241_i32_147 = arith.constant 241 : i32
    %182 = tpu.dynamic_rotate %100 by %c241_i32_147 dim 1 : vector<32x256xf32>, i32 -> vector<32x256xf32>
    %c6_148 = arith.constant 6 : index
    %c0_149 = arith.constant 0 : index
    %c0_150 = arith.constant 0 : index
    %183 = vector.load %arg2[%c6_148, %c0_149, %c0_150] : memref<9x1x256xf32, #tpu.memory_space<vmem>>, vector<1x1x256xf32>
    %184 = vector.shape_cast %183 : vector<1x1x256xf32> to vector<1x256xf32>
    %185 = vector.broadcast %184 : vector<1x256xf32> to vector<32x256xf32>
    %186 = arith.mulf %182, %185 : vector<32x256xf32>
    %c6_151 = arith.constant 6 : index
    %c0_152 = arith.constant 0 : index
    %c0_153 = arith.constant 0 : index
    %187 = vector.load %arg11[%c6_151, %c0_152, %c0_153] : memref<9x4x32xf32, #tpu.memory_space<vmem>>, vector<1x4x32xf32>
    %188 = vector.shape_cast %187 : vector<1x4x32xf32> to vector<4x32xf32>
    %cst_154 = arith.constant dense<0.000000e+00> : vector<4x256xf32>
    %189 = tpu.matmul %188, %186, %cst_154 {dimension_numbers = #tpu.dot_dimension_numbers<[1], [0], [0], [1], [0, 0, 1, 1], [], []>} : vector<4x32xf32>, vector<32x256xf32>, vector<4x256xf32> -> vector<4x256xf32>
    %190 = arith.addf %177, %189 : vector<4x256xf32>
    %c6_155 = arith.constant 6 : index
    %c0_156 = arith.constant 0 : index
    %c0_157 = arith.constant 0 : index
    %191 = vector.load %arg13[%c6_155, %c0_156, %c0_157] : memref<9x4x32xf32, #tpu.memory_space<vmem>>, vector<1x4x32xf32>
    %192 = vector.shape_cast %191 : vector<1x4x32xf32> to vector<4x32xf32>
    %cst_158 = arith.constant dense<0.000000e+00> : vector<4x256xf32>
    %193 = tpu.matmul %192, %186, %cst_158 {dimension_numbers = #tpu.dot_dimension_numbers<[1], [0], [0], [1], [0, 0, 1, 1], [], []>} : vector<4x32xf32>, vector<32x256xf32>, vector<4x256xf32> -> vector<4x256xf32>
    %194 = arith.addf %181, %193 : vector<4x256xf32>
    %c240_i32_159 = arith.constant 240 : i32
    %195 = tpu.dynamic_rotate %100 by %c240_i32_159 dim 1 : vector<32x256xf32>, i32 -> vector<32x256xf32>
    %c7_160 = arith.constant 7 : index
    %c0_161 = arith.constant 0 : index
    %c0_162 = arith.constant 0 : index
    %196 = vector.load %arg2[%c7_160, %c0_161, %c0_162] : memref<9x1x256xf32, #tpu.memory_space<vmem>>, vector<1x1x256xf32>
    %197 = vector.shape_cast %196 : vector<1x1x256xf32> to vector<1x256xf32>
    %198 = vector.broadcast %197 : vector<1x256xf32> to vector<32x256xf32>
    %199 = arith.mulf %195, %198 : vector<32x256xf32>
    %c7_163 = arith.constant 7 : index
    %c0_164 = arith.constant 0 : index
    %c0_165 = arith.constant 0 : index
    %200 = vector.load %arg11[%c7_163, %c0_164, %c0_165] : memref<9x4x32xf32, #tpu.memory_space<vmem>>, vector<1x4x32xf32>
    %201 = vector.shape_cast %200 : vector<1x4x32xf32> to vector<4x32xf32>
    %cst_166 = arith.constant dense<0.000000e+00> : vector<4x256xf32>
    %202 = tpu.matmul %201, %199, %cst_166 {dimension_numbers = #tpu.dot_dimension_numbers<[1], [0], [0], [1], [0, 0, 1, 1], [], []>} : vector<4x32xf32>, vector<32x256xf32>, vector<4x256xf32> -> vector<4x256xf32>
    %203 = arith.addf %190, %202 : vector<4x256xf32>
    %c7_167 = arith.constant 7 : index
    %c0_168 = arith.constant 0 : index
    %c0_169 = arith.constant 0 : index
    %204 = vector.load %arg13[%c7_167, %c0_168, %c0_169] : memref<9x4x32xf32, #tpu.memory_space<vmem>>, vector<1x4x32xf32>
    %205 = vector.shape_cast %204 : vector<1x4x32xf32> to vector<4x32xf32>
    %cst_170 = arith.constant dense<0.000000e+00> : vector<4x256xf32>
    %206 = tpu.matmul %205, %199, %cst_170 {dimension_numbers = #tpu.dot_dimension_numbers<[1], [0], [0], [1], [0, 0, 1, 1], [], []>} : vector<4x32xf32>, vector<32x256xf32>, vector<4x256xf32> -> vector<4x256xf32>
    %207 = arith.addf %194, %206 : vector<4x256xf32>
    %c239_i32_171 = arith.constant 239 : i32
    %208 = tpu.dynamic_rotate %100 by %c239_i32_171 dim 1 : vector<32x256xf32>, i32 -> vector<32x256xf32>
    %c8_172 = arith.constant 8 : index
    %c0_173 = arith.constant 0 : index
    %c0_174 = arith.constant 0 : index
    %209 = vector.load %arg2[%c8_172, %c0_173, %c0_174] : memref<9x1x256xf32, #tpu.memory_space<vmem>>, vector<1x1x256xf32>
    %210 = vector.shape_cast %209 : vector<1x1x256xf32> to vector<1x256xf32>
    %211 = vector.broadcast %210 : vector<1x256xf32> to vector<32x256xf32>
    %212 = arith.mulf %208, %211 : vector<32x256xf32>
    %c8_175 = arith.constant 8 : index
    %c0_176 = arith.constant 0 : index
    %c0_177 = arith.constant 0 : index
    %213 = vector.load %arg11[%c8_175, %c0_176, %c0_177] : memref<9x4x32xf32, #tpu.memory_space<vmem>>, vector<1x4x32xf32>
    %214 = vector.shape_cast %213 : vector<1x4x32xf32> to vector<4x32xf32>
    %cst_178 = arith.constant dense<0.000000e+00> : vector<4x256xf32>
    %215 = tpu.matmul %214, %212, %cst_178 {dimension_numbers = #tpu.dot_dimension_numbers<[1], [0], [0], [1], [0, 0, 1, 1], [], []>} : vector<4x32xf32>, vector<32x256xf32>, vector<4x256xf32> -> vector<4x256xf32>
    %216 = arith.addf %203, %215 : vector<4x256xf32>
    %c8_179 = arith.constant 8 : index
    %c0_180 = arith.constant 0 : index
    %c0_181 = arith.constant 0 : index
    %217 = vector.load %arg13[%c8_179, %c0_180, %c0_181] : memref<9x4x32xf32, #tpu.memory_space<vmem>>, vector<1x4x32xf32>
    %218 = vector.shape_cast %217 : vector<1x4x32xf32> to vector<4x32xf32>
    %cst_182 = arith.constant dense<0.000000e+00> : vector<4x256xf32>
    %219 = tpu.matmul %218, %212, %cst_182 {dimension_numbers = #tpu.dot_dimension_numbers<[1], [0], [0], [1], [0, 0, 1, 1], [], []>} : vector<4x32xf32>, vector<32x256xf32>, vector<4x256xf32> -> vector<4x256xf32>
    %220 = arith.addf %207, %219 : vector<4x256xf32>
    %cst_183 = arith.constant 2.000000e+00 : f32
    %221 = vector.broadcast %cst_183 : f32 to vector<4x256xf32>
    %222 = arith.addf %220, %221 : vector<4x256xf32>
    %cst_184 = arith.constant 0.000000e+00 : f32
    %223 = vector.broadcast %cst_184 : f32 to vector<4x256xf32>
    %224 = arith.subf %223, %222 : vector<4x256xf32>
    %225 = math.exp %224 : vector<4x256xf32>
    %cst_185 = arith.constant 1.000000e+00 : f32
    %226 = vector.broadcast %cst_185 : f32 to vector<4x256xf32>
    %227 = arith.addf %226, %225 : vector<4x256xf32>
    %cst_186 = arith.constant 1.000000e+00 : f32
    %228 = vector.broadcast %cst_186 : f32 to vector<4x256xf32>
    %229 = arith.divf %228, %227 : vector<4x256xf32>
    %230 = arith.addf %11, %216 : vector<4x256xf32>
    %231 = arith.mulf %230, %229 : vector<4x256xf32>
    %cst_187 = arith.constant 1.000000e+00 : f32
    %232 = vector.broadcast %cst_187 : f32 to vector<4x256xf32>
    %233 = arith.addf %232, %225 : vector<4x256xf32>
    %234 = math.log %233 : vector<4x256xf32>
    %235 = vector.shape_cast %234 : vector<4x256xf32> to vector<1x4x256xf32>
    %cst_188 = arith.constant dense<0.000000e+00> : vector<1xf32>
    %236 = vector.multi_reduction <add>, %235, %cst_188 [1, 2] : vector<1x4x256xf32> to vector<1xf32>
    %237 = vector.shape_cast %236 : vector<1xf32> to vector<1x1x1xf32>
    %238 = vector.extract %237[0, 0, 0] : f32 from vector<1x1x1xf32>
    %cst_189 = arith.constant 0.000000e+00 : f32
    %239 = arith.subf %cst_189, %238 : f32
    %c0_190 = arith.constant 0 : index
    %c0_191 = arith.constant 0 : index
    %240 = vector.load %arg15[%c0_190, %c0_191] : memref<8x4xf32, #tpu.memory_space<vmem>>, vector<8x4xf32>
    %cst_192 = arith.constant dense<0.000000e+00> : vector<8x256xf32>
    %241 = tpu.matmul %240, %6, %cst_192 {dimension_numbers = #tpu.dot_dimension_numbers<[1], [0], [0], [1], [0, 0, 1, 1], [], []>} : vector<8x4xf32>, vector<4x256xf32>, vector<8x256xf32> -> vector<8x256xf32>
    %c0_193 = arith.constant 0 : index
    %c0_194 = arith.constant 0 : index
    %242 = vector.load %arg16[%c0_193, %c0_194] : memref<8x4xf32, #tpu.memory_space<vmem>>, vector<8x4xf32>
    %cst_195 = arith.constant dense<0.000000e+00> : vector<8x256xf32>
    %243 = tpu.matmul %242, %231, %cst_195 {dimension_numbers = #tpu.dot_dimension_numbers<[1], [0], [0], [1], [0, 0, 1, 1], [], []>} : vector<8x4xf32>, vector<4x256xf32>, vector<8x256xf32> -> vector<8x256xf32>
    %244 = arith.addf %241, %243 : vector<8x256xf32>
    %c0_196 = arith.constant 0 : index
    %c0_197 = arith.constant 0 : index
    %c0_198 = arith.constant 0 : index
    %245 = vector.load %arg17[%c0_196, %c0_197, %c0_198] : memref<1x8x256xf32, #tpu.memory_space<vmem>>, vector<1x8x256xf32>
    %246 = vector.shape_cast %245 : vector<1x8x256xf32> to vector<8x256xf32>
    %247 = vector.shape_cast %244 : vector<8x256xf32> to vector<1x8x256xf32>
    tpu.vector_store %arg17[%c0_196, %c0_197, %c0_198], %247 {strides = array<i32>} : memref<1x8x256xf32, #tpu.memory_space<vmem>>, vector<1x8x256xf32>,
    %cst_199 = arith.constant 0.000000e+00 : f32
    %248 = vector.broadcast %cst_199 : f32 to vector<1x8x128xf32>
    %249 = vector.broadcast %239 : f32 to vector<1x8x128xf32>
    %250 = arith.addf %248, %249 : vector<1x8x128xf32>
    %c0_200 = arith.constant 0 : index
    %c0_201 = arith.constant 0 : index
    %c0_202 = arith.constant 0 : index
    %251 = vector.load %arg18[%c0_200, %c0_201, %c0_202] : memref<1x8x128xf32, #tpu.memory_space<vmem>>, vector<1x8x128xf32>
    tpu.vector_store %arg18[%c0_200, %c0_201, %c0_202], %250 {strides = array<i32>} : memref<1x8x128xf32, #tpu.memory_space<vmem>>, vector<1x8x128xf32>,
    return
  }
  func.func @transform_0(%arg0: i32) -> (i32, i32, i32) {
    %c0_i32 = arith.constant 0 : i32
    %c0_i32_0 = arith.constant 0 : i32
    %c0_i32_1 = arith.constant 0 : i32
    return %arg0, %c0_i32, %c0_i32_0 : i32, i32, i32
  }
  func.func @transform_1(%arg0: i32) -> (i32, i32, i32) {
    %c0_i32 = arith.constant 0 : i32
    %c0_i32_0 = arith.constant 0 : i32
    %c0_i32_1 = arith.constant 0 : i32
    %c0_i32_2 = arith.constant 0 : i32
    return %c0_i32, %c0_i32_0, %c0_i32_1 : i32, i32, i32
  }
  func.func @transform_2(%arg0: i32) -> (i32, i32) {
    %c0_i32 = arith.constant 0 : i32
    %c0_i32_0 = arith.constant 0 : i32
    %c0_i32_1 = arith.constant 0 : i32
    return %c0_i32, %c0_i32_0 : i32, i32
  }
  func.func @transform_3(%arg0: i32) -> (i32, i32) {
    %c0_i32 = arith.constant 0 : i32
    %c0_i32_0 = arith.constant 0 : i32
    %c0_i32_1 = arith.constant 0 : i32
    return %c0_i32, %c0_i32_0 : i32, i32
  }
  func.func @transform_4(%arg0: i32) -> (i32, i32) {
    %c0_i32 = arith.constant 0 : i32
    %c0_i32_0 = arith.constant 0 : i32
    %c0_i32_1 = arith.constant 0 : i32
    return %c0_i32, %c0_i32_0 : i32, i32
  }
  func.func @transform_5(%arg0: i32) -> (i32, i32) {
    %c0_i32 = arith.constant 0 : i32
    %c0_i32_0 = arith.constant 0 : i32
    %c0_i32_1 = arith.constant 0 : i32
    return %c0_i32, %c0_i32_0 : i32, i32
  }
  func.func @transform_6(%arg0: i32) -> (i32, i32, i32) {
    %c0_i32 = arith.constant 0 : i32
    %c0_i32_0 = arith.constant 0 : i32
    %c0_i32_1 = arith.constant 0 : i32
    %c0_i32_2 = arith.constant 0 : i32
    return %c0_i32, %c0_i32_0, %c0_i32_1 : i32, i32, i32
  }
  func.func @transform_7(%arg0: i32) -> (i32, i32) {
    %c0_i32 = arith.constant 0 : i32
    %c0_i32_0 = arith.constant 0 : i32
    %c0_i32_1 = arith.constant 0 : i32
    return %c0_i32, %c0_i32_0 : i32, i32
  }
  func.func @transform_8(%arg0: i32) -> (i32, i32) {
    %c0_i32 = arith.constant 0 : i32
    %c0_i32_0 = arith.constant 0 : i32
    %c0_i32_1 = arith.constant 0 : i32
    return %c0_i32, %c0_i32_0 : i32, i32
  }
  func.func @transform_9(%arg0: i32) -> (i32, i32) {
    %c0_i32 = arith.constant 0 : i32
    %c0_i32_0 = arith.constant 0 : i32
    %c0_i32_1 = arith.constant 0 : i32
    return %c0_i32, %c0_i32_0 : i32, i32
  }
  func.func @transform_10(%arg0: i32) -> (i32, i32, i32) {
    %c0_i32 = arith.constant 0 : i32
    %c0_i32_0 = arith.constant 0 : i32
    %c0_i32_1 = arith.constant 0 : i32
    %c0_i32_2 = arith.constant 0 : i32
    return %c0_i32, %c0_i32_0, %c0_i32_1 : i32, i32, i32
  }
  func.func @transform_11(%arg0: i32) -> (i32, i32) {
    %c0_i32 = arith.constant 0 : i32
    %c0_i32_0 = arith.constant 0 : i32
    %c0_i32_1 = arith.constant 0 : i32
    return %c0_i32, %c0_i32_0 : i32, i32
  }
  func.func @transform_12(%arg0: i32) -> (i32, i32, i32) {
    %c0_i32 = arith.constant 0 : i32
    %c0_i32_0 = arith.constant 0 : i32
    %c0_i32_1 = arith.constant 0 : i32
    %c0_i32_2 = arith.constant 0 : i32
    return %c0_i32, %c0_i32_0, %c0_i32_1 : i32, i32, i32
  }
  func.func @transform_13(%arg0: i32) -> (i32, i32) {
    %c0_i32 = arith.constant 0 : i32
    %c0_i32_0 = arith.constant 0 : i32
    %c0_i32_1 = arith.constant 0 : i32
    return %c0_i32, %c0_i32_0 : i32, i32
  }
  func.func @transform_14(%arg0: i32) -> (i32, i32) {
    %c0_i32 = arith.constant 0 : i32
    %c0_i32_0 = arith.constant 0 : i32
    %c0_i32_1 = arith.constant 0 : i32
    return %c0_i32, %c0_i32_0 : i32, i32
  }
  func.func @transform_15(%arg0: i32) -> (i32, i32) {
    %c0_i32 = arith.constant 0 : i32
    %c0_i32_0 = arith.constant 0 : i32
    %c0_i32_1 = arith.constant 0 : i32
    return %c0_i32, %c0_i32_0 : i32, i32
  }
  func.func @transform_16(%arg0: i32) -> (i32, i32, i32) {
    %c0_i32 = arith.constant 0 : i32
    %c0_i32_0 = arith.constant 0 : i32
    %c0_i32_1 = arith.constant 0 : i32
    return %arg0, %c0_i32, %c0_i32_0 : i32, i32, i32
  }
  func.func @transform_17(%arg0: i32) -> (i32, i32, i32) {
    %c0_i32 = arith.constant 0 : i32
    %c0_i32_0 = arith.constant 0 : i32
    %c0_i32_1 = arith.constant 0 : i32
    return %arg0, %c0_i32, %c0_i32_0 : i32, i32, i32
  }
}

</mosaic_0001>

<llo_original>
// kernel: custom-call.2
$region0: #{custom-call.2}
  %s0 = inlined_call_operand.vmem [shape: f32[8,8], index: 0, kind: input, shape index: {}]
  %s1 = inlined_call_operand.vmem [shape: f32[8,8], index: 1, kind: output, shape index: {0}]
  %s2 = inlined_call_operand.hbm [shape: s32[8], index: 2, kind: output, shape index: {1}]
  %s3 = inlined_call_operand.hbm [shape: s32[8], index: 3, kind: output, shape index: {2}]
  %4 = xla_tuple %s1, %s2, %s3
  $region1: #{custom-call.2} parent=0
    #allocation0 [shape = 'u8[4096]{0}', space=vmem, size = 0x1000, scoped, tag = 'operand span for operand 0']
    #allocation1 [shape = 'u8[4096]{0}', space=vmem, size = 0x1000, scoped, tag = 'operand span for operand 1']
    #allocation2 [shape = 'u8[4096]{0}', space=vmem, size = 0x1000, scoped, tag = 'operand span for operand 2']
    #allocation3 [shape = 'u8[512]{0}', space=vmem, size = 0x400, scoped, tag = 'packed  for operand 2']
    #allocation4 [shape = 's32[1]{0}', space=sflag, size = 0x4, scoped, tag = 'scoped memory for custom-call.2']
    #allocation5 [shape = 'u8[4096]{0}', space=vmem, size = 0x1000, scoped, tag = 'operand span for operand 3']
    #allocation6 [shape = 'u8[512]{0}', space=vmem, size = 0x400, scoped, tag = 'packed  for operand 3']
    #allocation7 [shape = 's32[1]{0}', space=sflag, size = 0x4, scoped, tag = 'scoped memory for custom-call.2']
    #allocation8 [shape = 's32[8,128]{1,0}', space=vmem, size = 0x1000, scoped, tag = 'scratch for permutations']
    %5 = vsyncpa [#allocation4], 0
    %6 = vsyncpa [#allocation7], 0
    %p8 = scmp.gt.s32.totalorder 8, 0
    // Predicated region
    $region2: #{custom-call.2} parent=1 // pred_check
      %p9 = pneg %p8
    $region3: #{custom-call.2} parent=1 // pred_check_branch
      %11 = sbr.rel (%p9) target = $region5
    $region4: #{custom-call.2} parent=1 // pred_region
      %s12 = sshra.s32 8, 3
      %p13 = scmp.gt.s32.totalorder %s12, 0
      // Predicated region
      $region6: #{custom-call.2} parent=4 // pred_check
        %p14 = pneg %p13
      $region7: #{custom-call.2} parent=4 // pred_check_branch
        %16 = sbr.rel (%p14) target = $region9
      $region8: #{custom-call.2} parent=4 // pred_region
        %s17 = ssub.s32 %s12, 1
        %s18 = smul.u32 %s17, 128
        %s19 = sshra.s32 %s18, 4
        %s20 = scalar_lea.vmem %s0, %s19
        %v21 = vld [vmem:[%s0] sm:$0xff]
        // While loop
        $region10: #{custom-call.2} parent=8 // loop_pre_header
          _
        $region11: #{custom-call.2} parent=8 // loop_header
          %s22 = sphi %s0, %s44
          %s23 = sphi [#allocation0], %s45
          %v24 = vphi %v21, %v46
          %s25 = ssub.s32 %s20, 64
          %p26 = scmp.gt.s32.totalorder %s22, %s25
        $region12: #{custom-call.2} parent=8 // loop_header_branch
          %28 = sbr.rel (%p26) target = $region16
        $region13: #{custom-call.2} parent=8 // loop_body
          %29 = vst [vmem:[%s23] sm:$0xff] %v24
          %v30 = vld [vmem:[%s22 + $0x8] sm:$0xff]
          %31 = vst [vmem:[%s23 + $0x8] sm:$0xff] %v30
          %v32 = vld [vmem:[%s22 + $0x10] sm:$0xff]
          %33 = vst [vmem:[%s23 + $0x10] sm:$0xff] %v32
          %v34 = vld [vmem:[%s22 + $0x18] sm:$0xff]
          %35 = vst [vmem:[%s23 + $0x18] sm:$0xff] %v34
          %v36 = vld [vmem:[%s22 + $0x20] sm:$0xff]
          %37 = vst [vmem:[%s23 + $0x20] sm:$0xff] %v36
          %v38 = vld [vmem:[%s22 + $0x28] sm:$0xff]
          %39 = vst [vmem:[%s23 + $0x28] sm:$0xff] %v38
          %v40 = vld [vmem:[%s22 + $0x30] sm:$0xff]
          %41 = vst [vmem:[%s23 + $0x30] sm:$0xff] %v40
          %v42 = vld [vmem:[%s22 + $0x38] sm:$0xff]
          %43 = vst [vmem:[%s23 + $0x38] sm:$0xff] %v42
        $region14: #{custom-call.2} parent=8 // loop_footer
          %s44 = scalar_lea.vmem %s22, 64
          %s45 = scalar_lea.vmem %s23, 64
          %v46 = vld [vmem:[%s22 + $0x40] sm:$0xff]
        $region15: #{custom-call.2} parent=8 // loop_footer_branch
          %47 = sbr.rel target = $region11
        $region16: #{custom-call.2} parent=8 // loop_exit
          _
        // While loop
        $region17: #{custom-call.2} parent=8 // loop_pre_header
          _
        $region18: #{custom-call.2} parent=8 // loop_header
          %s48 = sphi %s22, %s56
          %s49 = sphi %s23, %s57
          %v50 = vphi %v24, %v50
          %p51 = scmp.gt.s32.totalorder %s48, %s20
        $region19: #{custom-call.2} parent=8 // loop_header_branch
          %53 = sbr.rel (%p51) target = $region23
        $region20: #{custom-call.2} parent=8 // loop_body
          %v54 = vld [vmem:[%s48] sm:$0xff]
          %55 = vst [vmem:[%s49] sm:$0xff] %v54
        $region21: #{custom-call.2} parent=8 // loop_footer
          %s56 = scalar_lea.vmem %s48, 8
          %s57 = scalar_lea.vmem %s49, 8
        $region22: #{custom-call.2} parent=8 // loop_footer_branch
          %58 = sbr.rel target = $region18
        $region23: #{custom-call.2} parent=8 // loop_exit
          _
      $region9: #{custom-call.2} parent=4 // pred_fallthru
        _
      %s59 = sand.u32 8, 7
      %s60 = sshllo.u32 0, %s59
      %s61 = smul.u32 %s12, 128
      %s62 = sshra.s32 %s61, 4
      %s63 = scalar_lea.vmem [#allocation0], %s62
      %s64 = smul.u32 %s12, 128
      %s65 = sshra.s32 %s64, 4
      %s66 = scalar_lea.vmem %s0, %s65
      %v67 = vld [vmem:[%s66] sm:%s60]
      %68 = vst [vmem:[%s63] sm:%s60] %v67
    $region5: #{custom-call.2} parent=1 // pred_fallthru
      _
    %v69 = vld [vmem:[#allocation0] sm:$0xff]
    %70 = vst [vmem:[#allocation1] sm:$0xff] %v69
    %71 = vst [vmem:[#allocation2] sm:$0x1] 0
    %v72 = vlaneseq
    %v73 = vshrl.u32 %v72, 7
    %v74 = vmov %v73
    %76 = vst [vmem:[#allocation8] sm:$0xff] %v74
    loop: start=0, step=1, limit=8
    $region25: #{custom-call.2} parent=1 // loop_pre_header
      _
    $region26: #{custom-call.2} parent=1 // loop_header
      %s78 = sphi 0, %s82
      %p79 = scmp.ge.s32.totalorder %s78, 8
    $region27: #{custom-call.2} parent=1 // loop_header_branch
      %81 = sbr.rel (%p79) target = $region31
    $region28: #{custom-call.2} parent=1 // loop_body
      %v83 = vstv %s78
      %v84 = vlaneseq
      %v85 = vshrl.u32 %v84, 7
      %v86 = vmov %v85
      %v87 = vld [vmem:[#allocation1] sm:$0xff]
      %v88 = vand.u32 2147483647, %v87
      %v90 = vstv %s78
      %vm91 = vcmp.ge.s32.totalorder %v86, %v90
      %vm92 = vcmp.lt.s32.totalorder %v86, 8
      %vm93 = vmand %vm91, %vm92
      %vm94 = vcmp.lt.f32.partialorder -inf, %v88
      %vm95 = vmand %vm93, %vm94
      %v96 = vsel %vm95, %v86, %v83
      %v97 = vsel %vm95, %v88, -inf
      %v98 = vrot.slane %v97, 1
      %v99 = vrot.slane %v96, 1
      %vm100 = vcmp.ge.f32.partialorder %v98, %v97
      %v101 = vsel %vm100, %v98, %v97
      %v102 = vsel %vm100, %v99, %v96
      %v103 = vrot.slane %v98, 1
      %v104 = vrot.slane %v99, 1
      %vm105 = vcmp.ge.f32.partialorder %v103, %v101
      %v106 = vsel %vm105, %v103, %v101
      %v107 = vsel %vm105, %v104, %v102
      %v108 = vrot.slane %v103, 1
      %v109 = vrot.slane %v104, 1
      %vm110 = vcmp.ge.f32.partialorder %v108, %v106
      %v111 = vsel %vm110, %v108, %v106
      %v112 = vsel %vm110, %v109, %v107
      %v113 = vrot.slane %v108, 1
      %v114 = vrot.slane %v109, 1
      %vm115 = vcmp.ge.f32.partialorder %v113, %v111
      %v116 = vsel %vm115, %v113, %v111
      %v117 = vsel %vm115, %v114, %v112
      %v118 = vrot.slane %v113, 1
      %v119 = vrot.slane %v114, 1
      %vm120 = vcmp.ge.f32.partialorder %v118, %v116
      %v121 = vsel %vm120, %v118, %v116
      %v122 = vsel %vm120, %v119, %v117
      %v123 = vrot.slane %v118, 1
      %v124 = vrot.slane %v119, 1
      %vm125 = vcmp.ge.f32.partialorder %v123, %v121
      %v126 = vsel %vm125, %v123, %v121
      %v127 = vsel %vm125, %v124, %v122
      %v128 = vrot.slane %v123, 1
      %v129 = vrot.slane %v124, 1
      %vm130 = vcmp.ge.f32.partialorder %v128, %v126
      %v131 = vsel %vm130, %v128, %v126
      %v132 = vsel %vm130, %v129, %v127
      %s133 = ssub.s32 128, %s78
      %134 = vrot.lane.b32.xlu0 %v132, %s133
      %v135 = vpop.permute.xlu0 %134
      %s136 = vtos %v135
      %v137 = vstv %s78
      %v138 = vlaneseq
      %v139 = vand.u32 %v138, 127
      %vm140 = vcmp.eq.s32.totalorder %v139, %v137
      %v141 = vstv %s136
      %v142 = vld [vmem:[#allocation2] ss:$0 sm:$0xff]
      %v143 = vsel %vm140, %v141, %v142
      %144 = vst [vmem:[#allocation2] sm:$0x1] %v143
      %s145 = scalar_lea.vmem [#allocation1], %s78
      %s146 = scalar_lea.vmem [#allocation1], %s136
      %v147 = vld [vmem:[%s145] ss:$0 sm:$0xff]
      %v148 = vld [vmem:[%s146] ss:$0 sm:$0xff]
      %149 = vst [vmem:[%s146] sm:$0x1] %v147
      %150 = vst [vmem:[%s145] sm:$0x1] %v148
      %s151 = scalar_lea.vmem [#allocation8], %s78
      %s152 = scalar_lea.vmem [#allocation8], %s136
      %v153 = vld [vmem:[%s151] ss:$0 sm:$0xff]
      %v154 = vld [vmem:[%s152] ss:$0 sm:$0xff]
      %155 = vst [vmem:[%s152] sm:$0x1] %v153
      %156 = vst [vmem:[%s151] sm:$0x1] %v154
      %vm157 = vcmp.ne.f32.partialorder %v148, 0.0
      %vm158 = vmand %vm140, %vm157
      %v159 = vsel %vm158, %v148, 1.0
      %v160 = vlaneseq
      %v161 = vand.u32 %v160, 127
      %v162 = vstv %s78
      %vm163 = vcmp.gt.s32.totalorder %v161, %v162
      %v164 = vsel %vm163, %v148, 0.0
      %v165 = vlaneseq
      %v166 = vshrl.u32 %v165, 7
      %v167 = vmov %v166
      %v168 = vld [vmem:[#allocation1] sm:$0xff]
      %v170 = vstv %s78
      %vm171 = vcmp.gt.s32.totalorder %v167, %v170
      %v172 = vsel %vm171, %v159, 1.0
      %v173 = vrcp.pop %v172
      %v174 = vmul.f32 %v168, %v173
      %vm175 = vmand %vm171, %vm140
      %v176 = vsel %vm175, %v174, 0.0
      %177 = vadd.xlane.f32.xlu0 %v176
      %v178 = vpop.xlane.xlu0 %177
      %v179 = vmul.f32 %v178, %v164
      %v180 = vsub.f32 %v174, %v179
      %181 = vst [vmem:[#allocation1] sm:$0xff] %v180
    $region29: #{custom-call.2} parent=1 // loop_footer
      %s82 = sadd.s32 1, %s78
    $region30: #{custom-call.2} parent=1 // loop_footer_branch
      %77 = sbr.rel target = $region26
    $region31: #{custom-call.2} parent=1 // loop_exit
      _
    %v182 = vld [vmem:[#allocation8] sm:$0xff]
    %s183 = scalar_lea.vmem [#allocation8], 8
    %s184 = scalar_lea.vmem [#allocation8], 16
    %s185 = scalar_lea.vmem [#allocation8], 24
    %s186 = scalar_lea.vmem [#allocation8], 32
    %s187 = scalar_lea.vmem [#allocation8], 40
    %s188 = scalar_lea.vmem [#allocation8], 48
    %s189 = scalar_lea.vmem [#allocation8], 56
    %s190 = scalar_lea.vmem [#allocation8], 64
    %s191 = scalar_lea.vmem [#allocation8], 72
    %s192 = scalar_lea.vmem [#allocation8], 80
    %s193 = scalar_lea.vmem [#allocation8], 88
    %s194 = scalar_lea.vmem [#allocation8], 96
    %s195 = scalar_lea.vmem [#allocation8], 104
    %s196 = scalar_lea.vmem [#allocation8], 112
    %s197 = scalar_lea.vmem [#allocation8], 120
    %198 = vxpose.xlu0.b32.start [1/16] %v182, 128
    %199 = vxpose.xlu0.b32.cont [2/16] 0, 128
    %200 = vxpose.xlu0.b32.cont [3/16] 0, 128
    %201 = vxpose.xlu0.b32.cont [4/16] 0, 128
    %202 = vxpose.xlu0.b32.cont [5/16] 0, 128
    %203 = vxpose.xlu0.b32.cont [6/16] 0, 128
    %204 = vxpose.xlu0.b32.cont [7/16] 0, 128
    %205 = vxpose.xlu0.b32.cont [8/16] 0, 128
    %206 = vxpose.xlu0.b32.cont [9/16] 0, 128
    %207 = vxpose.xlu0.b32.cont [10/16] 0, 128
    %208 = vxpose.xlu0.b32.cont [11/16] 0, 128
    %209 = vxpose.xlu0.b32.cont [12/16] 0, 128
    %210 = vxpose.xlu0.b32.cont [13/16] 0, 128
    %211 = vxpose.xlu0.b32.cont [14/16] 0, 128
    %212 = vxpose.xlu0.b32.cont [15/16] 0, 128
    %213 = vxpose.xlu0.b32.end [16/16] 0, 128
    %v214 = vpop.trf.xlu0
    %v215 = vpop.trf.xlu0
    %v216 = vpop.trf.xlu0
    %v217 = vpop.trf.xlu0
    %v218 = vpop.trf.xlu0
    %v219 = vpop.trf.xlu0
    %v220 = vpop.trf.xlu0
    %v221 = vpop.trf.xlu0
    %v222 = vpop.trf.xlu0
    %v223 = vpop.trf.xlu0
    %v224 = vpop.trf.xlu0
    %v225 = vpop.trf.xlu0
    %v226 = vpop.trf.xlu0
    %v227 = vpop.trf.xlu0
    %v228 = vpop.trf.xlu0
    %v229 = vpop.trf.xlu0
    %230 = vst [vmem:[#allocation5] sm:$0x1] %v214
    %s232 = sshllo.u32 0, 1
    %v234 = vld [vmem:[#allocation2] sm:%s232]
    %s235 = sshllo.u32 0, 1
    %236 = vst [vmem:[#allocation3] sm:%s235] %v234
    %s238 = sshllo.u32 0, 1
    %v240 = vld [vmem:[#allocation5] sm:%s238]
    %s241 = sshllo.u32 0, 1
    %242 = vst [vmem:[#allocation6] sm:%s241] %v240
    %p244 = scmp.gt.s32.totalorder 8, 0
    // Predicated region
    $region32: #{custom-call.2} parent=1 // pred_check
      %p245 = pneg %p244
    $region33: #{custom-call.2} parent=1 // pred_check_branch
      %247 = sbr.rel (%p245) target = $region35
    $region34: #{custom-call.2} parent=1 // pred_region
      %s248 = sshra.s32 8, 3
      %p249 = scmp.gt.s32.totalorder %s248, 0
      // Predicated region
      $region36: #{custom-call.2} parent=34 // pred_check
        %p250 = pneg %p249
      $region37: #{custom-call.2} parent=34 // pred_check_branch
        %252 = sbr.rel (%p250) target = $region39
      $region38: #{custom-call.2} parent=34 // pred_region
        %s253 = ssub.s32 %s248, 1
        %s254 = smul.u32 %s253, 128
        %s255 = sshra.s32 %s254, 4
        %s256 = scalar_lea.vmem [#allocation1], %s255
        %v257 = vld [vmem:[#allocation1] sm:$0xff]
        // While loop
        $region40: #{custom-call.2} parent=38 // loop_pre_header
          _
        $region41: #{custom-call.2} parent=38 // loop_header
          %s258 = sphi [#allocation1], %s280
          %s259 = sphi %s1, %s281
          %v260 = vphi %v257, %v282
          %s261 = ssub.s32 %s256, 64
          %p262 = scmp.gt.s32.totalorder %s258, %s261
        $region42: #{custom-call.2} parent=38 // loop_header_branch
          %264 = sbr.rel (%p262) target = $region46
        $region43: #{custom-call.2} parent=38 // loop_body
          %265 = vst [vmem:[%s259] sm:$0xff] %v260
          %v266 = vld [vmem:[%s258 + $0x8] sm:$0xff]
          %267 = vst [vmem:[%s259 + $0x8] sm:$0xff] %v266
          %v268 = vld [vmem:[%s258 + $0x10] sm:$0xff]
          %269 = vst [vmem:[%s259 + $0x10] sm:$0xff] %v268
          %v270 = vld [vmem:[%s258 + $0x18] sm:$0xff]
          %271 = vst [vmem:[%s259 + $0x18] sm:$0xff] %v270
          %v272 = vld [vmem:[%s258 + $0x20] sm:$0xff]
          %273 = vst [vmem:[%s259 + $0x20] sm:$0xff] %v272
          %v274 = vld [vmem:[%s258 + $0x28] sm:$0xff]
          %275 = vst [vmem:[%s259 + $0x28] sm:$0xff] %v274
          %v276 = vld [vmem:[%s258 + $0x30] sm:$0xff]
          %277 = vst [vmem:[%s259 + $0x30] sm:$0xff] %v276
          %v278 = vld [vmem:[%s258 + $0x38] sm:$0xff]
          %279 = vst [vmem:[%s259 + $0x38] sm:$0xff] %v278
        $region44: #{custom-call.2} parent=38 // loop_footer
          %s280 = scalar_lea.vmem %s258, 64
          %s281 = scalar_lea.vmem %s259, 64
          %v282 = vld [vmem:[%s258 + $0x40] sm:$0xff]
        $region45: #{custom-call.2} parent=38 // loop_footer_branch
          %283 = sbr.rel target = $region41
        $region46: #{custom-call.2} parent=38 // loop_exit
          _
        // While loop
        $region47: #{custom-call.2} parent=38 // loop_pre_header
          _
        $region48: #{custom-call.2} parent=38 // loop_header
          %s284 = sphi %s258, %s292
          %s285 = sphi %s259, %s293
          %v286 = vphi %v260, %v286
          %p287 = scmp.gt.s32.totalorder %s284, %s256
        $region49: #{custom-call.2} parent=38 // loop_header_branch
          %289 = sbr.rel (%p287) target = $region53
        $region50: #{custom-call.2} parent=38 // loop_body
          %v290 = vld [vmem:[%s284] sm:$0xff]
          %291 = vst [vmem:[%s285] sm:$0xff] %v290
        $region51: #{custom-call.2} parent=38 // loop_footer
          %s292 = scalar_lea.vmem %s284, 8
          %s293 = scalar_lea.vmem %s285, 8
        $region52: #{custom-call.2} parent=38 // loop_footer_branch
          %294 = sbr.rel target = $region48
        $region53: #{custom-call.2} parent=38 // loop_exit
          _
      $region39: #{custom-call.2} parent=34 // pred_fallthru
        _
      %s295 = sand.u32 8, 7
      %s296 = sshllo.u32 0, %s295
      %s297 = smul.u32 %s248, 128
      %s298 = sshra.s32 %s297, 4
      %s299 = scalar_lea.vmem %s1, %s298
      %s300 = smul.u32 %s248, 128
      %s301 = sshra.s32 %s300, 4
      %s302 = scalar_lea.vmem [#allocation1], %s301
      %v303 = vld [vmem:[%s302] sm:%s296]
      %304 = vst [vmem:[%s299] sm:%s296] %v303
    $region35: #{custom-call.2} parent=1 // pred_fallthru
      _
    // Predicated region
    $region54: #{custom-call.2} parent=1 // pred_check
      _
    $region55: #{custom-call.2} parent=1 // pred_check_branch
      %306 = sbr.rel (0) target = $region57
    $region56: #{custom-call.2} parent=1 // pred_region
      %s308 = ssub.s32 16, 16
      %309 = vsyncadd [#allocation4], %s308
      %s310 = sshll.u32 [#allocation3], 4
      %s311 = int_to_ptr.vmem [resolvable:$true] %s310
      %313 = dma.vmem_to_hbm [thread:$0]  %s311, 16, %s2, [#allocation4]
    $region57: #{custom-call.2} parent=1 // pred_fallthru
      _
    // Predicated region
    $region58: #{custom-call.2} parent=1 // pred_check
      _
    $region59: #{custom-call.2} parent=1 // pred_check_branch
      %315 = sbr.rel (0) target = $region61
    $region60: #{custom-call.2} parent=1 // pred_region
      %s317 = ssub.s32 16, 16
      %318 = vsyncadd [#allocation7], %s317
      %s319 = sshll.u32 [#allocation6], 4
      %s320 = int_to_ptr.vmem [resolvable:$true] %s319
      %322 = dma.vmem_to_hbm [thread:$0]  %s320, 16, %s3, [#allocation7]
    $region61: #{custom-call.2} parent=1 // pred_fallthru
      _
    // Predicated region
    $region62: #{custom-call.2} parent=1 // pred_check
      _
    $region63: #{custom-call.2} parent=1 // pred_check_branch
      %324 = sbr.rel (0) target = $region65
    $region64: #{custom-call.2} parent=1 // pred_region
      %325 = dma.done [#allocation4], 16
    $region65: #{custom-call.2} parent=1 // pred_fallthru
      _
    // Predicated region
    $region66: #{custom-call.2} parent=1 // pred_check
      _
    $region67: #{custom-call.2} parent=1 // pred_check_branch
      %327 = sbr.rel (0) target = $region69
    $region68: #{custom-call.2} parent=1 // pred_region
      %328 = dma.done [#allocation7], 16
    $region69: #{custom-call.2} parent=1 // pred_fallthru
      _
    %329 = vsyncpa [#allocation4], 1
    %330 = vsyncpa [#allocation7], 1

// kernel: flow_step_forward.1
$region0: #{flow_step_forward.1}
  #allocation0 [shape = 'u32[]', space=smem, size = 0x4, offset = 0x4, fixed_abs, tag = 'smem constant byte address 0x4 - core index']
  #allocation1 [shape = 'u32[144,128]{1,0:T(1,128)}', space=vmem, size = 0x12000, scoped, tag = 'internal scratch']
  %s0 = inlined_call_operand.vmem [shape: f32[2,8,256], index: 0, kind: input, shape index: {}]
  %s1 = inlined_call_operand.vmem [shape: f32[9,1,256], index: 1, kind: input, shape index: {}]
  %s2 = inlined_call_operand.vmem [shape: f32[4,8], index: 2, kind: input, shape index: {}]
  %s3 = inlined_call_operand.vmem [shape: f32[4,1], index: 3, kind: input, shape index: {}]
  %s4 = inlined_call_operand.vmem [shape: f32[4,8], index: 4, kind: input, shape index: {}]
  %s5 = inlined_call_operand.vmem [shape: f32[4,1], index: 5, kind: input, shape index: {}]
  %s6 = inlined_call_operand.vmem [shape: f32[9,32,4], index: 6, kind: input, shape index: {}]
  %s7 = inlined_call_operand.vmem [shape: f32[32,1], index: 7, kind: input, shape index: {}]
  %s8 = inlined_call_operand.vmem [shape: f32[32,32], index: 8, kind: input, shape index: {}]
  %s9 = inlined_call_operand.vmem [shape: f32[32,1], index: 9, kind: input, shape index: {}]
  %s10 = inlined_call_operand.vmem [shape: f32[9,4,32], index: 10, kind: input, shape index: {}]
  %s11 = inlined_call_operand.vmem [shape: f32[4,1], index: 11, kind: input, shape index: {}]
  %s12 = inlined_call_operand.vmem [shape: f32[9,4,32], index: 12, kind: input, shape index: {}]
  %s13 = inlined_call_operand.vmem [shape: f32[4,1], index: 13, kind: input, shape index: {}]
  %s14 = inlined_call_operand.vmem [shape: f32[8,4], index: 14, kind: input, shape index: {}]
  %s15 = inlined_call_operand.vmem [shape: f32[8,4], index: 15, kind: input, shape index: {}]
  %s16 = inlined_call_operand.vmem [shape: f32[2,8,256], index: 16, kind: output, shape index: {0}]
  %s17 = inlined_call_operand.vmem [shape: f32[2,8,128], index: 17, kind: output, shape index: {1}]
  %18 = xla_tuple %s16, %s17
  %s19 = sld [smem:[#allocation0]]
  $region105: #{flow_step_forward.1} parent=0
    _
  %s21 = ssub.s32 1, %s19
  %s22 = scalar_select 0, %s21, %s19
  loop: start=0, step=1, limit=4
  $region2: #{flow_step_forward.1} parent=0 // loop_pre_header
    _
  $region3: #{flow_step_forward.1} parent=0 // loop_header
    %s24 = sphi 0, %s28
    %p25 = scmp.ge.s32.totalorder %s24, 4
    %s34 = sphi 0, %s36
    %s37 = sphi 0, %s34
    %s38 = sphi 0, %s37
    %s54 = sphi 0, %s38
    %s58 = sphi 0, %s58
    %s60 = sphi 0, %s58
    %s61 = sphi 0, %s60
    %s75 = sphi 0, %s61
    %s79 = sphi 0, %s79
    %s81 = sphi 0, %s79
    %s82 = sphi 0, %s81
    %s96 = sphi 0, %s82
    %s100 = sphi 0, %s100
    %s102 = sphi 0, %s100
    %s103 = sphi 0, %s102
    %s117 = sphi 0, %s103
    %s121 = sphi 0, %s121
    %s123 = sphi 0, %s121
    %s124 = sphi 0, %s123
    %s138 = sphi 0, %s124
    %s142 = sphi 0, %s142
    %s144 = sphi 0, %s142
    %s145 = sphi 0, %s144
    %s159 = sphi 0, %s145
    %s163 = sphi 0, %s163
    %s165 = sphi 0, %s163
    %s166 = sphi 0, %s165
    %s180 = sphi 0, %s166
    %s184 = sphi 0, %s184
    %s186 = sphi 0, %s184
    %s187 = sphi 0, %s186
    %s201 = sphi 0, %s187
    %s205 = sphi 0, %s205
    %s207 = sphi 0, %s205
    %s208 = sphi 0, %s207
    %s222 = sphi 0, %s208
    %s226 = sphi 0, %s226
    %s228 = sphi 0, %s226
    %s229 = sphi 0, %s228
    %s243 = sphi 0, %s229
    %s247 = sphi 0, %s247
    %s249 = sphi 0, %s247
    %s250 = sphi 0, %s249
    %s264 = sphi 0, %s250
    %s268 = sphi 0, %s268
    %s270 = sphi 0, %s268
    %s271 = sphi 0, %s270
    %s285 = sphi 0, %s271
    %s289 = sphi 0, %s289
    %s291 = sphi 0, %s289
    %s292 = sphi 0, %s291
    %s306 = sphi 0, %s292
    %s310 = sphi 0, %s310
    %s312 = sphi 0, %s310
    %s313 = sphi 0, %s312
    %s327 = sphi 0, %s313
    %s331 = sphi 0, %s331
    %s333 = sphi 0, %s331
    %s334 = sphi 0, %s333
    %s348 = sphi 0, %s334
    %s352 = sphi 0, %s352
    %s354 = sphi 0, %s352
    %s355 = sphi 0, %s354
    %s369 = sphi 0, %s355
    %s375 = sphi 0, %s377
    %s378 = sphi 0, %s375
    %s379 = sphi 0, %s378
    %s395 = sphi 0, %s379
    %s401 = sphi 0, %s403
    %s404 = sphi 0, %s401
    %s405 = sphi 0, %s404
    %s421 = sphi 0, %s405
  $region4: #{flow_step_forward.1} parent=0 // loop_header_branch
    %27 = sbr.rel (%p25) target = $region8
  $region5: #{flow_step_forward.1} parent=0 // loop_body
    %s29 = ssub.s32 %s24, 1
    %s30 = ssub.s32 %s24, 2
    %s31 = sadd.s32 %s24, 1
    %s32 = ssub.s32 %s24, %s31
    %p33 = scmp.eq.s32.totalorder %s32, 0
    %s35 = sadd.s32 %s34, 1
    %s36 = scalar_select %p33, %s34, %s35
    %p39 = pneg %p33
    %p40 = scmp.eq.s32.totalorder %s24, 1
    %p41 = por %p39, %p40
    %p42 = scmp.ne.s32.totalorder %s34, %s37
    %p43 = scmp.eq.s32.totalorder %s24, 0
    %p44 = por %p42, %p43
    %p45 = scmp.ne.s32.totalorder %s34, %s37
    %p46 = scmp.eq.s32.totalorder %s29, 1
    %p47 = por %p45, %p46
    %p48 = scmp.ne.s32.totalorder %s37, %s38
    %p49 = scmp.eq.s32.totalorder %s29, 0
    %p50 = por %p48, %p49
    %p51 = scmp.ne.s32.totalorder %s37, %s38
    %p52 = scmp.eq.s32.totalorder %s30, 1
    %p53 = por %p51, %p52
    %p55 = scmp.ne.s32.totalorder %s38, %s54
    %p56 = scmp.eq.s32.totalorder %s30, 0
    %p57 = por %p55, %p56
    %s59 = sadd.s32 %s58, 1
    %p62 = scmp.eq.s32.totalorder %s24, 1
    %p63 = scmp.ne.s32.totalorder %s58, %s60
    %p64 = scmp.eq.s32.totalorder %s24, 0
    %p65 = por %p63, %p64
    %p66 = scmp.ne.s32.totalorder %s58, %s60
    %p67 = scmp.eq.s32.totalorder %s29, 1
    %p68 = por %p66, %p67
    %p69 = scmp.ne.s32.totalorder %s60, %s61
    %p70 = scmp.eq.s32.totalorder %s29, 0
    %p71 = por %p69, %p70
    %p72 = scmp.ne.s32.totalorder %s60, %s61
    %p73 = scmp.eq.s32.totalorder %s30, 1
    %p74 = por %p72, %p73
    %p76 = scmp.ne.s32.totalorder %s61, %s75
    %p77 = scmp.eq.s32.totalorder %s30, 0
    %p78 = por %p76, %p77
    %s80 = sadd.s32 %s79, 1
    %p83 = scmp.eq.s32.totalorder %s24, 1
    %p84 = scmp.ne.s32.totalorder %s79, %s81
    %p85 = scmp.eq.s32.totalorder %s24, 0
    %p86 = por %p84, %p85
    %p87 = scmp.ne.s32.totalorder %s79, %s81
    %p88 = scmp.eq.s32.totalorder %s29, 1
    %p89 = por %p87, %p88
    %p90 = scmp.ne.s32.totalorder %s81, %s82
    %p91 = scmp.eq.s32.totalorder %s29, 0
    %p92 = por %p90, %p91
    %p93 = scmp.ne.s32.totalorder %s81, %s82
    %p94 = scmp.eq.s32.totalorder %s30, 1
    %p95 = por %p93, %p94
    %p97 = scmp.ne.s32.totalorder %s82, %s96
    %p98 = scmp.eq.s32.totalorder %s30, 0
    %p99 = por %p97, %p98
    %s101 = sadd.s32 %s100, 1
    %p104 = scmp.eq.s32.totalorder %s24, 1
    %p105 = scmp.ne.s32.totalorder %s100, %s102
    %p106 = scmp.eq.s32.totalorder %s24, 0
    %p107 = por %p105, %p106
    %p108 = scmp.ne.s32.totalorder %s100, %s102
    %p109 = scmp.eq.s32.totalorder %s29, 1
    %p110 = por %p108, %p109
    %p111 = scmp.ne.s32.totalorder %s102, %s103
    %p112 = scmp.eq.s32.totalorder %s29, 0
    %p113 = por %p111, %p112
    %p114 = scmp.ne.s32.totalorder %s102, %s103
    %p115 = scmp.eq.s32.totalorder %s30, 1
    %p116 = por %p114, %p115
    %p118 = scmp.ne.s32.totalorder %s103, %s117
    %p119 = scmp.eq.s32.totalorder %s30, 0
    %p120 = por %p118, %p119
    %s122 = sadd.s32 %s121, 1
    %p125 = scmp.eq.s32.totalorder %s24, 1
    %p126 = scmp.ne.s32.totalorder %s121, %s123
    %p127 = scmp.eq.s32.totalorder %s24, 0
    %p128 = por %p126, %p127
    %p129 = scmp.ne.s32.totalorder %s121, %s123
    %p130 = scmp.eq.s32.totalorder %s29, 1
    %p131 = por %p129, %p130
    %p132 = scmp.ne.s32.totalorder %s123, %s124
    %p133 = scmp.eq.s32.totalorder %s29, 0
    %p134 = por %p132, %p133
    %p135 = scmp.ne.s32.totalorder %s123, %s124
    %p136 = scmp.eq.s32.totalorder %s30, 1
    %p137 = por %p135, %p136
    %p139 = scmp.ne.s32.totalorder %s124, %s138
    %p140 = scmp.eq.s32.totalorder %s30, 0
    %p141 = por %p139, %p140
    %s143 = sadd.s32 %s142, 1
    %p146 = scmp.eq.s32.totalorder %s24, 1
    %p147 = scmp.ne.s32.totalorder %s142, %s144
    %p148 = scmp.eq.s32.totalorder %s24, 0
    %p149 = por %p147, %p148
    %p150 = scmp.ne.s32.totalorder %s142, %s144
    %p151 = scmp.eq.s32.totalorder %s29, 1
    %p152 = por %p150, %p151
    %p153 = scmp.ne.s32.totalorder %s144, %s145
    %p154 = scmp.eq.s32.totalorder %s29, 0
    %p155 = por %p153, %p154
    %p156 = scmp.ne.s32.totalorder %s144, %s145
    %p157 = scmp.eq.s32.totalorder %s30, 1
    %p158 = por %p156, %p157
    %p160 = scmp.ne.s32.totalorder %s145, %s159
    %p161 = scmp.eq.s32.totalorder %s30, 0
    %p162 = por %p160, %p161
    %s164 = sadd.s32 %s163, 1
    %p167 = scmp.eq.s32.totalorder %s24, 1
    %p168 = scmp.ne.s32.totalorder %s163, %s165
    %p169 = scmp.eq.s32.totalorder %s24, 0
    %p170 = por %p168, %p169
    %p171 = scmp.ne.s32.totalorder %s163, %s165
    %p172 = scmp.eq.s32.totalorder %s29, 1
    %p173 = por %p171, %p172
    %p174 = scmp.ne.s32.totalorder %s165, %s166
    %p175 = scmp.eq.s32.totalorder %s29, 0
    %p176 = por %p174, %p175
    %p177 = scmp.ne.s32.totalorder %s165, %s166
    %p178 = scmp.eq.s32.totalorder %s30, 1
    %p179 = por %p177, %p178
    %p181 = scmp.ne.s32.totalorder %s166, %s180
    %p182 = scmp.eq.s32.totalorder %s30, 0
    %p183 = por %p181, %p182
    %s185 = sadd.s32 %s184, 1
    %p188 = scmp.eq.s32.totalorder %s24, 1
    %p189 = scmp.ne.s32.totalorder %s184, %s186
    %p190 = scmp.eq.s32.totalorder %s24, 0
    %p191 = por %p189, %p190
    %p192 = scmp.ne.s32.totalorder %s184, %s186
    %p193 = scmp.eq.s32.totalorder %s29, 1
    %p194 = por %p192, %p193
    %p195 = scmp.ne.s32.totalorder %s186, %s187
    %p196 = scmp.eq.s32.totalorder %s29, 0
    %p197 = por %p195, %p196
    %p198 = scmp.ne.s32.totalorder %s186, %s187
    %p199 = scmp.eq.s32.totalorder %s30, 1
    %p200 = por %p198, %p199
    %p202 = scmp.ne.s32.totalorder %s187, %s201
    %p203 = scmp.eq.s32.totalorder %s30, 0
    %p204 = por %p202, %p203
    %s206 = sadd.s32 %s205, 1
    %p209 = scmp.eq.s32.totalorder %s24, 1
    %p210 = scmp.ne.s32.totalorder %s205, %s207
    %p211 = scmp.eq.s32.totalorder %s24, 0
    %p212 = por %p210, %p211
    %p213 = scmp.ne.s32.totalorder %s205, %s207
    %p214 = scmp.eq.s32.totalorder %s29, 1
    %p215 = por %p213, %p214
    %p216 = scmp.ne.s32.totalorder %s207, %s208
    %p217 = scmp.eq.s32.totalorder %s29, 0
    %p218 = por %p216, %p217
    %p219 = scmp.ne.s32.totalorder %s207, %s208
    %p220 = scmp.eq.s32.totalorder %s30, 1
    %p221 = por %p219, %p220
    %p223 = scmp.ne.s32.totalorder %s208, %s222
    %p224 = scmp.eq.s32.totalorder %s30, 0
    %p225 = por %p223, %p224
    %s227 = sadd.s32 %s226, 1
    %p230 = scmp.eq.s32.totalorder %s24, 1
    %p231 = scmp.ne.s32.totalorder %s226, %s228
    %p232 = scmp.eq.s32.totalorder %s24, 0
    %p233 = por %p231, %p232
    %p234 = scmp.ne.s32.totalorder %s226, %s228
    %p235 = scmp.eq.s32.totalorder %s29, 1
    %p236 = por %p234, %p235
    %p237 = scmp.ne.s32.totalorder %s228, %s229
    %p238 = scmp.eq.s32.totalorder %s29, 0
    %p239 = por %p237, %p238
    %p240 = scmp.ne.s32.totalorder %s228, %s229
    %p241 = scmp.eq.s32.totalorder %s30, 1
    %p242 = por %p240, %p241
    %p244 = scmp.ne.s32.totalorder %s229, %s243
    %p245 = scmp.eq.s32.totalorder %s30, 0
    %p246 = por %p244, %p245
    %s248 = sadd.s32 %s247, 1
    %p251 = scmp.eq.s32.totalorder %s24, 1
    %p252 = scmp.ne.s32.totalorder %s247, %s249
    %p253 = scmp.eq.s32.totalorder %s24, 0
    %p254 = por %p252, %p253
    %p255 = scmp.ne.s32.totalorder %s247, %s249
    %p256 = scmp.eq.s32.totalorder %s29, 1
    %p257 = por %p255, %p256
    %p258 = scmp.ne.s32.totalorder %s249, %s250
    %p259 = scmp.eq.s32.totalorder %s29, 0
    %p260 = por %p258, %p259
    %p261 = scmp.ne.s32.totalorder %s249, %s250
    %p262 = scmp.eq.s32.totalorder %s30, 1
    %p263 = por %p261, %p262
    %p265 = scmp.ne.s32.totalorder %s250, %s264
    %p266 = scmp.eq.s32.totalorder %s30, 0
    %p267 = por %p265, %p266
    %s269 = sadd.s32 %s268, 1
    %p272 = scmp.eq.s32.totalorder %s24, 1
    %p273 = scmp.ne.s32.totalorder %s268, %s270
    %p274 = scmp.eq.s32.totalorder %s24, 0
    %p275 = por %p273, %p274
    %p276 = scmp.ne.s32.totalorder %s268, %s270
    %p277 = scmp.eq.s32.totalorder %s29, 1
    %p278 = por %p276, %p277
    %p279 = scmp.ne.s32.totalorder %s270, %s271
    %p280 = scmp.eq.s32.totalorder %s29, 0
    %p281 = por %p279, %p280
    %p282 = scmp.ne.s32.totalorder %s270, %s271
    %p283 = scmp.eq.s32.totalorder %s30, 1
    %p284 = por %p282, %p283
    %p286 = scmp.ne.s32.totalorder %s271, %s285
    %p287 = scmp.eq.s32.totalorder %s30, 0
    %p288 = por %p286, %p287
    %s290 = sadd.s32 %s289, 1
    %p293 = scmp.eq.s32.totalorder %s24, 1
    %p294 = scmp.ne.s32.totalorder %s289, %s291
    %p295 = scmp.eq.s32.totalorder %s24, 0
    %p296 = por %p294, %p295
    %p297 = scmp.ne.s32.totalorder %s289, %s291
    %p298 = scmp.eq.s32.totalorder %s29, 1
    %p299 = por %p297, %p298
    %p300 = scmp.ne.s32.totalorder %s291, %s292
    %p301 = scmp.eq.s32.totalorder %s29, 0
    %p302 = por %p300, %p301
    %p303 = scmp.ne.s32.totalorder %s291, %s292
    %p304 = scmp.eq.s32.totalorder %s30, 1
    %p305 = por %p303, %p304
    %p307 = scmp.ne.s32.totalorder %s292, %s306
    %p308 = scmp.eq.s32.totalorder %s30, 0
    %p309 = por %p307, %p308
    %s311 = sadd.s32 %s310, 1
    %p314 = scmp.eq.s32.totalorder %s24, 1
    %p315 = scmp.ne.s32.totalorder %s310, %s312
    %p316 = scmp.eq.s32.totalorder %s24, 0
    %p317 = por %p315, %p316
    %p318 = scmp.ne.s32.totalorder %s310, %s312
    %p319 = scmp.eq.s32.totalorder %s29, 1
    %p320 = por %p318, %p319
    %p321 = scmp.ne.s32.totalorder %s312, %s313
    %p322 = scmp.eq.s32.totalorder %s29, 0
    %p323 = por %p321, %p322
    %p324 = scmp.ne.s32.totalorder %s312, %s313
    %p325 = scmp.eq.s32.totalorder %s30, 1
    %p326 = por %p324, %p325
    %p328 = scmp.ne.s32.totalorder %s313, %s327
    %p329 = scmp.eq.s32.totalorder %s30, 0
    %p330 = por %p328, %p329
    %s332 = sadd.s32 %s331, 1
    %p335 = scmp.eq.s32.totalorder %s24, 1
    %p336 = scmp.ne.s32.totalorder %s331, %s333
    %p337 = scmp.eq.s32.totalorder %s24, 0
    %p338 = por %p336, %p337
    %p339 = scmp.ne.s32.totalorder %s331, %s333
    %p340 = scmp.eq.s32.totalorder %s29, 1
    %p341 = por %p339, %p340
    %p342 = scmp.ne.s32.totalorder %s333, %s334
    %p343 = scmp.eq.s32.totalorder %s29, 0
    %p344 = por %p342, %p343
    %p345 = scmp.ne.s32.totalorder %s333, %s334
    %p346 = scmp.eq.s32.totalorder %s30, 1
    %p347 = por %p345, %p346
    %p349 = scmp.ne.s32.totalorder %s334, %s348
    %p350 = scmp.eq.s32.totalorder %s30, 0
    %p351 = por %p349, %p350
    %s353 = sadd.s32 %s352, 1
    %p356 = scmp.eq.s32.totalorder %s24, 1
    %p357 = scmp.ne.s32.totalorder %s352, %s354
    %p358 = scmp.eq.s32.totalorder %s24, 0
    %p359 = por %p357, %p358
    %p360 = scmp.ne.s32.totalorder %s352, %s354
    %p361 = scmp.eq.s32.totalorder %s29, 1
    %p362 = por %p360, %p361
    %p363 = scmp.ne.s32.totalorder %s354, %s355
    %p364 = scmp.eq.s32.totalorder %s29, 0
    %p365 = por %p363, %p364
    %p366 = scmp.ne.s32.totalorder %s354, %s355
    %p367 = scmp.eq.s32.totalorder %s30, 1
    %p368 = por %p366, %p367
    %p370 = scmp.ne.s32.totalorder %s355, %s369
    %p371 = scmp.eq.s32.totalorder %s30, 0
    %p372 = por %p370, %p371
    %s373 = ssub.s32 %s24, %s31
    %p374 = scmp.eq.s32.totalorder %s373, 0
    %s376 = sadd.s32 %s375, 1
    %s377 = scalar_select %p374, %s375, %s376
    %p380 = pneg %p374
    %p381 = scmp.eq.s32.totalorder %s24, 1
    %p382 = por %p380, %p381
    %p383 = scmp.ne.s32.totalorder %s375, %s378
    %p384 = scmp.eq.s32.totalorder %s24, 0
    %p385 = por %p383, %p384
    %p386 = scmp.ne.s32.totalorder %s375, %s378
    %p387 = scmp.eq.s32.totalorder %s29, 1
    %p388 = por %p386, %p387
    %p389 = scmp.ne.s32.totalorder %s378, %s379
    %p390 = scmp.eq.s32.totalorder %s29, 0
    %p391 = por %p389, %p390
    %p392 = scmp.ne.s32.totalorder %s378, %s379
    %p393 = scmp.eq.s32.totalorder %s30, 1
    %p394 = por %p392, %p393
    %p396 = scmp.ne.s32.totalorder %s379, %s395
    %p397 = scmp.eq.s32.totalorder %s30, 0
    %p398 = por %p396, %p397
    %s399 = ssub.s32 %s24, %s31
    %p400 = scmp.eq.s32.totalorder %s399, 0
    %s402 = sadd.s32 %s401, 1
    %s403 = scalar_select %p400, %s401, %s402
    %p406 = pneg %p400
    %p407 = scmp.eq.s32.totalorder %s24, 1
    %p408 = por %p406, %p407
    %p409 = scmp.ne.s32.totalorder %s401, %s404
    %p410 = scmp.eq.s32.totalorder %s24, 0
    %p411 = por %p409, %p410
    %p412 = scmp.ne.s32.totalorder %s401, %s404
    %p413 = scmp.eq.s32.totalorder %s29, 1
    %p414 = por %p412, %p413
    %p415 = scmp.ne.s32.totalorder %s404, %s405
    %p416 = scmp.eq.s32.totalorder %s29, 0
    %p417 = por %p415, %p416
    %p418 = scmp.ne.s32.totalorder %s404, %s405
    %p419 = scmp.eq.s32.totalorder %s30, 1
    %p420 = por %p418, %p419
    %p422 = scmp.ne.s32.totalorder %s405, %s421
    %p423 = scmp.eq.s32.totalorder %s30, 0
    %p424 = por %p422, %p423
    %p425 = scmp.le.s32.totalorder 1, %s24
    %p426 = scmp.lt.s32.totalorder %s24, 3
    %p427 = pnand %p425, %p426
    %p428 = pneg %p427
    // Predicated region
    $region9: #{flow_step_forward.1} parent=5 // pred_check
      _
    $region10: #{flow_step_forward.1} parent=5 // pred_check_branch
      %430 = sbr.rel (%p427) target = $region12
    $region11: #{flow_step_forward.1} parent=5 // pred_region
      %s431 = ssub.s32 %s24, 1
      // Predicated region
      $region13: #{flow_step_forward.1} parent=11 // pred_check
        %p432 = pneg %p71
      $region14: #{flow_step_forward.1} parent=11 // pred_check_branch
        %434 = sbr.rel (%p432) target = $region16
      $region15: #{flow_step_forward.1} parent=11 // pred_region
        _
      $region16: #{flow_step_forward.1} parent=11 // pred_fallthru
        _
      // Predicated region
      $region17: #{flow_step_forward.1} parent=11 // pred_check
        %p435 = pneg %p92
      $region18: #{flow_step_forward.1} parent=11 // pred_check_branch
        %437 = sbr.rel (%p435) target = $region20
      $region19: #{flow_step_forward.1} parent=11 // pred_region
        _
      $region20: #{flow_step_forward.1} parent=11 // pred_fallthru
        _
      // Predicated region
      $region21: #{flow_step_forward.1} parent=11 // pred_check
        %p438 = pneg %p113
      $region22: #{flow_step_forward.1} parent=11 // pred_check_branch
        %440 = sbr.rel (%p438) target = $region24
      $region23: #{flow_step_forward.1} parent=11 // pred_region
        _
      $region24: #{flow_step_forward.1} parent=11 // pred_fallthru
        _
      // Predicated region
      $region25: #{flow_step_forward.1} parent=11 // pred_check
        %p441 = pneg %p134
      $region26: #{flow_step_forward.1} parent=11 // pred_check_branch
        %443 = sbr.rel (%p441) target = $region28
      $region27: #{flow_step_forward.1} parent=11 // pred_region
        _
      $region28: #{flow_step_forward.1} parent=11 // pred_fallthru
        _
      // Predicated region
      $region29: #{flow_step_forward.1} parent=11 // pred_check
        %p444 = pneg %p155
      $region30: #{flow_step_forward.1} parent=11 // pred_check_branch
        %446 = sbr.rel (%p444) target = $region32
      $region31: #{flow_step_forward.1} parent=11 // pred_region
        _
      $region32: #{flow_step_forward.1} parent=11 // pred_fallthru
        _
      // Predicated region
      $region33: #{flow_step_forward.1} parent=11 // pred_check
        %p447 = pneg %p176
      $region34: #{flow_step_forward.1} parent=11 // pred_check_branch
        %449 = sbr.rel (%p447) target = $region36
      $region35: #{flow_step_forward.1} parent=11 // pred_region
        _
      $region36: #{flow_step_forward.1} parent=11 // pred_fallthru
        _
      // Predicated region
      $region37: #{flow_step_forward.1} parent=11 // pred_check
        %p450 = pneg %p197
      $region38: #{flow_step_forward.1} parent=11 // pred_check_branch
        %452 = sbr.rel (%p450) target = $region40
      $region39: #{flow_step_forward.1} parent=11 // pred_region
        _
      $region40: #{flow_step_forward.1} parent=11 // pred_fallthru
        _
      // Predicated region
      $region41: #{flow_step_forward.1} parent=11 // pred_check
        %p453 = pneg %p218
      $region42: #{flow_step_forward.1} parent=11 // pred_check_branch
        %455 = sbr.rel (%p453) target = $region44
      $region43: #{flow_step_forward.1} parent=11 // pred_region
        _
      $region44: #{flow_step_forward.1} parent=11 // pred_fallthru
        _
      // Predicated region
      $region45: #{flow_step_forward.1} parent=11 // pred_check
        %p456 = pneg %p239
      $region46: #{flow_step_forward.1} parent=11 // pred_check_branch
        %458 = sbr.rel (%p456) target = $region48
      $region47: #{flow_step_forward.1} parent=11 // pred_region
        _
      $region48: #{flow_step_forward.1} parent=11 // pred_fallthru
        _
      // Predicated region
      $region49: #{flow_step_forward.1} parent=11 // pred_check
        %p459 = pneg %p260
      $region50: #{flow_step_forward.1} parent=11 // pred_check_branch
        %461 = sbr.rel (%p459) target = $region52
      $region51: #{flow_step_forward.1} parent=11 // pred_region
        _
      $region52: #{flow_step_forward.1} parent=11 // pred_fallthru
        _
      // Predicated region
      $region53: #{flow_step_forward.1} parent=11 // pred_check
        %p462 = pneg %p281
      $region54: #{flow_step_forward.1} parent=11 // pred_check_branch
        %464 = sbr.rel (%p462) target = $region56
      $region55: #{flow_step_forward.1} parent=11 // pred_region
        _
      $region56: #{flow_step_forward.1} parent=11 // pred_fallthru
        _
      // Predicated region
      $region57: #{flow_step_forward.1} parent=11 // pred_check
        %p465 = pneg %p302
      $region58: #{flow_step_forward.1} parent=11 // pred_check_branch
        %467 = sbr.rel (%p465) target = $region60
      $region59: #{flow_step_forward.1} parent=11 // pred_region
        _
      $region60: #{flow_step_forward.1} parent=11 // pred_fallthru
        _
      // Predicated region
      $region61: #{flow_step_forward.1} parent=11 // pred_check
        %p468 = pneg %p323
      $region62: #{flow_step_forward.1} parent=11 // pred_check_branch
        %470 = sbr.rel (%p468) target = $region64
      $region63: #{flow_step_forward.1} parent=11 // pred_region
        _
      $region64: #{flow_step_forward.1} parent=11 // pred_fallthru
        _
      // Predicated region
      $region65: #{flow_step_forward.1} parent=11 // pred_check
        %p471 = pneg %p344
      $region66: #{flow_step_forward.1} parent=11 // pred_check_branch
        %473 = sbr.rel (%p471) target = $region68
      $region67: #{flow_step_forward.1} parent=11 // pred_region
        _
      $region68: #{flow_step_forward.1} parent=11 // pred_fallthru
        _
      // Predicated region
      $region69: #{flow_step_forward.1} parent=11 // pred_check
        %p474 = pneg %p365
      $region70: #{flow_step_forward.1} parent=11 // pred_check_branch
        %476 = sbr.rel (%p474) target = $region72
      $region71: #{flow_step_forward.1} parent=11 // pred_region
        _
      $region72: #{flow_step_forward.1} parent=11 // pred_fallthru
        _
    $region12: #{flow_step_forward.1} parent=5 // pred_fallthru
      _
    %p477 = scmp.lt.s32.totalorder %s24, 2
    // Predicated region
    $region73: #{flow_step_forward.1} parent=5 // pred_check
      %p478 = pneg %p477
    $region74: #{flow_step_forward.1} parent=5 // pred_check_branch
      %480 = sbr.rel (%p478) target = $region76
    $region75: #{flow_step_forward.1} parent=5 // pred_region
      // Predicated region
      $region77: #{flow_step_forward.1} parent=75 // pred_check
        %p481 = pneg %p44
      $region78: #{flow_step_forward.1} parent=75 // pred_check_branch
        %483 = sbr.rel (%p481) target = $region80
      $region79: #{flow_step_forward.1} parent=75 // pred_region
        %p484 = scmp.lt.s32.totalorder %s24, 1
        %s485 = scalar_select %p484, %s24, 1
        %s486 = smul.addr %s485, 2
        %s487 = smul.addr %s486, 8
        %s488 = scalar_lea.vmem %s0, %s487
      $region80: #{flow_step_forward.1} parent=75 // pred_fallthru
        _
    $region76: #{flow_step_forward.1} parent=5 // pred_fallthru
      _
    %p489 = scmp.le.s32.totalorder 1, %s24
    %p490 = scmp.lt.s32.totalorder %s24, 3
    %p491 = pnand %p489, %p490
    %p492 = pneg %p491
    // Predicated region
    $region81: #{flow_step_forward.1} parent=5 // pred_check
      _
    $region82: #{flow_step_forward.1} parent=5 // pred_check_branch
      %494 = sbr.rel (%p491) target = $region84
    $region83: #{flow_step_forward.1} parent=5 // pred_region
      %s495 = ssub.s32 %s24, 1
      %p496 = scmp.lt.s32.totalorder %s29, 1
      %s497 = scalar_select %p496, %s29, 1
      %s498 = smul.addr %s497, 2
      %s499 = smul.addr %s498, 8
      %s500 = scalar_lea.vmem %s0, %s499
      %p501 = pneg %p50
      %p502 = pneg %p47
      %p503 = pneg %p71
      %p504 = pneg %p68
      %p505 = pneg %p92
      %p506 = pneg %p89
      %p507 = pneg %p113
      %p508 = pneg %p110
      %p509 = pneg %p134
      %p510 = pneg %p131
      %p511 = pneg %p155
      %p512 = pneg %p152
      %p513 = pneg %p176
      %p514 = pneg %p173
      %p515 = pneg %p197
      %p516 = pneg %p194
      %p517 = pneg %p218
      %p518 = pneg %p215
      %p519 = pneg %p239
      %p520 = pneg %p236
      %p521 = pneg %p260
      %p522 = pneg %p257
      %p523 = pneg %p281
      %p524 = pneg %p278
      %p525 = pneg %p302
      %p526 = pneg %p299
      %p527 = pneg %p323
      %p528 = pneg %p320
      %p529 = pneg %p344
      %p530 = pneg %p341
      %p531 = pneg %p365
      %p532 = pneg %p362
      %p533 = pneg %p391
      %p534 = pneg %p388
      %p535 = scmp.lt.s32.totalorder %s29, 1
      %s536 = scalar_select %p535, %s29, 1
      %s537 = smul.addr %s536, 2
      %s538 = smul.addr %s537, 8
      %s539 = scalar_lea.vmem %s16, %s538
      %p540 = pneg %p417
      %p541 = pneg %p414
      %p542 = scmp.lt.s32.totalorder %s29, 1
      %s543 = scalar_select %p542, %s29, 1
      %s544 = smul.addr %s543, 8
      %s545 = scalar_lea.vmem %s17, %s544
      %p546 = scmp.lt.s32.totalorder %s29, 1
      %s547 = scalar_select %p546, %s29, 1
      %s548 = smul.addr %s547, 2
      %s549 = smul.addr %s548, 8
      %s550 = scalar_lea.vmem %s0, %s549
      %p551 = scmp.lt.s32.totalorder %s29, 1
      %s552 = scalar_select %p551, %s29, 1
      %s553 = smul.addr %s552, 2
      %s554 = smul.addr %s553, 8
      %s555 = scalar_lea.vmem %s16, %s554
      %p556 = scmp.lt.s32.totalorder %s29, 1
      %s557 = scalar_select %p556, %s29, 1
      %s558 = smul.addr %s557, 8
      %s559 = scalar_lea.vmem %s17, %s558
      %v560 = vld [vmem:[%s550] sm:$0xff]
      %v561 = vld [vmem:[%s550 + $0x8] sm:$0xff]
      %v562 = vld [vmem:[%s2] sm:$0xf]
      %v563 = vld [vmem:[%s3] sm:$0xf]
      %565 = vset.pattern.permute.xlu0 0
      %566 = vperm.xlu0 %565, %v563
      %v567 = vpop.permute.xlu0 %566
      %vm569 = vcmask 64512
      %v571 = vsel %vm569, %v562, 0
      %573 = vmatprep.subr.mxu0 %v561
      %574 = vmatpush1.msra.mxu0 %v560
      %575 = vmatprep.subr.mxu0 0.0
      %576 = vmatpush1.msra.mxu0 0.0
      %577 = vmatprep.subr.mxu0 0.0
      %578 = vmatpush1.msra.mxu0 0.0
      %579 = vmatprep.subr.mxu0 0.0
      %580 = vmatpush1.msra.mxu0 0.0
      %581 = vmatprep.subr.mxu0 0.0
      %582 = vmatpush1.msra.mxu0 0.0
      %583 = vmatprep.subr.mxu0 0.0
      %584 = vmatpush1.msra.mxu0 0.0
      %585 = vmatprep.subr.mxu0 0.0
      %586 = vmatpush1.msra.mxu0 0.0
      %587 = vmatprep.subr.mxu0 0.0
      %588 = vmatpush1.msra.mxu0 0.0
      %589 = vmatprep.subr.mxu0 0.0
      %590 = vmatpush1.msra.mxu0 0.0
      %591 = vmatprep.subr.mxu0 0.0
      %592 = vmatpush1.msra.mxu0 0.0
      %593 = vmatprep.subr.mxu0 0.0
      %594 = vmatpush1.msra.mxu0 0.0
      %595 = vmatprep.subr.mxu0 0.0
      %596 = vmatpush1.msra.mxu0 0.0
      %597 = vmatprep.subr.mxu0 0.0
      %598 = vmatpush1.msra.mxu0 0.0
      %599 = vmatprep.subr.mxu0 0.0
      %600 = vmatpush1.msra.mxu0 0.0
      %601 = vmatprep.subr.mxu0 0.0
      %602 = vmatpush1.msra.mxu0 0.0
      %603 = vmatprep.subr.mxu0 0.0
      %604 = vmatpush1.msra.mxu0 0.0
      %605 = vmatprep.subr.mxu0 0.0
      %606 = vmatpush1.msra.mxu0 0.0
      %607 = vmatprep.subr.mxu0 0.0
      %608 = vmatpush1.msra.mxu0 0.0
      %609 = vmatprep.subr.mxu0 0.0
      %610 = vmatpush1.msra.mxu0 0.0
      %611 = vmatprep.subr.mxu0 0.0
      %612 = vmatpush1.msra.mxu0 0.0
      %613 = vmatprep.subr.mxu0 0.0
      %614 = vmatpush1.msra.mxu0 0.0
      %615 = vmatprep.subr.mxu0 0.0
      %616 = vmatpush1.msra.mxu0 0.0
      %617 = vmatprep.subr.mxu0 0.0
      %618 = vmatpush1.msra.mxu0 0.0
      %619 = vmatprep.subr.mxu0 0.0
      %620 = vmatpush1.msra.mxu0 0.0
      %621 = vmatprep.subr.mxu0 0.0
      %622 = vmatpush1.msra.mxu0 0.0
      %623 = vmatprep.subr.mxu0 0.0
      %624 = vmatpush1.msra.mxu0 0.0
      %625 = vmatprep.subr.mxu0 0.0
      %626 = vmatpush1.msra.mxu0 0.0
      %627 = vmatprep.subr.mxu0 0.0
      %628 = vmatpush1.msra.mxu0 0.0
      %629 = vmatprep.subr.mxu0 0.0
      %630 = vmatpush1.msra.mxu0 0.0
      %631 = vmatprep.subr.mxu0 0.0
      %632 = vmatpush1.msra.mxu0 0.0
      %633 = vmatprep.subr.mxu0 0.0
      %634 = vmatpush1.msra.mxu0 0.0
      %635 = vmatprep.subr.mxu0 0.0
      %636 = vmatpush1.msra.mxu0 0.0
      %637 = vmatprep.mubr.f32.mxu0 0.0
      %638 = vmatmul.mubr.f32.gmra.mrb[0].mxu0 %v571
      %v639 = vpop.f32.mrb[0].mxu0
      %v640 = vadd.f32 %v567, %v639
      %v641 = vpop.f32.mrb[0].mxu0
      %v642 = vadd.f32 %v567, %v641
      %643 = vdwg.mxu0
      %v644 = vld [vmem:[%s4] sm:$0xf]
      %v645 = vld [vmem:[%s5] sm:$0xf]
      %647 = vset.pattern.permute.xlu0 0
      %648 = vperm.xlu0 %647, %v645
      %v649 = vpop.permute.xlu0 %648
      %v652 = vsel %vm569, %v644, 0
      %654 = vmatprep.subr.mxu0 %v561
      %655 = vmatpush1.msra.mxu0 %v560
      %656 = vmatprep.subr.mxu0 0.0
      %657 = vmatpush1.msra.mxu0 0.0
      %658 = vmatprep.subr.mxu0 0.0
      %659 = vmatpush1.msra.mxu0 0.0
      %660 = vmatprep.subr.mxu0 0.0
      %661 = vmatpush1.msra.mxu0 0.0
      %662 = vmatprep.subr.mxu0 0.0
      %663 = vmatpush1.msra.mxu0 0.0
      %664 = vmatprep.subr.mxu0 0.0
      %665 = vmatpush1.msra.mxu0 0.0
      %666 = vmatprep.subr.mxu0 0.0
      %667 = vmatpush1.msra.mxu0 0.0
      %668 = vmatprep.subr.mxu0 0.0
      %669 = vmatpush1.msra.mxu0 0.0
      %670 = vmatprep.subr.mxu0 0.0
      %671 = vmatpush1.msra.mxu0 0.0
      %672 = vmatprep.subr.mxu0 0.0
      %673 = vmatpush1.msra.mxu0 0.0
      %674 = vmatprep.subr.mxu0 0.0
      %675 = vmatpush1.msra.mxu0 0.0
      %676 = vmatprep.subr.mxu0 0.0
      %677 = vmatpush1.msra.mxu0 0.0
      %678 = vmatprep.subr.mxu0 0.0
      %679 = vmatpush1.msra.mxu0 0.0
      %680 = vmatprep.subr.mxu0 0.0
      %681 = vmatpush1.msra.mxu0 0.0
      %682 = vmatprep.subr.mxu0 0.0
      %683 = vmatpush1.msra.mxu0 0.0
      %684 = vmatprep.subr.mxu0 0.0
      %685 = vmatpush1.msra.mxu0 0.0
      %686 = vmatprep.subr.mxu0 0.0
      %687 = vmatpush1.msra.mxu0 0.0
      %688 = vmatprep.subr.mxu0 0.0
      %689 = vmatpush1.msra.mxu0 0.0
      %690 = vmatprep.subr.mxu0 0.0
      %691 = vmatpush1.msra.mxu0 0.0
      %692 = vmatprep.subr.mxu0 0.0
      %693 = vmatpush1.msra.mxu0 0.0
      %694 = vmatprep.subr.mxu0 0.0
      %695 = vmatpush1.msra.mxu0 0.0
      %696 = vmatprep.subr.mxu0 0.0
      %697 = vmatpush1.msra.mxu0 0.0
      %698 = vmatprep.subr.mxu0 0.0
      %699 = vmatpush1.msra.mxu0 0.0
      %700 = vmatprep.subr.mxu0 0.0
      %701 = vmatpush1.msra.mxu0 0.0
      %702 = vmatprep.subr.mxu0 0.0
      %703 = vmatpush1.msra.mxu0 0.0
      %704 = vmatprep.subr.mxu0 0.0
      %705 = vmatpush1.msra.mxu0 0.0
      %706 = vmatprep.subr.mxu0 0.0
      %707 = vmatpush1.msra.mxu0 0.0
      %708 = vmatprep.subr.mxu0 0.0
      %709 = vmatpush1.msra.mxu0 0.0
      %710 = vmatprep.subr.mxu0 0.0
      %711 = vmatpush1.msra.mxu0 0.0
      %712 = vmatprep.subr.mxu0 0.0
      %713 = vmatpush1.msra.mxu0 0.0
      %714 = vmatprep.subr.mxu0 0.0
      %715 = vmatpush1.msra.mxu0 0.0
      %716 = vmatprep.subr.mxu0 0.0
      %717 = vmatpush1.msra.mxu0 0.0
      %718 = vmatprep.mubr.f32.mxu0 0.0
      %719 = vmatmul.mubr.f32.gmra.mrb[0].mxu0 %v652
      %v720 = vpop.f32.mrb[0].mxu0
      %v721 = vadd.f32 %v649, %v720
      %v722 = vpop.f32.mrb[0].mxu0
      %v723 = vadd.f32 %v649, %v722
      %724 = vdwg.mxu0
      %v725 = vld [vmem:[%s7] sm:$0xff]
      %v726 = vld [vmem:[%s7 + $0x8] sm:$0xff]
      %v727 = vld [vmem:[%s7 + $0x10] sm:$0xff]
      %v728 = vld [vmem:[%s7 + $0x18] sm:$0xff]
      %730 = vset.pattern.permute.xlu0 0
      %731 = vperm.xlu0 %730, %v725
      %v732 = vpop.permute.xlu0 %731
      %735 = vset.pattern.permute.xlu0 0
      %736 = vperm.xlu0 %735, %v726
      %v737 = vpop.permute.xlu0 %736
      %740 = vset.pattern.permute.xlu0 0
      %741 = vperm.xlu0 %740, %v727
      %v742 = vpop.permute.xlu0 %741
      %745 = vset.pattern.permute.xlu0 0
      %746 = vperm.xlu0 %745, %v728
      %v747 = vpop.permute.xlu0 %746
      %v749 = vadd.f32 %v732, 0.0
      %v750 = vadd.f32 %v737, 0.0
      %v751 = vadd.f32 %v742, 0.0
      %v752 = vadd.f32 %v747, 0.0
      %v753 = vld [vmem:[%s6] sm:$0xff]
      %v754 = vld [vmem:[%s6 + $0x8] sm:$0xff]
      %v755 = vld [vmem:[%s6 + $0x10] sm:$0xff]
      %v756 = vld [vmem:[%s6 + $0x18] sm:$0xff]
      %757 = vrot.lane.b32.xlu0 %v640, 17
      %v758 = vpop.permute.xlu0 %757
      %759 = vrot.lane.b32.xlu0 %v642, 17
      %v760 = vpop.permute.xlu0 %759
      %v761 = vlaneseq
      %v762 = vand.u32 %v761, 127
      %vm763 = vcmp.lt.s32.totalorder %v762, 17
      %v764 = vsel %vm763, %v758, %v760
      %v765 = vsel %vm763, %v760, %v758
      %v766 = vld [vmem:[%s1] sm:$0x3]
      %v768 = vlaneseq
      %v769 = vshrl.u32 %v768, 7
      %v770 = vsub.s32 0, %v769
      %v771 = vrot.slane %v766, %v770
      %v772 = vlaneseq
      %v773 = vshrl.u32 %v772, 7
      %v774 = vsub.s32 1, %v773
      %v775 = vrot.slane %v766, %v774
      %v778 = vmul.f32 %v765, %v771
      %v779 = vmul.f32 %v764, %v775
      %vm780 = vcmask 31744
      %v782 = vsel %vm780, %v753, 0
      %v785 = vsel %vm780, %v754, 0
      %v788 = vsel %vm780, %v755, 0
      %v791 = vsel %vm780, %v756, 0
      %vm793 = vcmask 1043456
      %v795 = vsel %vm793, %v778, 0
      %v798 = vsel %vm793, %v779, 0
      %800 = vmatprep.subr.mxu0 %v798
      %801 = vmatpush1.msra.mxu0 %v795
      %802 = vmatprep.subr.mxu0 0.0
      %803 = vmatpush1.msra.mxu0 0.0
      %804 = vmatprep.subr.mxu0 0.0
      %805 = vmatpush1.msra.mxu0 0.0
      %806 = vmatprep.subr.mxu0 0.0
      %807 = vmatpush1.msra.mxu0 0.0
      %808 = vmatprep.subr.mxu0 0.0
      %809 = vmatpush1.msra.mxu0 0.0
      %810 = vmatprep.subr.mxu0 0.0
      %811 = vmatpush1.msra.mxu0 0.0
      %812 = vmatprep.subr.mxu0 0.0
      %813 = vmatpush1.msra.mxu0 0.0
      %814 = vmatprep.subr.mxu0 0.0
      %815 = vmatpush1.msra.mxu0 0.0
      %816 = vmatprep.subr.mxu0 0.0
      %817 = vmatpush1.msra.mxu0 0.0
      %818 = vmatprep.subr.mxu0 0.0
      %819 = vmatpush1.msra.mxu0 0.0
      %820 = vmatprep.subr.mxu0 0.0
      %821 = vmatpush1.msra.mxu0 0.0
      %822 = vmatprep.subr.mxu0 0.0
      %823 = vmatpush1.msra.mxu0 0.0
      %824 = vmatprep.subr.mxu0 0.0
      %825 = vmatpush1.msra.mxu0 0.0
      %826 = vmatprep.subr.mxu0 0.0
      %827 = vmatpush1.msra.mxu0 0.0
      %828 = vmatprep.subr.mxu0 0.0
      %829 = vmatpush1.msra.mxu0 0.0
      %830 = vmatprep.subr.mxu0 0.0
      %831 = vmatpush1.msra.mxu0 0.0
      %832 = vmatprep.subr.mxu0 0.0
      %833 = vmatpush1.msra.mxu0 0.0
      %834 = vmatprep.subr.mxu0 0.0
      %835 = vmatpush1.msra.mxu0 0.0
      %836 = vmatprep.subr.mxu0 0.0
      %837 = vmatpush1.msra.mxu0 0.0
      %838 = vmatprep.subr.mxu0 0.0
      %839 = vmatpush1.msra.mxu0 0.0
      %840 = vmatprep.subr.mxu0 0.0
      %841 = vmatpush1.msra.mxu0 0.0
      %842 = vmatprep.subr.mxu0 0.0
      %843 = vmatpush1.msra.mxu0 0.0
      %844 = vmatprep.subr.mxu0 0.0
      %845 = vmatpush1.msra.mxu0 0.0
      %846 = vmatprep.subr.mxu0 0.0
      %847 = vmatpush1.msra.mxu0 0.0
      %848 = vmatprep.subr.mxu0 0.0
      %849 = vmatpush1.msra.mxu0 0.0
      %850 = vmatprep.subr.mxu0 0.0
      %851 = vmatpush1.msra.mxu0 0.0
      %852 = vmatprep.subr.mxu0 0.0
      %853 = vmatpush1.msra.mxu0 0.0
      %854 = vmatprep.subr.mxu0 0.0
      %855 = vmatpush1.msra.mxu0 0.0
      %856 = vmatprep.subr.mxu0 0.0
      %857 = vmatpush1.msra.mxu0 0.0
      %858 = vmatprep.subr.mxu0 0.0
      %859 = vmatpush1.msra.mxu0 0.0
      %860 = vmatprep.subr.mxu0 0.0
      %861 = vmatpush1.msra.mxu0 0.0
      %862 = vmatprep.subr.mxu0 0.0
      %863 = vmatpush1.msra.mxu0 0.0
      %864 = vmatprep.mubr.f32.mxu0 0.0
      %865 = vmatmul.mubr.f32.gmra.mrb[0].mxu0 %v782
      %v866 = vpop.f32.mrb[0].mxu0
      %v867 = vadd.f32 0.0, %v866
      %v868 = vpop.f32.mrb[0].mxu0
      %v869 = vadd.f32 0.0, %v868
      %870 = vmatprep.mubr.f32.mxu0 0.0
      %871 = vmatmul.mubr.f32.gmra.mrb[0].mxu0 %v785
      %v872 = vpop.f32.mrb[0].mxu0
      %v873 = vadd.f32 0.0, %v872
      %v874 = vpop.f32.mrb[0].mxu0
      %v875 = vadd.f32 0.0, %v874
      %876 = vmatprep.mubr.f32.mxu0 0.0
      %877 = vmatmul.mubr.f32.gmra.mrb[0].mxu0 %v788
      %v878 = vpop.f32.mrb[0].mxu0
      %v879 = vadd.f32 0.0, %v878
      %v880 = vpop.f32.mrb[0].mxu0
      %v881 = vadd.f32 0.0, %v880
      %882 = vmatprep.mubr.f32.mxu0 0.0
      %883 = vmatmul.mubr.f32.gmra.mrb[0].mxu0 %v791
      %v884 = vpop.f32.mrb[0].mxu0
      %v885 = vadd.f32 0.0, %v884
      %v886 = vpop.f32.mrb[0].mxu0
      %v887 = vadd.f32 0.0, %v886
      %888 = vdwg.mxu0
      %v889 = vadd.f32 %v749, %v867
      %v890 = vadd.f32 %v749, %v869
      %v891 = vadd.f32 %v750, %v873
      %v892 = vadd.f32 %v750, %v875
      %v893 = vadd.f32 %v751, %v879
      %v894 = vadd.f32 %v751, %v881
      %v895 = vadd.f32 %v752, %v885
      %v896 = vadd.f32 %v752, %v887
      %s897 = scalar_lea.vmem %s6, 32
      %v898 = vld [vmem:[%s897] sm:$0xff]
      %v899 = vld [vmem:[%s897 + $0x8] sm:$0xff]
      %v900 = vld [vmem:[%s897 + $0x10] sm:$0xff]
      %v901 = vld [vmem:[%s897 + $0x18] sm:$0xff]
      %902 = vrot.lane.b32.xlu0 %v640, 16
      %v903 = vpop.permute.xlu0 %902
      %904 = vrot.lane.b32.xlu0 %v642, 16
      %v905 = vpop.permute.xlu0 %904
      %vm906 = vcmp.lt.s32.totalorder %v762, 16
      %v907 = vsel %vm906, %v903, %v905
      %v908 = vsel %vm906, %v905, %v903
      %s909 = scalar_lea.vmem %s1, 2
      %v910 = vld [vmem:[%s909] sm:$0x3]
      %v912 = vlaneseq
      %v913 = vshrl.u32 %v912, 7
      %v914 = vsub.s32 0, %v913
      %v915 = vrot.slane %v910, %v914
      %v916 = vlaneseq
      %v917 = vshrl.u32 %v916, 7
      %v918 = vsub.s32 1, %v917
      %v919 = vrot.slane %v910, %v918
      %v922 = vmul.f32 %v908, %v915
      %v923 = vmul.f32 %v907, %v919
      %v925 = vsel %vm780, %v898, 0
      %v928 = vsel %vm780, %v899, 0
      %v931 = vsel %vm780, %v900, 0
      %v934 = vsel %vm780, %v901, 0
      %v937 = vsel %vm793, %v922, 0
      %v940 = vsel %vm793, %v923, 0
      %942 = vmatprep.subr.mxu0 %v940
      %943 = vmatpush1.msra.mxu0 %v937
      %944 = vmatprep.subr.mxu0 0.0
      %945 = vmatpush1.msra.mxu0 0.0
      %946 = vmatprep.subr.mxu0 0.0
      %947 = vmatpush1.msra.mxu0 0.0
      %948 = vmatprep.subr.mxu0 0.0
      %949 = vmatpush1.msra.mxu0 0.0
      %950 = vmatprep.subr.mxu0 0.0
      %951 = vmatpush1.msra.mxu0 0.0
      %952 = vmatprep.subr.mxu0 0.0
      %953 = vmatpush1.msra.mxu0 0.0
      %954 = vmatprep.subr.mxu0 0.0
      %955 = vmatpush1.msra.mxu0 0.0
      %956 = vmatprep.subr.mxu0 0.0
      %957 = vmatpush1.msra.mxu0 0.0
      %958 = vmatprep.subr.mxu0 0.0
      %959 = vmatpush1.msra.mxu0 0.0
      %960 = vmatprep.subr.mxu0 0.0
      %961 = vmatpush1.msra.mxu0 0.0
      %962 = vmatprep.subr.mxu0 0.0
      %963 = vmatpush1.msra.mxu0 0.0
      %964 = vmatprep.subr.mxu0 0.0
      %965 = vmatpush1.msra.mxu0 0.0
      %966 = vmatprep.subr.mxu0 0.0
      %967 = vmatpush1.msra.mxu0 0.0
      %968 = vmatprep.subr.mxu0 0.0
      %969 = vmatpush1.msra.mxu0 0.0
      %970 = vmatprep.subr.mxu0 0.0
      %971 = vmatpush1.msra.mxu0 0.0
      %972 = vmatprep.subr.mxu0 0.0
      %973 = vmatpush1.msra.mxu0 0.0
      %974 = vmatprep.subr.mxu0 0.0
      %975 = vmatpush1.msra.mxu0 0.0
      %976 = vmatprep.subr.mxu0 0.0
      %977 = vmatpush1.msra.mxu0 0.0
      %978 = vmatprep.subr.mxu0 0.0
      %979 = vmatpush1.msra.mxu0 0.0
      %980 = vmatprep.subr.mxu0 0.0
      %981 = vmatpush1.msra.mxu0 0.0
      %982 = vmatprep.subr.mxu0 0.0
      %983 = vmatpush1.msra.mxu0 0.0
      %984 = vmatprep.subr.mxu0 0.0
      %985 = vmatpush1.msra.mxu0 0.0
      %986 = vmatprep.subr.mxu0 0.0
      %987 = vmatpush1.msra.mxu0 0.0
      %988 = vmatprep.subr.mxu0 0.0
      %989 = vmatpush1.msra.mxu0 0.0
      %990 = vmatprep.subr.mxu0 0.0
      %991 = vmatpush1.msra.mxu0 0.0
      %992 = vmatprep.subr.mxu0 0.0
      %993 = vmatpush1.msra.mxu0 0.0
      %994 = vmatprep.subr.mxu0 0.0
      %995 = vmatpush1.msra.mxu0 0.0
      %996 = vmatprep.subr.mxu0 0.0
      %997 = vmatpush1.msra.mxu0 0.0
      %998 = vmatprep.subr.mxu0 0.0
      %999 = vmatpush1.msra.mxu0 0.0
      %1000 = vmatprep.subr.mxu0 0.0
      %1001 = vmatpush1.msra.mxu0 0.0
      %1002 = vmatprep.subr.mxu0 0.0
      %1003 = vmatpush1.msra.mxu0 0.0
      %1004 = vmatprep.subr.mxu0 0.0
      %1005 = vmatpush1.msra.mxu0 0.0
      %1006 = vmatprep.mubr.f32.mxu0 0.0
      %1007 = vmatmul.mubr.f32.gmra.mrb[0].mxu0 %v925
      %v1008 = vpop.f32.mrb[0].mxu0
      %v1009 = vadd.f32 0.0, %v1008
      %v1010 = vpop.f32.mrb[0].mxu0
      %v1011 = vadd.f32 0.0, %v1010
      %1012 = vmatprep.mubr.f32.mxu0 0.0
      %1013 = vmatmul.mubr.f32.gmra.mrb[0].mxu0 %v928
      %v1014 = vpop.f32.mrb[0].mxu0
      %v1015 = vadd.f32 0.0, %v1014
      %v1016 = vpop.f32.mrb[0].mxu0
      %v1017 = vadd.f32 0.0, %v1016
      %1018 = vmatprep.mubr.f32.mxu0 0.0
      %1019 = vmatmul.mubr.f32.gmra.mrb[0].mxu0 %v931
      %v1020 = vpop.f32.mrb[0].mxu0
      %v1021 = vadd.f32 0.0, %v1020
      %v1022 = vpop.f32.mrb[0].mxu0
      %v1023 = vadd.f32 0.0, %v1022
      %1024 = vmatprep.mubr.f32.mxu0 0.0
      %1025 = vmatmul.mubr.f32.gmra.mrb[0].mxu0 %v934
      %v1026 = vpop.f32.mrb[0].mxu0
      %v1027 = vadd.f32 0.0, %v1026
      %v1028 = vpop.f32.mrb[0].mxu0
      %v1029 = vadd.f32 0.0, %v1028
      %1030 = vdwg.mxu0
      %v1031 = vadd.f32 %v889, %v1009
      %v1032 = vadd.f32 %v890, %v1011
      %v1033 = vadd.f32 %v891, %v1015
      %v1034 = vadd.f32 %v892, %v1017
      %v1035 = vadd.f32 %v893, %v1021
      %v1036 = vadd.f32 %v894, %v1023
      %v1037 = vadd.f32 %v895, %v1027
      %v1038 = vadd.f32 %v896, %v1029
      %s1039 = scalar_lea.vmem %s6, 64
      %v1040 = vld [vmem:[%s1039] sm:$0xff]
      %v1041 = vld [vmem:[%s1039 + $0x8] sm:$0xff]
      %v1042 = vld [vmem:[%s1039 + $0x10] sm:$0xff]
      %v1043 = vld [vmem:[%s1039 + $0x18] sm:$0xff]
      %1044 = vrot.lane.b32.xlu0 %v640, 15
      %v1045 = vpop.permute.xlu0 %1044
      %1046 = vrot.lane.b32.xlu0 %v642, 15
      %v1047 = vpop.permute.xlu0 %1046
      %vm1048 = vcmp.lt.s32.totalorder %v762, 15
      %v1049 = vsel %vm1048, %v1045, %v1047
      %v1050 = vsel %vm1048, %v1047, %v1045
      %s1051 = scalar_lea.vmem %s1, 4
      %v1052 = vld [vmem:[%s1051] sm:$0x3]
      %v1054 = vlaneseq
      %v1055 = vshrl.u32 %v1054, 7
      %v1056 = vsub.s32 0, %v1055
      %v1057 = vrot.slane %v1052, %v1056
      %v1058 = vlaneseq
      %v1059 = vshrl.u32 %v1058, 7
      %v1060 = vsub.s32 1, %v1059
      %v1061 = vrot.slane %v1052, %v1060
      %v1064 = vmul.f32 %v1050, %v1057
      %v1065 = vmul.f32 %v1049, %v1061
      %v1067 = vsel %vm780, %v1040, 0
      %v1070 = vsel %vm780, %v1041, 0
      %v1073 = vsel %vm780, %v1042, 0
      %v1076 = vsel %vm780, %v1043, 0
      %v1079 = vsel %vm793, %v1064, 0
      %v1082 = vsel %vm793, %v1065, 0
      %1084 = vmatprep.subr.mxu0 %v1082
      %1085 = vmatpush1.msra.mxu0 %v1079
      %1086 = vmatprep.subr.mxu0 0.0
      %1087 = vmatpush1.msra.mxu0 0.0
      %1088 = vmatprep.subr.mxu0 0.0
      %1089 = vmatpush1.msra.mxu0 0.0
      %1090 = vmatprep.subr.mxu0 0.0
      %1091 = vmatpush1.msra.mxu0 0.0
      %1092 = vmatprep.subr.mxu0 0.0
      %1093 = vmatpush1.msra.mxu0 0.0
      %1094 = vmatprep.subr.mxu0 0.0
      %1095 = vmatpush1.msra.mxu0 0.0
      %1096 = vmatprep.subr.mxu0 0.0
      %1097 = vmatpush1.msra.mxu0 0.0
      %1098 = vmatprep.subr.mxu0 0.0
      %1099 = vmatpush1.msra.mxu0 0.0
      %1100 = vmatprep.subr.mxu0 0.0
      %1101 = vmatpush1.msra.mxu0 0.0
      %1102 = vmatprep.subr.mxu0 0.0
      %1103 = vmatpush1.msra.mxu0 0.0
      %1104 = vmatprep.subr.mxu0 0.0
      %1105 = vmatpush1.msra.mxu0 0.0
      %1106 = vmatprep.subr.mxu0 0.0
      %1107 = vmatpush1.msra.mxu0 0.0
      %1108 = vmatprep.subr.mxu0 0.0
      %1109 = vmatpush1.msra.mxu0 0.0
      %1110 = vmatprep.subr.mxu0 0.0
      %1111 = vmatpush1.msra.mxu0 0.0
      %1112 = vmatprep.subr.mxu0 0.0
      %1113 = vmatpush1.msra.mxu0 0.0
      %1114 = vmatprep.subr.mxu0 0.0
      %1115 = vmatpush1.msra.mxu0 0.0
      %1116 = vmatprep.subr.mxu0 0.0
      %1117 = vmatpush1.msra.mxu0 0.0
      %1118 = vmatprep.subr.mxu0 0.0
      %1119 = vmatpush1.msra.mxu0 0.0
      %1120 = vmatprep.subr.mxu0 0.0
      %1121 = vmatpush1.msra.mxu0 0.0
      %1122 = vmatprep.subr.mxu0 0.0
      %1123 = vmatpush1.msra.mxu0 0.0
      %1124 = vmatprep.subr.mxu0 0.0
      %1125 = vmatpush1.msra.mxu0 0.0
      %1126 = vmatprep.subr.mxu0 0.0
      %1127 = vmatpush1.msra.mxu0 0.0
      %1128 = vmatprep.subr.mxu0 0.0
      %1129 = vmatpush1.msra.mxu0 0.0
      %1130 = vmatprep.subr.mxu0 0.0
      %1131 = vmatpush1.msra.mxu0 0.0
      %1132 = vmatprep.subr.mxu0 0.0
      %1133 = vmatpush1.msra.mxu0 0.0
      %1134 = vmatprep.subr.mxu0 0.0
      %1135 = vmatpush1.msra.mxu0 0.0
      %1136 = vmatprep.subr.mxu0 0.0
      %1137 = vmatpush1.msra.mxu0 0.0
      %1138 = vmatprep.subr.mxu0 0.0
      %1139 = vmatpush1.msra.mxu0 0.0
      %1140 = vmatprep.subr.mxu0 0.0
      %1141 = vmatpush1.msra.mxu0 0.0
      %1142 = vmatprep.subr.mxu0 0.0
      %1143 = vmatpush1.msra.mxu0 0.0
      %1144 = vmatprep.subr.mxu0 0.0
      %1145 = vmatpush1.msra.mxu0 0.0
      %1146 = vmatprep.subr.mxu0 0.0
      %1147 = vmatpush1.msra.mxu0 0.0
      %1148 = vmatprep.mubr.f32.mxu0 0.0
      %1149 = vmatmul.mubr.f32.gmra.mrb[0].mxu0 %v1067
      %v1150 = vpop.f32.mrb[0].mxu0
      %v1151 = vadd.f32 0.0, %v1150
      %v1152 = vpop.f32.mrb[0].mxu0
      %v1153 = vadd.f32 0.0, %v1152
      %1154 = vmatprep.mubr.f32.mxu0 0.0
      %1155 = vmatmul.mubr.f32.gmra.mrb[0].mxu0 %v1070
      %v1156 = vpop.f32.mrb[0].mxu0
      %v1157 = vadd.f32 0.0, %v1156
      %v1158 = vpop.f32.mrb[0].mxu0
      %v1159 = vadd.f32 0.0, %v1158
      %1160 = vmatprep.mubr.f32.mxu0 0.0
      %1161 = vmatmul.mubr.f32.gmra.mrb[0].mxu0 %v1073
      %v1162 = vpop.f32.mrb[0].mxu0
      %v1163 = vadd.f32 0.0, %v1162
      %v1164 = vpop.f32.mrb[0].mxu0
      %v1165 = vadd.f32 0.0, %v1164
      %1166 = vmatprep.mubr.f32.mxu0 0.0
      %1167 = vmatmul.mubr.f32.gmra.mrb[0].mxu0 %v1076
      %v1168 = vpop.f32.mrb[0].mxu0
      %v1169 = vadd.f32 0.0, %v1168
      %v1170 = vpop.f32.mrb[0].mxu0
      %v1171 = vadd.f32 0.0, %v1170
      %1172 = vdwg.mxu0
      %v1173 = vadd.f32 %v1031, %v1151
      %v1174 = vadd.f32 %v1032, %v1153
      %v1175 = vadd.f32 %v1033, %v1157
      %v1176 = vadd.f32 %v1034, %v1159
      %v1177 = vadd.f32 %v1035, %v1163
      %v1178 = vadd.f32 %v1036, %v1165
      %v1179 = vadd.f32 %v1037, %v1169
      %v1180 = vadd.f32 %v1038, %v1171
      %s1181 = scalar_lea.vmem %s6, 96
      %v1182 = vld [vmem:[%s1181] sm:$0xff]
      %v1183 = vld [vmem:[%s1181 + $0x8] sm:$0xff]
      %v1184 = vld [vmem:[%s1181 + $0x10] sm:$0xff]
      %v1185 = vld [vmem:[%s1181 + $0x18] sm:$0xff]
      %1186 = vrot.lane.b32.xlu0 %v640, 1
      %v1187 = vpop.permute.xlu0 %1186
      %1188 = vrot.lane.b32.xlu0 %v642, 1
      %v1189 = vpop.permute.xlu0 %1188
      %vm1190 = vcmp.lt.s32.totalorder %v762, 1
      %v1191 = vsel %vm1190, %v1187, %v1189
      %v1192 = vsel %vm1190, %v1189, %v1187
      %s1193 = scalar_lea.vmem %s1, 6
      %v1194 = vld [vmem:[%s1193] sm:$0x3]
      %v1196 = vlaneseq
      %v1197 = vshrl.u32 %v1196, 7
      %v1198 = vsub.s32 0, %v1197
      %v1199 = vrot.slane %v1194, %v1198
      %v1200 = vlaneseq
      %v1201 = vshrl.u32 %v1200, 7
      %v1202 = vsub.s32 1, %v1201
      %v1203 = vrot.slane %v1194, %v1202
      %v1206 = vmul.f32 %v1192, %v1199
      %v1207 = vmul.f32 %v1191, %v1203
      %v1209 = vsel %vm780, %v1182, 0
      %v1212 = vsel %vm780, %v1183, 0
      %v1215 = vsel %vm780, %v1184, 0
      %v1218 = vsel %vm780, %v1185, 0
      %v1221 = vsel %vm793, %v1206, 0
      %v1224 = vsel %vm793, %v1207, 0
      %1226 = vmatprep.subr.mxu0 %v1224
      %1227 = vmatpush1.msra.mxu0 %v1221
      %1228 = vmatprep.subr.mxu0 0.0
      %1229 = vmatpush1.msra.mxu0 0.0
      %1230 = vmatprep.subr.mxu0 0.0
      %1231 = vmatpush1.msra.mxu0 0.0
      %1232 = vmatprep.subr.mxu0 0.0
      %1233 = vmatpush1.msra.mxu0 0.0
      %1234 = vmatprep.subr.mxu0 0.0
      %1235 = vmatpush1.msra.mxu0 0.0
      %1236 = vmatprep.subr.mxu0 0.0
      %1237 = vmatpush1.msra.mxu0 0.0
      %1238 = vmatprep.subr.mxu0 0.0
      %1239 = vmatpush1.msra.mxu0 0.0
      %1240 = vmatprep.subr.mxu0 0.0
      %1241 = vmatpush1.msra.mxu0 0.0
      %1242 = vmatprep.subr.mxu0 0.0
      %1243 = vmatpush1.msra.mxu0 0.0
      %1244 = vmatprep.subr.mxu0 0.0
      %1245 = vmatpush1.msra.mxu0 0.0
      %1246 = vmatprep.subr.mxu0 0.0
      %1247 = vmatpush1.msra.mxu0 0.0
      %1248 = vmatprep.subr.mxu0 0.0
      %1249 = vmatpush1.msra.mxu0 0.0
      %1250 = vmatprep.subr.mxu0 0.0
      %1251 = vmatpush1.msra.mxu0 0.0
      %1252 = vmatprep.subr.mxu0 0.0
      %1253 = vmatpush1.msra.mxu0 0.0
      %1254 = vmatprep.subr.mxu0 0.0
      %1255 = vmatpush1.msra.mxu0 0.0
      %1256 = vmatprep.subr.mxu0 0.0
      %1257 = vmatpush1.msra.mxu0 0.0
      %1258 = vmatprep.subr.mxu0 0.0
      %1259 = vmatpush1.msra.mxu0 0.0
      %1260 = vmatprep.subr.mxu0 0.0
      %1261 = vmatpush1.msra.mxu0 0.0
      %1262 = vmatprep.subr.mxu0 0.0
      %1263 = vmatpush1.msra.mxu0 0.0
      %1264 = vmatprep.subr.mxu0 0.0
      %1265 = vmatpush1.msra.mxu0 0.0
      %1266 = vmatprep.subr.mxu0 0.0
      %1267 = vmatpush1.msra.mxu0 0.0
      %1268 = vmatprep.subr.mxu0 0.0
      %1269 = vmatpush1.msra.mxu0 0.0
      %1270 = vmatprep.subr.mxu0 0.0
      %1271 = vmatpush1.msra.mxu0 0.0
      %1272 = vmatprep.subr.mxu0 0.0
      %1273 = vmatpush1.msra.mxu0 0.0
      %1274 = vmatprep.subr.mxu0 0.0
      %1275 = vmatpush1.msra.mxu0 0.0
      %1276 = vmatprep.subr.mxu0 0.0
      %1277 = vmatpush1.msra.mxu0 0.0
      %1278 = vmatprep.subr.mxu0 0.0
      %1279 = vmatpush1.msra.mxu0 0.0
      %1280 = vmatprep.subr.mxu0 0.0
      %1281 = vmatpush1.msra.mxu0 0.0
      %1282 = vmatprep.subr.mxu0 0.0
      %1283 = vmatpush1.msra.mxu0 0.0
      %1284 = vmatprep.subr.mxu0 0.0
      %1285 = vmatpush1.msra.mxu0 0.0
      %1286 = vmatprep.subr.mxu0 0.0
      %1287 = vmatpush1.msra.mxu0 0.0
      %1288 = vmatprep.subr.mxu0 0.0
      %1289 = vmatpush1.msra.mxu0 0.0
      %1290 = vmatprep.mubr.f32.mxu0 0.0
      %1291 = vmatmul.mubr.f32.gmra.mrb[0].mxu0 %v1209
      %v1292 = vpop.f32.mrb[0].mxu0
      %v1293 = vadd.f32 0.0, %v1292
      %v1294 = vpop.f32.mrb[0].mxu0
      %v1295 = vadd.f32 0.0, %v1294
      %1296 = vmatprep.mubr.f32.mxu0 0.0
      %1297 = vmatmul.mubr.f32.gmra.mrb[0].mxu0 %v1212
      %v1298 = vpop.f32.mrb[0].mxu0
      %v1299 = vadd.f32 0.0, %v1298
      %v1300 = vpop.f32.mrb[0].mxu0
      %v1301 = vadd.f32 0.0, %v1300
      %1302 = vmatprep.mubr.f32.mxu0 0.0
      %1303 = vmatmul.mubr.f32.gmra.mrb[0].mxu0 %v1215
      %v1304 = vpop.f32.mrb[0].mxu0
      %v1305 = vadd.f32 0.0, %v1304
      %v1306 = vpop.f32.mrb[0].mxu0
      %v1307 = vadd.f32 0.0, %v1306
      %1308 = vmatprep.mubr.f32.mxu0 0.0
      %1309 = vmatmul.mubr.f32.gmra.mrb[0].mxu0 %v1218
      %v1310 = vpop.f32.mrb[0].mxu0
      %v1311 = vadd.f32 0.0, %v1310
      %v1312 = vpop.f32.mrb[0].mxu0
      %v1313 = vadd.f32 0.0, %v1312
      %1314 = vdwg.mxu0
      %v1315 = vadd.f32 %v1173, %v1293
      %v1316 = vadd.f32 %v1174, %v1295
      %v1317 = vadd.f32 %v1175, %v1299
      %v1318 = vadd.f32 %v1176, %v1301
      %v1319 = vadd.f32 %v1177, %v1305
      %v1320 = vadd.f32 %v1178, %v1307
      %v1321 = vadd.f32 %v1179, %v1311
      %v1322 = vadd.f32 %v1180, %v1313
      %s1323 = scalar_lea.vmem %s6, 128
      %v1324 = vld [vmem:[%s1323] sm:$0xff]
      %v1325 = vld [vmem:[%s1323 + $0x8] sm:$0xff]
      %v1326 = vld [vmem:[%s1323 + $0x10] sm:$0xff]
      %v1327 = vld [vmem:[%s1323 + $0x18] sm:$0xff]
      %v1329 = vsel %vm780, %v1324, 0
      %v1332 = vsel %vm780, %v1325, 0
      %v1335 = vsel %vm780, %v1326, 0
      %v1338 = vsel %vm780, %v1327, 0
      %v1341 = vsel %vm793, %v640, 0
      %v1344 = vsel %vm793, %v642, 0
      %1346 = vmatprep.subr.mxu0 %v1344
      %1347 = vmatpush1.msra.mxu0 %v1341
      %1348 = vmatprep.subr.mxu0 0.0
      %1349 = vmatpush1.msra.mxu0 0.0
      %1350 = vmatprep.subr.mxu0 0.0
      %1351 = vmatpush1.msra.mxu0 0.0
      %1352 = vmatprep.subr.mxu0 0.0
      %1353 = vmatpush1.msra.mxu0 0.0
      %1354 = vmatprep.subr.mxu0 0.0
      %1355 = vmatpush1.msra.mxu0 0.0
      %1356 = vmatprep.subr.mxu0 0.0
      %1357 = vmatpush1.msra.mxu0 0.0
      %1358 = vmatprep.subr.mxu0 0.0
      %1359 = vmatpush1.msra.mxu0 0.0
      %1360 = vmatprep.subr.mxu0 0.0
      %1361 = vmatpush1.msra.mxu0 0.0
      %1362 = vmatprep.subr.mxu0 0.0
      %1363 = vmatpush1.msra.mxu0 0.0
      %1364 = vmatprep.subr.mxu0 0.0
      %1365 = vmatpush1.msra.mxu0 0.0
      %1366 = vmatprep.subr.mxu0 0.0
      %1367 = vmatpush1.msra.mxu0 0.0
      %1368 = vmatprep.subr.mxu0 0.0
      %1369 = vmatpush1.msra.mxu0 0.0
      %1370 = vmatprep.subr.mxu0 0.0
      %1371 = vmatpush1.msra.mxu0 0.0
      %1372 = vmatprep.subr.mxu0 0.0
      %1373 = vmatpush1.msra.mxu0 0.0
      %1374 = vmatprep.subr.mxu0 0.0
      %1375 = vmatpush1.msra.mxu0 0.0
      %1376 = vmatprep.subr.mxu0 0.0
      %1377 = vmatpush1.msra.mxu0 0.0
      %1378 = vmatprep.subr.mxu0 0.0
      %1379 = vmatpush1.msra.mxu0 0.0
      %1380 = vmatprep.subr.mxu0 0.0
      %1381 = vmatpush1.msra.mxu0 0.0
      %1382 = vmatprep.subr.mxu0 0.0
      %1383 = vmatpush1.msra.mxu0 0.0
      %1384 = vmatprep.subr.mxu0 0.0
      %1385 = vmatpush1.msra.mxu0 0.0
      %1386 = vmatprep.subr.mxu0 0.0
      %1387 = vmatpush1.msra.mxu0 0.0
      %1388 = vmatprep.subr.mxu0 0.0
      %1389 = vmatpush1.msra.mxu0 0.0
      %1390 = vmatprep.subr.mxu0 0.0
      %1391 = vmatpush1.msra.mxu0 0.0
      %1392 = vmatprep.subr.mxu0 0.0
      %1393 = vmatpush1.msra.mxu0 0.0
      %1394 = vmatprep.subr.mxu0 0.0
      %1395 = vmatpush1.msra.mxu0 0.0
      %1396 = vmatprep.subr.mxu0 0.0
      %1397 = vmatpush1.msra.mxu0 0.0
      %1398 = vmatprep.subr.mxu0 0.0
      %1399 = vmatpush1.msra.mxu0 0.0
      %1400 = vmatprep.subr.mxu0 0.0
      %1401 = vmatpush1.msra.mxu0 0.0
      %1402 = vmatprep.subr.mxu0 0.0
      %1403 = vmatpush1.msra.mxu0 0.0
      %1404 = vmatprep.subr.mxu0 0.0
      %1405 = vmatpush1.msra.mxu0 0.0
      %1406 = vmatprep.subr.mxu0 0.0
      %1407 = vmatpush1.msra.mxu0 0.0
      %1408 = vmatprep.subr.mxu0 0.0
      %1409 = vmatpush1.msra.mxu0 0.0
      %1410 = vmatprep.mubr.f32.mxu0 0.0
      %1411 = vmatmul.mubr.f32.gmra.mrb[0].mxu0 %v1329
      %v1412 = vpop.f32.mrb[0].mxu0
      %v1413 = vadd.f32 0.0, %v1412
      %v1414 = vpop.f32.mrb[0].mxu0
      %v1415 = vadd.f32 0.0, %v1414
      %1416 = vmatprep.mubr.f32.mxu0 0.0
      %1417 = vmatmul.mubr.f32.gmra.mrb[0].mxu0 %v1332
      %v1418 = vpop.f32.mrb[0].mxu0
      %v1419 = vadd.f32 0.0, %v1418
      %v1420 = vpop.f32.mrb[0].mxu0
      %v1421 = vadd.f32 0.0, %v1420
      %1422 = vmatprep.mubr.f32.mxu0 0.0
      %1423 = vmatmul.mubr.f32.gmra.mrb[0].mxu0 %v1335
      %v1424 = vpop.f32.mrb[0].mxu0
      %v1425 = vadd.f32 0.0, %v1424
      %v1426 = vpop.f32.mrb[0].mxu0
      %v1427 = vadd.f32 0.0, %v1426
      %1428 = vmatprep.mubr.f32.mxu0 0.0
      %1429 = vmatmul.mubr.f32.gmra.mrb[0].mxu0 %v1338
      %v1430 = vpop.f32.mrb[0].mxu0
      %v1431 = vadd.f32 0.0, %v1430
      %v1432 = vpop.f32.mrb[0].mxu0
      %v1433 = vadd.f32 0.0, %v1432
      %1434 = vdwg.mxu0
      %v1435 = vadd.f32 %v1315, %v1413
      %v1436 = vadd.f32 %v1316, %v1415
      %v1437 = vadd.f32 %v1317, %v1419
      %v1438 = vadd.f32 %v1318, %v1421
      %v1439 = vadd.f32 %v1319, %v1425
      %v1440 = vadd.f32 %v1320, %v1427
      %v1441 = vadd.f32 %v1321, %v1431
      %v1442 = vadd.f32 %v1322, %v1433
      %s1443 = scalar_lea.vmem %s6, 160
      %v1444 = vld [vmem:[%s1443] sm:$0xff]
      %v1445 = vld [vmem:[%s1443 + $0x8] sm:$0xff]
      %v1446 = vld [vmem:[%s1443 + $0x10] sm:$0xff]
      %v1447 = vld [vmem:[%s1443 + $0x18] sm:$0xff]
      %1448 = vrot.lane.b32.xlu0 %v640, 127
      %v1449 = vpop.permute.xlu0 %1448
      %1450 = vrot.lane.b32.xlu0 %v642, 127
      %v1451 = vpop.permute.xlu0 %1450
      %vm1452 = vcmp.lt.s32.totalorder %v762, 127
      %v1453 = vsel %vm1452, %v1449, %v1451
      %v1454 = vsel %vm1452, %v1451, %v1449
      %s1455 = scalar_lea.vmem %s1, 10
      %v1456 = vld [vmem:[%s1455] sm:$0x3]
      %v1458 = vlaneseq
      %v1459 = vshrl.u32 %v1458, 7
      %v1460 = vsub.s32 0, %v1459
      %v1461 = vrot.slane %v1456, %v1460
      %v1462 = vlaneseq
      %v1463 = vshrl.u32 %v1462, 7
      %v1464 = vsub.s32 1, %v1463
      %v1465 = vrot.slane %v1456, %v1464
      %v1468 = vmul.f32 %v1453, %v1461
      %v1469 = vmul.f32 %v1454, %v1465
      %v1471 = vsel %vm780, %v1444, 0
      %v1474 = vsel %vm780, %v1445, 0
      %v1477 = vsel %vm780, %v1446, 0
      %v1480 = vsel %vm780, %v1447, 0
      %v1483 = vsel %vm793, %v1468, 0
      %v1486 = vsel %vm793, %v1469, 0
      %1488 = vmatprep.subr.mxu0 %v1486
      %1489 = vmatpush1.msra.mxu0 %v1483
      %1490 = vmatprep.subr.mxu0 0.0
      %1491 = vmatpush1.msra.mxu0 0.0
      %1492 = vmatprep.subr.mxu0 0.0
      %1493 = vmatpush1.msra.mxu0 0.0
      %1494 = vmatprep.subr.mxu0 0.0
      %1495 = vmatpush1.msra.mxu0 0.0
      %1496 = vmatprep.subr.mxu0 0.0
      %1497 = vmatpush1.msra.mxu0 0.0
      %1498 = vmatprep.subr.mxu0 0.0
      %1499 = vmatpush1.msra.mxu0 0.0
      %1500 = vmatprep.subr.mxu0 0.0
      %1501 = vmatpush1.msra.mxu0 0.0
      %1502 = vmatprep.subr.mxu0 0.0
      %1503 = vmatpush1.msra.mxu0 0.0
      %1504 = vmatprep.subr.mxu0 0.0
      %1505 = vmatpush1.msra.mxu0 0.0
      %1506 = vmatprep.subr.mxu0 0.0
      %1507 = vmatpush1.msra.mxu0 0.0
      %1508 = vmatprep.subr.mxu0 0.0
      %1509 = vmatpush1.msra.mxu0 0.0
      %1510 = vmatprep.subr.mxu0 0.0
      %1511 = vmatpush1.msra.mxu0 0.0
      %1512 = vmatprep.subr.mxu0 0.0
      %1513 = vmatpush1.msra.mxu0 0.0
      %1514 = vmatprep.subr.mxu0 0.0
      %1515 = vmatpush1.msra.mxu0 0.0
      %1516 = vmatprep.subr.mxu0 0.0
      %1517 = vmatpush1.msra.mxu0 0.0
      %1518 = vmatprep.subr.mxu0 0.0
      %1519 = vmatpush1.msra.mxu0 0.0
      %1520 = vmatprep.subr.mxu0 0.0
      %1521 = vmatpush1.msra.mxu0 0.0
      %1522 = vmatprep.subr.mxu0 0.0
      %1523 = vmatpush1.msra.mxu0 0.0
      %1524 = vmatprep.subr.mxu0 0.0
      %1525 = vmatpush1.msra.mxu0 0.0
      %1526 = vmatprep.subr.mxu0 0.0
      %1527 = vmatpush1.msra.mxu0 0.0
      %1528 = vmatprep.subr.mxu0 0.0
      %1529 = vmatpush1.msra.mxu0 0.0
      %1530 = vmatprep.subr.mxu0 0.0
      %1531 = vmatpush1.msra.mxu0 0.0
      %1532 = vmatprep.subr.mxu0 0.0
      %1533 = vmatpush1.msra.mxu0 0.0
      %1534 = vmatprep.subr.mxu0 0.0
      %1535 = vmatpush1.msra.mxu0 0.0
      %1536 = vmatprep.subr.mxu0 0.0
      %1537 = vmatpush1.msra.mxu0 0.0
      %1538 = vmatprep.subr.mxu0 0.0
      %1539 = vmatpush1.msra.mxu0 0.0
      %1540 = vmatprep.subr.mxu0 0.0
      %1541 = vmatpush1.msra.mxu0 0.0
      %1542 = vmatprep.subr.mxu0 0.0
      %1543 = vmatpush1.msra.mxu0 0.0
      %1544 = vmatprep.subr.mxu0 0.0
      %1545 = vmatpush1.msra.mxu0 0.0
      %1546 = vmatprep.subr.mxu0 0.0
      %1547 = vmatpush1.msra.mxu0 0.0
      %1548 = vmatprep.subr.mxu0 0.0
      %1549 = vmatpush1.msra.mxu0 0.0
      %1550 = vmatprep.subr.mxu0 0.0
      %1551 = vmatpush1.msra.mxu0 0.0
      %1552 = vmatprep.mubr.f32.mxu0 0.0
      %1553 = vmatmul.mubr.f32.gmra.mrb[0].mxu0 %v1471
      %v1554 = vpop.f32.mrb[0].mxu0
      %v1555 = vadd.f32 0.0, %v1554
      %v1556 = vpop.f32.mrb[0].mxu0
      %v1557 = vadd.f32 0.0, %v1556
      %1558 = vmatprep.mubr.f32.mxu0 0.0
      %1559 = vmatmul.mubr.f32.gmra.mrb[0].mxu0 %v1474
      %v1560 = vpop.f32.mrb[0].mxu0
      %v1561 = vadd.f32 0.0, %v1560
      %v1562 = vpop.f32.mrb[0].mxu0
      %v1563 = vadd.f32 0.0, %v1562
      %1564 = vmatprep.mubr.f32.mxu0 0.0
      %1565 = vmatmul.mubr.f32.gmra.mrb[0].mxu0 %v1477
      %v1566 = vpop.f32.mrb[0].mxu0
      %v1567 = vadd.f32 0.0, %v1566
      %v1568 = vpop.f32.mrb[0].mxu0
      %v1569 = vadd.f32 0.0, %v1568
      %1570 = vmatprep.mubr.f32.mxu0 0.0
      %1571 = vmatmul.mubr.f32.gmra.mrb[0].mxu0 %v1480
      %v1572 = vpop.f32.mrb[0].mxu0
      %v1573 = vadd.f32 0.0, %v1572
      %v1574 = vpop.f32.mrb[0].mxu0
      %v1575 = vadd.f32 0.0, %v1574
      %1576 = vdwg.mxu0
      %v1577 = vadd.f32 %v1435, %v1555
      %v1578 = vadd.f32 %v1436, %v1557
      %v1579 = vadd.f32 %v1437, %v1561
      %v1580 = vadd.f32 %v1438, %v1563
      %v1581 = vadd.f32 %v1439, %v1567
      %v1582 = vadd.f32 %v1440, %v1569
      %v1583 = vadd.f32 %v1441, %v1573
      %v1584 = vadd.f32 %v1442, %v1575
      %s1585 = scalar_lea.vmem %s6, 192
      %v1586 = vld [vmem:[%s1585] sm:$0xff]
      %v1587 = vld [vmem:[%s1585 + $0x8] sm:$0xff]
      %v1588 = vld [vmem:[%s1585 + $0x10] sm:$0xff]
      %v1589 = vld [vmem:[%s1585 + $0x18] sm:$0xff]
      %1590 = vrot.lane.b32.xlu0 %v640, 113
      %v1591 = vpop.permute.xlu0 %1590
      %1592 = vrot.lane.b32.xlu0 %v642, 113
      %v1593 = vpop.permute.xlu0 %1592
      %vm1594 = vcmp.lt.s32.totalorder %v762, 113
      %v1595 = vsel %vm1594, %v1591, %v1593
      %v1596 = vsel %vm1594, %v1593, %v1591
      %s1597 = scalar_lea.vmem %s1, 12
      %v1598 = vld [vmem:[%s1597] sm:$0x3]
      %v1600 = vlaneseq
      %v1601 = vshrl.u32 %v1600, 7
      %v1602 = vsub.s32 0, %v1601
      %v1603 = vrot.slane %v1598, %v1602
      %v1604 = vlaneseq
      %v1605 = vshrl.u32 %v1604, 7
      %v1606 = vsub.s32 1, %v1605
      %v1607 = vrot.slane %v1598, %v1606
      %v1610 = vmul.f32 %v1595, %v1603
      %v1611 = vmul.f32 %v1596, %v1607
      %v1613 = vsel %vm780, %v1586, 0
      %v1616 = vsel %vm780, %v1587, 0
      %v1619 = vsel %vm780, %v1588, 0
      %v1622 = vsel %vm780, %v1589, 0
      %v1625 = vsel %vm793, %v1610, 0
      %v1628 = vsel %vm793, %v1611, 0
      %1630 = vmatprep.subr.mxu0 %v1628
      %1631 = vmatpush1.msra.mxu0 %v1625
      %1632 = vmatprep.subr.mxu0 0.0
      %1633 = vmatpush1.msra.mxu0 0.0
      %1634 = vmatprep.subr.mxu0 0.0
      %1635 = vmatpush1.msra.mxu0 0.0
      %1636 = vmatprep.subr.mxu0 0.0
      %1637 = vmatpush1.msra.mxu0 0.0
      %1638 = vmatprep.subr.mxu0 0.0
      %1639 = vmatpush1.msra.mxu0 0.0
      %1640 = vmatprep.subr.mxu0 0.0
      %1641 = vmatpush1.msra.mxu0 0.0
      %1642 = vmatprep.subr.mxu0 0.0
      %1643 = vmatpush1.msra.mxu0 0.0
      %1644 = vmatprep.subr.mxu0 0.0
      %1645 = vmatpush1.msra.mxu0 0.0
      %1646 = vmatprep.subr.mxu0 0.0
      %1647 = vmatpush1.msra.mxu0 0.0
      %1648 = vmatprep.subr.mxu0 0.0
      %1649 = vmatpush1.msra.mxu0 0.0
      %1650 = vmatprep.subr.mxu0 0.0
      %1651 = vmatpush1.msra.mxu0 0.0
      %1652 = vmatprep.subr.mxu0 0.0
      %1653 = vmatpush1.msra.mxu0 0.0
      %1654 = vmatprep.subr.mxu0 0.0
      %1655 = vmatpush1.msra.mxu0 0.0
      %1656 = vmatprep.subr.mxu0 0.0
      %1657 = vmatpush1.msra.mxu0 0.0
      %1658 = vmatprep.subr.mxu0 0.0
      %1659 = vmatpush1.msra.mxu0 0.0
      %1660 = vmatprep.subr.mxu0 0.0
      %1661 = vmatpush1.msra.mxu0 0.0
      %1662 = vmatprep.subr.mxu0 0.0
      %1663 = vmatpush1.msra.mxu0 0.0
      %1664 = vmatprep.subr.mxu0 0.0
      %1665 = vmatpush1.msra.mxu0 0.0
      %1666 = vmatprep.subr.mxu0 0.0
      %1667 = vmatpush1.msra.mxu0 0.0
      %1668 = vmatprep.subr.mxu0 0.0
      %1669 = vmatpush1.msra.mxu0 0.0
      %1670 = vmatprep.subr.mxu0 0.0
      %1671 = vmatpush1.msra.mxu0 0.0
      %1672 = vmatprep.subr.mxu0 0.0
      %1673 = vmatpush1.msra.mxu0 0.0
      %1674 = vmatprep.subr.mxu0 0.0
      %1675 = vmatpush1.msra.mxu0 0.0
      %1676 = vmatprep.subr.mxu0 0.0
      %1677 = vmatpush1.msra.mxu0 0.0
      %1678 = vmatprep.subr.mxu0 0.0
      %1679 = vmatpush1.msra.mxu0 0.0
      %1680 = vmatprep.subr.mxu0 0.0
      %1681 = vmatpush1.msra.mxu0 0.0
      %1682 = vmatprep.subr.mxu0 0.0
      %1683 = vmatpush1.msra.mxu0 0.0
      %1684 = vmatprep.subr.mxu0 0.0
      %1685 = vmatpush1.msra.mxu0 0.0
      %1686 = vmatprep.subr.mxu0 0.0
      %1687 = vmatpush1.msra.mxu0 0.0
      %1688 = vmatprep.subr.mxu0 0.0
      %1689 = vmatpush1.msra.mxu0 0.0
      %1690 = vmatprep.subr.mxu0 0.0
      %1691 = vmatpush1.msra.mxu0 0.0
      %1692 = vmatprep.subr.mxu0 0.0
      %1693 = vmatpush1.msra.mxu0 0.0
      %1694 = vmatprep.mubr.f32.mxu0 0.0
      %1695 = vmatmul.mubr.f32.gmra.mrb[0].mxu0 %v1613
      %v1696 = vpop.f32.mrb[0].mxu0
      %v1697 = vadd.f32 0.0, %v1696
      %v1698 = vpop.f32.mrb[0].mxu0
      %v1699 = vadd.f32 0.0, %v1698
      %1700 = vmatprep.mubr.f32.mxu0 0.0
      %1701 = vmatmul.mubr.f32.gmra.mrb[0].mxu0 %v1616
      %v1702 = vpop.f32.mrb[0].mxu0
      %v1703 = vadd.f32 0.0, %v1702
      %v1704 = vpop.f32.mrb[0].mxu0
      %v1705 = vadd.f32 0.0, %v1704
      %1706 = vmatprep.mubr.f32.mxu0 0.0
      %1707 = vmatmul.mubr.f32.gmra.mrb[0].mxu0 %v1619
      %v1708 = vpop.f32.mrb[0].mxu0
      %v1709 = vadd.f32 0.0, %v1708
      %v1710 = vpop.f32.mrb[0].mxu0
      %v1711 = vadd.f32 0.0, %v1710
      %1712 = vmatprep.mubr.f32.mxu0 0.0
      %1713 = vmatmul.mubr.f32.gmra.mrb[0].mxu0 %v1622
      %v1714 = vpop.f32.mrb[0].mxu0
      %v1715 = vadd.f32 0.0, %v1714
      %v1716 = vpop.f32.mrb[0].mxu0
      %v1717 = vadd.f32 0.0, %v1716
      %1718 = vdwg.mxu0
      %v1719 = vadd.f32 %v1577, %v1697
      %v1720 = vadd.f32 %v1578, %v1699
      %v1721 = vadd.f32 %v1579, %v1703
      %v1722 = vadd.f32 %v1580, %v1705
      %v1723 = vadd.f32 %v1581, %v1709
      %v1724 = vadd.f32 %v1582, %v1711
      %v1725 = vadd.f32 %v1583, %v1715
      %v1726 = vadd.f32 %v1584, %v1717
      %s1727 = scalar_lea.vmem %s6, 224
      %v1728 = vld [vmem:[%s1727] sm:$0xff]
      %v1729 = vld [vmem:[%s1727 + $0x8] sm:$0xff]
      %v1730 = vld [vmem:[%s1727 + $0x10] sm:$0xff]
      %v1731 = vld [vmem:[%s1727 + $0x18] sm:$0xff]
      %1732 = vrot.lane.b32.xlu0 %v640, 112
      %v1733 = vpop.permute.xlu0 %1732
      %1734 = vrot.lane.b32.xlu0 %v642, 112
      %v1735 = vpop.permute.xlu0 %1734
      %vm1736 = vcmp.lt.s32.totalorder %v762, 112
      %v1737 = vsel %vm1736, %v1733, %v1735
      %v1738 = vsel %vm1736, %v1735, %v1733
      %s1739 = scalar_lea.vmem %s1, 14
      %v1740 = vld [vmem:[%s1739] sm:$0x3]
      %v1742 = vlaneseq
      %v1743 = vshrl.u32 %v1742, 7
      %v1744 = vsub.s32 0, %v1743
      %v1745 = vrot.slane %v1740, %v1744
      %v1746 = vlaneseq
      %v1747 = vshrl.u32 %v1746, 7
      %v1748 = vsub.s32 1, %v1747
      %v1749 = vrot.slane %v1740, %v1748
      %v1752 = vmul.f32 %v1737, %v1745
      %v1753 = vmul.f32 %v1738, %v1749
      %v1755 = vsel %vm780, %v1728, 0
      %v1758 = vsel %vm780, %v1729, 0
      %v1761 = vsel %vm780, %v1730, 0
      %v1764 = vsel %vm780, %v1731, 0
      %v1767 = vsel %vm793, %v1752, 0
      %v1770 = vsel %vm793, %v1753, 0
      %1772 = vmatprep.subr.mxu0 %v1770
      %1773 = vmatpush1.msra.mxu0 %v1767
      %1774 = vmatprep.subr.mxu0 0.0
      %1775 = vmatpush1.msra.mxu0 0.0
      %1776 = vmatprep.subr.mxu0 0.0
      %1777 = vmatpush1.msra.mxu0 0.0
      %1778 = vmatprep.subr.mxu0 0.0
      %1779 = vmatpush1.msra.mxu0 0.0
      %1780 = vmatprep.subr.mxu0 0.0
      %1781 = vmatpush1.msra.mxu0 0.0
      %1782 = vmatprep.subr.mxu0 0.0
      %1783 = vmatpush1.msra.mxu0 0.0
      %1784 = vmatprep.subr.mxu0 0.0
      %1785 = vmatpush1.msra.mxu0 0.0
      %1786 = vmatprep.subr.mxu0 0.0
      %1787 = vmatpush1.msra.mxu0 0.0
      %1788 = vmatprep.subr.mxu0 0.0
      %1789 = vmatpush1.msra.mxu0 0.0
      %1790 = vmatprep.subr.mxu0 0.0
      %1791 = vmatpush1.msra.mxu0 0.0
      %1792 = vmatprep.subr.mxu0 0.0
      %1793 = vmatpush1.msra.mxu0 0.0
      %1794 = vmatprep.subr.mxu0 0.0
      %1795 = vmatpush1.msra.mxu0 0.0
      %1796 = vmatprep.subr.mxu0 0.0
      %1797 = vmatpush1.msra.mxu0 0.0
      %1798 = vmatprep.subr.mxu0 0.0
      %1799 = vmatpush1.msra.mxu0 0.0
      %1800 = vmatprep.subr.mxu0 0.0
      %1801 = vmatpush1.msra.mxu0 0.0
      %1802 = vmatprep.subr.mxu0 0.0
      %1803 = vmatpush1.msra.mxu0 0.0
      %1804 = vmatprep.subr.mxu0 0.0
      %1805 = vmatpush1.msra.mxu0 0.0
      %1806 = vmatprep.subr.mxu0 0.0
      %1807 = vmatpush1.msra.mxu0 0.0
      %1808 = vmatprep.subr.mxu0 0.0
      %1809 = vmatpush1.msra.mxu0 0.0
      %1810 = vmatprep.subr.mxu0 0.0
      %1811 = vmatpush1.msra.mxu0 0.0
      %1812 = vmatprep.subr.mxu0 0.0
      %1813 = vmatpush1.msra.mxu0 0.0
      %1814 = vmatprep.subr.mxu0 0.0
      %1815 = vmatpush1.msra.mxu0 0.0
      %1816 = vmatprep.subr.mxu0 0.0
      %1817 = vmatpush1.msra.mxu0 0.0
      %1818 = vmatprep.subr.mxu0 0.0
      %1819 = vmatpush1.msra.mxu0 0.0
      %1820 = vmatprep.subr.mxu0 0.0
      %1821 = vmatpush1.msra.mxu0 0.0
      %1822 = vmatprep.subr.mxu0 0.0
      %1823 = vmatpush1.msra.mxu0 0.0
      %1824 = vmatprep.subr.mxu0 0.0
      %1825 = vmatpush1.msra.mxu0 0.0
      %1826 = vmatprep.subr.mxu0 0.0
      %1827 = vmatpush1.msra.mxu0 0.0
      %1828 = vmatprep.subr.mxu0 0.0
      %1829 = vmatpush1.msra.mxu0 0.0
      %1830 = vmatprep.subr.mxu0 0.0
      %1831 = vmatpush1.msra.mxu0 0.0
      %1832 = vmatprep.subr.mxu0 0.0
      %1833 = vmatpush1.msra.mxu0 0.0
      %1834 = vmatprep.subr.mxu0 0.0
      %1835 = vmatpush1.msra.mxu0 0.0
      %1836 = vmatprep.mubr.f32.mxu0 0.0
      %1837 = vmatmul.mubr.f32.gmra.mrb[0].mxu0 %v1755
      %v1838 = vpop.f32.mrb[0].mxu0
      %v1839 = vadd.f32 0.0, %v1838
      %v1840 = vpop.f32.mrb[0].mxu0
      %v1841 = vadd.f32 0.0, %v1840
      %1842 = vmatprep.mubr.f32.mxu0 0.0
      %1843 = vmatmul.mubr.f32.gmra.mrb[0].mxu0 %v1758
      %v1844 = vpop.f32.mrb[0].mxu0
      %v1845 = vadd.f32 0.0, %v1844
      %v1846 = vpop.f32.mrb[0].mxu0
      %v1847 = vadd.f32 0.0, %v1846
      %1848 = vmatprep.mubr.f32.mxu0 0.0
      %1849 = vmatmul.mubr.f32.gmra.mrb[0].mxu0 %v1761
      %v1850 = vpop.f32.mrb[0].mxu0
      %v1851 = vadd.f32 0.0, %v1850
      %v1852 = vpop.f32.mrb[0].mxu0
      %v1853 = vadd.f32 0.0, %v1852
      %1854 = vmatprep.mubr.f32.mxu0 0.0
      %1855 = vmatmul.mubr.f32.gmra.mrb[0].mxu0 %v1764
      %v1856 = vpop.f32.mrb[0].mxu0
      %v1857 = vadd.f32 0.0, %v1856
      %v1858 = vpop.f32.mrb[0].mxu0
      %v1859 = vadd.f32 0.0, %v1858
      %1860 = vdwg.mxu0
      %v1861 = vadd.f32 %v1719, %v1839
      %v1862 = vadd.f32 %v1720, %v1841
      %v1863 = vadd.f32 %v1721, %v1845
      %v1864 = vadd.f32 %v1722, %v1847
      %v1865 = vadd.f32 %v1723, %v1851
      %v1866 = vadd.f32 %v1724, %v1853
      %v1867 = vadd.f32 %v1725, %v1857
      %v1868 = vadd.f32 %v1726, %v1859
      %s1869 = scalar_lea.vmem %s6, 256
      %v1870 = vld [vmem:[%s1869] sm:$0xff]
      %v1871 = vld [vmem:[%s1869 + $0x8] sm:$0xff]
      %v1872 = vld [vmem:[%s1869 + $0x10] sm:$0xff]
      %v1873 = vld [vmem:[%s1869 + $0x18] sm:$0xff]
      %1874 = vrot.lane.b32.xlu0 %v640, 111
      %v1875 = vpop.permute.xlu0 %1874
      %1876 = vrot.lane.b32.xlu0 %v642, 111
      %v1877 = vpop.permute.xlu0 %1876
      %vm1878 = vcmp.lt.s32.totalorder %v762, 111
      %v1879 = vsel %vm1878, %v1875, %v1877
      %v1880 = vsel %vm1878, %v1877, %v1875
      %s1881 = scalar_lea.vmem %s1, 16
      %v1882 = vld [vmem:[%s1881] sm:$0x3]
      %v1884 = vlaneseq
      %v1885 = vshrl.u32 %v1884, 7
      %v1886 = vsub.s32 0, %v1885
      %v1887 = vrot.slane %v1882, %v1886
      %v1888 = vlaneseq
      %v1889 = vshrl.u32 %v1888, 7
      %v1890 = vsub.s32 1, %v1889
      %v1891 = vrot.slane %v1882, %v1890
      %v1894 = vmul.f32 %v1879, %v1887
      %v1895 = vmul.f32 %v1880, %v1891
      %v1897 = vsel %vm780, %v1870, 0
      %v1900 = vsel %vm780, %v1871, 0
      %v1903 = vsel %vm780, %v1872, 0
      %v1906 = vsel %vm780, %v1873, 0
      %v1909 = vsel %vm793, %v1894, 0
      %v1912 = vsel %vm793, %v1895, 0
      %1914 = vmatprep.subr.mxu0 %v1912
      %1915 = vmatpush1.msra.mxu0 %v1909
      %1916 = vmatprep.subr.mxu0 0.0
      %1917 = vmatpush1.msra.mxu0 0.0
      %1918 = vmatprep.subr.mxu0 0.0
      %1919 = vmatpush1.msra.mxu0 0.0
      %1920 = vmatprep.subr.mxu0 0.0
      %1921 = vmatpush1.msra.mxu0 0.0
      %1922 = vmatprep.subr.mxu0 0.0
      %1923 = vmatpush1.msra.mxu0 0.0
      %1924 = vmatprep.subr.mxu0 0.0
      %1925 = vmatpush1.msra.mxu0 0.0
      %1926 = vmatprep.subr.mxu0 0.0
      %1927 = vmatpush1.msra.mxu0 0.0
      %1928 = vmatprep.subr.mxu0 0.0
      %1929 = vmatpush1.msra.mxu0 0.0
      %1930 = vmatprep.subr.mxu0 0.0
      %1931 = vmatpush1.msra.mxu0 0.0
      %1932 = vmatprep.subr.mxu0 0.0
      %1933 = vmatpush1.msra.mxu0 0.0
      %1934 = vmatprep.subr.mxu0 0.0
      %1935 = vmatpush1.msra.mxu0 0.0
      %1936 = vmatprep.subr.mxu0 0.0
      %1937 = vmatpush1.msra.mxu0 0.0
      %1938 = vmatprep.subr.mxu0 0.0
      %1939 = vmatpush1.msra.mxu0 0.0
      %1940 = vmatprep.subr.mxu0 0.0
      %1941 = vmatpush1.msra.mxu0 0.0
      %1942 = vmatprep.subr.mxu0 0.0
      %1943 = vmatpush1.msra.mxu0 0.0
      %1944 = vmatprep.subr.mxu0 0.0
      %1945 = vmatpush1.msra.mxu0 0.0
      %1946 = vmatprep.subr.mxu0 0.0
      %1947 = vmatpush1.msra.mxu0 0.0
      %1948 = vmatprep.subr.mxu0 0.0
      %1949 = vmatpush1.msra.mxu0 0.0
      %1950 = vmatprep.subr.mxu0 0.0
      %1951 = vmatpush1.msra.mxu0 0.0
      %1952 = vmatprep.subr.mxu0 0.0
      %1953 = vmatpush1.msra.mxu0 0.0
      %1954 = vmatprep.subr.mxu0 0.0
      %1955 = vmatpush1.msra.mxu0 0.0
      %1956 = vmatprep.subr.mxu0 0.0
      %1957 = vmatpush1.msra.mxu0 0.0
      %1958 = vmatprep.subr.mxu0 0.0
      %1959 = vmatpush1.msra.mxu0 0.0
      %1960 = vmatprep.subr.mxu0 0.0
      %1961 = vmatpush1.msra.mxu0 0.0
      %1962 = vmatprep.subr.mxu0 0.0
      %1963 = vmatpush1.msra.mxu0 0.0
      %1964 = vmatprep.subr.mxu0 0.0
      %1965 = vmatpush1.msra.mxu0 0.0
      %1966 = vmatprep.subr.mxu0 0.0
      %1967 = vmatpush1.msra.mxu0 0.0
      %1968 = vmatprep.subr.mxu0 0.0
      %1969 = vmatpush1.msra.mxu0 0.0
      %1970 = vmatprep.subr.mxu0 0.0
      %1971 = vmatpush1.msra.mxu0 0.0
      %1972 = vmatprep.subr.mxu0 0.0
      %1973 = vmatpush1.msra.mxu0 0.0
      %1974 = vmatprep.subr.mxu0 0.0
      %1975 = vmatpush1.msra.mxu0 0.0
      %1976 = vmatprep.subr.mxu0 0.0
      %1977 = vmatpush1.msra.mxu0 0.0
      %1978 = vmatprep.mubr.f32.mxu0 0.0
      %1979 = vmatmul.mubr.f32.gmra.mrb[0].mxu0 %v1897
      %v1980 = vpop.f32.mrb[0].mxu0
      %v1981 = vadd.f32 0.0, %v1980
      %v1982 = vpop.f32.mrb[0].mxu0
      %v1983 = vadd.f32 0.0, %v1982
      %1984 = vmatprep.mubr.f32.mxu0 0.0
      %1985 = vmatmul.mubr.f32.gmra.mrb[0].mxu0 %v1900
      %v1986 = vpop.f32.mrb[0].mxu0
      %v1987 = vadd.f32 0.0, %v1986
      %v1988 = vpop.f32.mrb[0].mxu0
      %v1989 = vadd.f32 0.0, %v1988
      %1990 = vmatprep.mubr.f32.mxu0 0.0
      %1991 = vmatmul.mubr.f32.gmra.mrb[0].mxu0 %v1903
      %v1992 = vpop.f32.mrb[0].mxu0
      %v1993 = vadd.f32 0.0, %v1992
      %v1994 = vpop.f32.mrb[0].mxu0
      %v1995 = vadd.f32 0.0, %v1994
      %1996 = vmatprep.mubr.f32.mxu0 0.0
      %1997 = vmatmul.mubr.f32.gmra.mrb[0].mxu0 %v1906
      %v1998 = vpop.f32.mrb[0].mxu0
      %v1999 = vadd.f32 0.0, %v1998
      %v2000 = vpop.f32.mrb[0].mxu0
      %v2001 = vadd.f32 0.0, %v2000
      %2002 = vdwg.mxu0
      %v2003 = vadd.f32 %v1861, %v1981
      %v2004 = vadd.f32 %v1862, %v1983
      %v2005 = vadd.f32 %v1863, %v1987
      %v2006 = vadd.f32 %v1864, %v1989
      %v2007 = vadd.f32 %v1865, %v1993
      %v2008 = vadd.f32 %v1866, %v1995
      %v2009 = vadd.f32 %v1867, %v1999
      %v2010 = vadd.f32 %v1868, %v2001
      %v2011 = vmax.f32 %v2003, 0.0
      %v2012 = vmax.f32 %v2004, 0.0
      %v2013 = vmax.f32 %v2005, 0.0
      %v2014 = vmax.f32 %v2006, 0.0
      %v2015 = vmax.f32 %v2007, 0.0
      %v2016 = vmax.f32 %v2008, 0.0
      %v2017 = vmax.f32 %v2009, 0.0
      %v2018 = vmax.f32 %v2010, 0.0
      %v2019 = vld [vmem:[%s8] sm:$0xff]
      %v2020 = vld [vmem:[%s8 + $0x8] sm:$0xff]
      %v2021 = vld [vmem:[%s8 + $0x10] sm:$0xff]
      %v2022 = vld [vmem:[%s8 + $0x18] sm:$0xff]
      %v2023 = vld [vmem:[%s9] sm:$0xff]
      %v2024 = vld [vmem:[%s9 + $0x8] sm:$0xff]
      %v2025 = vld [vmem:[%s9 + $0x10] sm:$0xff]
      %v2026 = vld [vmem:[%s9 + $0x18] sm:$0xff]
      %2028 = vset.pattern.permute.xlu0 0
      %2029 = vperm.xlu0 %2028, %v2023
      %v2030 = vpop.permute.xlu0 %2029
      %2033 = vset.pattern.permute.xlu0 0
      %2034 = vperm.xlu0 %2033, %v2024
      %v2035 = vpop.permute.xlu0 %2034
      %2038 = vset.pattern.permute.xlu0 0
      %2039 = vperm.xlu0 %2038, %v2025
      %v2040 = vpop.permute.xlu0 %2039
      %2043 = vset.pattern.permute.xlu0 0
      %2044 = vperm.xlu0 %2043, %v2026
      %v2045 = vpop.permute.xlu0 %2044
      %vm2047 = vcmask 261120
      %v2049 = vsel %vm2047, %v2019, 0
      %v2052 = vsel %vm2047, %v2020, 0
      %v2055 = vsel %vm2047, %v2021, 0
      %v2058 = vsel %vm2047, %v2022, 0
      %2060 = vmatprep.subr.mxu0 %v2012
      %2061 = vmatpush1.msra.mxu0 %v2011
      %2062 = vmatprep.subr.mxu0 %v2014
      %2063 = vmatpush1.msra.mxu0 %v2013
      %2064 = vmatprep.subr.mxu0 %v2016
      %2065 = vmatpush1.msra.mxu0 %v2015
      %2066 = vmatprep.subr.mxu0 %v2018
      %2067 = vmatpush1.msra.mxu0 %v2017
      %2068 = vmatprep.subr.mxu0 0.0
      %2069 = vmatpush1.msra.mxu0 0.0
      %2070 = vmatprep.subr.mxu0 0.0
      %2071 = vmatpush1.msra.mxu0 0.0
      %2072 = vmatprep.subr.mxu0 0.0
      %2073 = vmatpush1.msra.mxu0 0.0
      %2074 = vmatprep.subr.mxu0 0.0
      %2075 = vmatpush1.msra.mxu0 0.0
      %2076 = vmatprep.subr.mxu0 0.0
      %2077 = vmatpush1.msra.mxu0 0.0
      %2078 = vmatprep.subr.mxu0 0.0
      %2079 = vmatpush1.msra.mxu0 0.0
      %2080 = vmatprep.subr.mxu0 0.0
      %2081 = vmatpush1.msra.mxu0 0.0
      %2082 = vmatprep.subr.mxu0 0.0
      %2083 = vmatpush1.msra.mxu0 0.0
      %2084 = vmatprep.subr.mxu0 0.0
      %2085 = vmatpush1.msra.mxu0 0.0
      %2086 = vmatprep.subr.mxu0 0.0
      %2087 = vmatpush1.msra.mxu0 0.0
      %2088 = vmatprep.subr.mxu0 0.0
      %2089 = vmatpush1.msra.mxu0 0.0
      %2090 = vmatprep.subr.mxu0 0.0
      %2091 = vmatpush1.msra.mxu0 0.0
      %2092 = vmatprep.subr.mxu0 0.0
      %2093 = vmatpush1.msra.mxu0 0.0
      %2094 = vmatprep.subr.mxu0 0.0
      %2095 = vmatpush1.msra.mxu0 0.0
      %2096 = vmatprep.subr.mxu0 0.0
      %2097 = vmatpush1.msra.mxu0 0.0
      %2098 = vmatprep.subr.mxu0 0.0
      %2099 = vmatpush1.msra.mxu0 0.0
      %2100 = vmatprep.subr.mxu0 0.0
      %2101 = vmatpush1.msra.mxu0 0.0
      %2102 = vmatprep.subr.mxu0 0.0
      %2103 = vmatpush1.msra.mxu0 0.0
      %2104 = vmatprep.subr.mxu0 0.0
      %2105 = vmatpush1.msra.mxu0 0.0
      %2106 = vmatprep.subr.mxu0 0.0
      %2107 = vmatpush1.msra.mxu0 0.0
      %2108 = vmatprep.subr.mxu0 0.0
      %2109 = vmatpush1.msra.mxu0 0.0
      %2110 = vmatprep.subr.mxu0 0.0
      %2111 = vmatpush1.msra.mxu0 0.0
      %2112 = vmatprep.subr.mxu0 0.0
      %2113 = vmatpush1.msra.mxu0 0.0
      %2114 = vmatprep.subr.mxu0 0.0
      %2115 = vmatpush1.msra.mxu0 0.0
      %2116 = vmatprep.subr.mxu0 0.0
      %2117 = vmatpush1.msra.mxu0 0.0
      %2118 = vmatprep.subr.mxu0 0.0
      %2119 = vmatpush1.msra.mxu0 0.0
      %2120 = vmatprep.subr.mxu0 0.0
      %2121 = vmatpush1.msra.mxu0 0.0
      %2122 = vmatprep.subr.mxu0 0.0
      %2123 = vmatpush1.msra.mxu0 0.0
      %2124 = vmatprep.mubr.f32.mxu0 0.0
      %2125 = vmatmul.mubr.f32.gmra.mrb[0].mxu0 %v2049
      %v2126 = vpop.f32.mrb[0].mxu0
      %v2127 = vadd.f32 %v2030, %v2126
      %v2128 = vpop.f32.mrb[0].mxu0
      %v2129 = vadd.f32 %v2030, %v2128
      %2130 = vmatprep.mubr.f32.mxu0 0.0
      %2131 = vmatmul.mubr.f32.gmra.mrb[0].mxu0 %v2052
      %v2132 = vpop.f32.mrb[0].mxu0
      %v2133 = vadd.f32 %v2035, %v2132
      %v2134 = vpop.f32.mrb[0].mxu0
      %v2135 = vadd.f32 %v2035, %v2134
      %2136 = vmatprep.mubr.f32.mxu0 0.0
      %2137 = vmatmul.mubr.f32.gmra.mrb[0].mxu0 %v2055
      %v2138 = vpop.f32.mrb[0].mxu0
      %v2139 = vadd.f32 %v2040, %v2138
      %v2140 = vpop.f32.mrb[0].mxu0
      %v2141 = vadd.f32 %v2040, %v2140
      %2142 = vmatprep.mubr.f32.mxu0 0.0
      %2143 = vmatmul.mubr.f32.gmra.mrb[0].mxu0 %v2058
      %v2144 = vpop.f32.mrb[0].mxu0
      %v2145 = vadd.f32 %v2045, %v2144
      %v2146 = vpop.f32.mrb[0].mxu0
      %v2147 = vadd.f32 %v2045, %v2146
      %2148 = vdwg.mxu0
      %v2149 = vmax.f32 %v2127, 0.0
      %v2150 = vmax.f32 %v2129, 0.0
      %v2151 = vmax.f32 %v2133, 0.0
      %v2152 = vmax.f32 %v2135, 0.0
      %v2153 = vmax.f32 %v2139, 0.0
      %v2154 = vmax.f32 %v2141, 0.0
      %v2155 = vmax.f32 %v2145, 0.0
      %v2156 = vmax.f32 %v2147, 0.0
      %v2157 = vld [vmem:[%s11] sm:$0xf]
      %2159 = vset.pattern.permute.xlu0 0
      %2160 = vperm.xlu0 %2159, %v2157
      %v2161 = vpop.permute.xlu0 %2160
      %v2163 = vadd.f32 %v2161, 0.0
      %v2164 = vld [vmem:[%s13] sm:$0xf]
      %2166 = vset.pattern.permute.xlu0 0
      %2167 = vperm.xlu0 %2166, %v2164
      %v2168 = vpop.permute.xlu0 %2167
      %v2170 = vadd.f32 %v2168, 0.0
      %2171 = vrot.lane.b32.xlu0 %v2149, 17
      %v2172 = vpop.permute.xlu0 %2171
      %2173 = vrot.lane.b32.xlu0 %v2151, 17
      %v2174 = vpop.permute.xlu0 %2173
      %2175 = vrot.lane.b32.xlu0 %v2153, 17
      %v2176 = vpop.permute.xlu0 %2175
      %2177 = vrot.lane.b32.xlu0 %v2155, 17
      %v2178 = vpop.permute.xlu0 %2177
      %2179 = vrot.lane.b32.xlu0 %v2150, 17
      %v2180 = vpop.permute.xlu0 %2179
      %2181 = vrot.lane.b32.xlu0 %v2152, 17
      %v2182 = vpop.permute.xlu0 %2181
      %2183 = vrot.lane.b32.xlu0 %v2154, 17
      %v2184 = vpop.permute.xlu0 %2183
      %2185 = vrot.lane.b32.xlu0 %v2156, 17
      %v2186 = vpop.permute.xlu0 %2185
      %v2187 = vsel %vm763, %v2172, %v2180
      %v2188 = vsel %vm763, %v2174, %v2182
      %v2189 = vsel %vm763, %v2176, %v2184
      %v2190 = vsel %vm763, %v2178, %v2186
      %v2191 = vsel %vm763, %v2180, %v2172
      %v2192 = vsel %vm763, %v2182, %v2174
      %v2193 = vsel %vm763, %v2184, %v2176
      %v2194 = vsel %vm763, %v2186, %v2178
      %v2195 = vmul.f32 %v2191, %v771
      %v2196 = vmul.f32 %v2187, %v775
      %v2197 = vmul.f32 %v2192, %v771
      %v2198 = vmul.f32 %v2188, %v775
      %v2199 = vmul.f32 %v2193, %v771
      %v2200 = vmul.f32 %v2189, %v775
      %v2201 = vmul.f32 %v2194, %v771
      %v2202 = vmul.f32 %v2190, %v775
      %v2203 = vld [vmem:[%s10] sm:$0xf]
      %v2205 = vsel %vm2047, %v2203, 0
      %2207 = vmatprep.subr.mxu0 %v2196
      %2208 = vmatpush1.msra.mxu0 %v2195
      %2209 = vmatprep.subr.mxu0 %v2198
      %2210 = vmatpush1.msra.mxu0 %v2197
      %2211 = vmatprep.subr.mxu0 %v2200
      %2212 = vmatpush1.msra.mxu0 %v2199
      %2213 = vmatprep.subr.mxu0 %v2202
      %2214 = vmatpush1.msra.mxu0 %v2201
      %2215 = vmatprep.subr.mxu0 0.0
      %2216 = vmatpush1.msra.mxu0 0.0
      %2217 = vmatprep.subr.mxu0 0.0
      %2218 = vmatpush1.msra.mxu0 0.0
      %2219 = vmatprep.subr.mxu0 0.0
      %2220 = vmatpush1.msra.mxu0 0.0
      %2221 = vmatprep.subr.mxu0 0.0
      %2222 = vmatpush1.msra.mxu0 0.0
      %2223 = vmatprep.subr.mxu0 0.0
      %2224 = vmatpush1.msra.mxu0 0.0
      %2225 = vmatprep.subr.mxu0 0.0
      %2226 = vmatpush1.msra.mxu0 0.0
      %2227 = vmatprep.subr.mxu0 0.0
      %2228 = vmatpush1.msra.mxu0 0.0
      %2229 = vmatprep.subr.mxu0 0.0
      %2230 = vmatpush1.msra.mxu0 0.0
      %2231 = vmatprep.subr.mxu0 0.0
      %2232 = vmatpush1.msra.mxu0 0.0
      %2233 = vmatprep.subr.mxu0 0.0
      %2234 = vmatpush1.msra.mxu0 0.0
      %2235 = vmatprep.subr.mxu0 0.0
      %2236 = vmatpush1.msra.mxu0 0.0
      %2237 = vmatprep.subr.mxu0 0.0
      %2238 = vmatpush1.msra.mxu0 0.0
      %2239 = vmatprep.subr.mxu0 0.0
      %2240 = vmatpush1.msra.mxu0 0.0
      %2241 = vmatprep.subr.mxu0 0.0
      %2242 = vmatpush1.msra.mxu0 0.0
      %2243 = vmatprep.subr.mxu0 0.0
      %2244 = vmatpush1.msra.mxu0 0.0
      %2245 = vmatprep.subr.mxu0 0.0
      %2246 = vmatpush1.msra.mxu0 0.0
      %2247 = vmatprep.subr.mxu0 0.0
      %2248 = vmatpush1.msra.mxu0 0.0
      %2249 = vmatprep.subr.mxu0 0.0
      %2250 = vmatpush1.msra.mxu0 0.0
      %2251 = vmatprep.subr.mxu0 0.0
      %2252 = vmatpush1.msra.mxu0 0.0
      %2253 = vmatprep.subr.mxu0 0.0
      %2254 = vmatpush1.msra.mxu0 0.0
      %2255 = vmatprep.subr.mxu0 0.0
      %2256 = vmatpush1.msra.mxu0 0.0
      %2257 = vmatprep.subr.mxu0 0.0
      %2258 = vmatpush1.msra.mxu0 0.0
      %2259 = vmatprep.subr.mxu0 0.0
      %2260 = vmatpush1.msra.mxu0 0.0
      %2261 = vmatprep.subr.mxu0 0.0
      %2262 = vmatpush1.msra.mxu0 0.0
      %2263 = vmatprep.subr.mxu0 0.0
      %2264 = vmatpush1.msra.mxu0 0.0
      %2265 = vmatprep.subr.mxu0 0.0
      %2266 = vmatpush1.msra.mxu0 0.0
      %2267 = vmatprep.subr.mxu0 0.0
      %2268 = vmatpush1.msra.mxu0 0.0
      %2269 = vmatprep.subr.mxu0 0.0
      %2270 = vmatpush1.msra.mxu0 0.0
      %2271 = vmatprep.mubr.f32.mxu0 0.0
      %2272 = vmatmul.mubr.f32.gmra.mrb[0].mxu0 %v2205
      %v2273 = vpop.f32.mrb[0].mxu0
      %v2274 = vadd.f32 0.0, %v2273
      %v2275 = vpop.f32.mrb[0].mxu0
      %v2276 = vadd.f32 0.0, %v2275
      %2277 = vdwg.mxu0
      %v2278 = vadd.f32 %v2163, %v2274
      %v2279 = vadd.f32 %v2163, %v2276
      %v2280 = vld [vmem:[%s12] sm:$0xf]
      %v2282 = vsel %vm2047, %v2280, 0
      %2284 = vmatprep.subr.mxu0 %v2196
      %2285 = vmatpush1.msra.mxu0 %v2195
      %2286 = vmatprep.subr.mxu0 %v2198
      %2287 = vmatpush1.msra.mxu0 %v2197
      %2288 = vmatprep.subr.mxu0 %v2200
      %2289 = vmatpush1.msra.mxu0 %v2199
      %2290 = vmatprep.subr.mxu0 %v2202
      %2291 = vmatpush1.msra.mxu0 %v2201
      %2292 = vmatprep.subr.mxu0 0.0
      %2293 = vmatpush1.msra.mxu0 0.0
      %2294 = vmatprep.subr.mxu0 0.0
      %2295 = vmatpush1.msra.mxu0 0.0
      %2296 = vmatprep.subr.mxu0 0.0
      %2297 = vmatpush1.msra.mxu0 0.0
      %2298 = vmatprep.subr.mxu0 0.0
      %2299 = vmatpush1.msra.mxu0 0.0
      %2300 = vmatprep.subr.mxu0 0.0
      %2301 = vmatpush1.msra.mxu0 0.0
      %2302 = vmatprep.subr.mxu0 0.0
      %2303 = vmatpush1.msra.mxu0 0.0
      %2304 = vmatprep.subr.mxu0 0.0
      %2305 = vmatpush1.msra.mxu0 0.0
      %2306 = vmatprep.subr.mxu0 0.0
      %2307 = vmatpush1.msra.mxu0 0.0
      %2308 = vmatprep.subr.mxu0 0.0
      %2309 = vmatpush1.msra.mxu0 0.0
      %2310 = vmatprep.subr.mxu0 0.0
      %2311 = vmatpush1.msra.mxu0 0.0
      %2312 = vmatprep.subr.mxu0 0.0
      %2313 = vmatpush1.msra.mxu0 0.0
      %2314 = vmatprep.subr.mxu0 0.0
      %2315 = vmatpush1.msra.mxu0 0.0
      %2316 = vmatprep.subr.mxu0 0.0
      %2317 = vmatpush1.msra.mxu0 0.0
      %2318 = vmatprep.subr.mxu0 0.0
      %2319 = vmatpush1.msra.mxu0 0.0
      %2320 = vmatprep.subr.mxu0 0.0
      %2321 = vmatpush1.msra.mxu0 0.0
      %2322 = vmatprep.subr.mxu0 0.0
      %2323 = vmatpush1.msra.mxu0 0.0
      %2324 = vmatprep.subr.mxu0 0.0
      %2325 = vmatpush1.msra.mxu0 0.0
      %2326 = vmatprep.subr.mxu0 0.0
      %2327 = vmatpush1.msra.mxu0 0.0
      %2328 = vmatprep.subr.mxu0 0.0
      %2329 = vmatpush1.msra.mxu0 0.0
      %2330 = vmatprep.subr.mxu0 0.0
      %2331 = vmatpush1.msra.mxu0 0.0
      %2332 = vmatprep.subr.mxu0 0.0
      %2333 = vmatpush1.msra.mxu0 0.0
      %2334 = vmatprep.subr.mxu0 0.0
      %2335 = vmatpush1.msra.mxu0 0.0
      %2336 = vmatprep.subr.mxu0 0.0
      %2337 = vmatpush1.msra.mxu0 0.0
      %2338 = vmatprep.subr.mxu0 0.0
      %2339 = vmatpush1.msra.mxu0 0.0
      %2340 = vmatprep.subr.mxu0 0.0
      %2341 = vmatpush1.msra.mxu0 0.0
      %2342 = vmatprep.subr.mxu0 0.0
      %2343 = vmatpush1.msra.mxu0 0.0
      %2344 = vmatprep.subr.mxu0 0.0
      %2345 = vmatpush1.msra.mxu0 0.0
      %2346 = vmatprep.subr.mxu0 0.0
      %2347 = vmatpush1.msra.mxu0 0.0
      %2348 = vmatprep.mubr.f32.mxu0 0.0
      %2349 = vmatmul.mubr.f32.gmra.mrb[0].mxu0 %v2282
      %v2350 = vpop.f32.mrb[0].mxu0
      %v2351 = vadd.f32 0.0, %v2350
      %v2352 = vpop.f32.mrb[0].mxu0
      %v2353 = vadd.f32 0.0, %v2352
      %2354 = vdwg.mxu0
      %v2355 = vadd.f32 %v2170, %v2351
      %v2356 = vadd.f32 %v2170, %v2353
      %2357 = vrot.lane.b32.xlu0 %v2149, 16
      %v2358 = vpop.permute.xlu0 %2357
      %2359 = vrot.lane.b32.xlu0 %v2151, 16
      %v2360 = vpop.permute.xlu0 %2359
      %2361 = vrot.lane.b32.xlu0 %v2153, 16
      %v2362 = vpop.permute.xlu0 %2361
      %2363 = vrot.lane.b32.xlu0 %v2155, 16
      %v2364 = vpop.permute.xlu0 %2363
      %2365 = vrot.lane.b32.xlu0 %v2150, 16
      %v2366 = vpop.permute.xlu0 %2365
      %2367 = vrot.lane.b32.xlu0 %v2152, 16
      %v2368 = vpop.permute.xlu0 %2367
      %2369 = vrot.lane.b32.xlu0 %v2154, 16
      %v2370 = vpop.permute.xlu0 %2369
      %2371 = vrot.lane.b32.xlu0 %v2156, 16
      %v2372 = vpop.permute.xlu0 %2371
      %v2373 = vsel %vm906, %v2358, %v2366
      %v2374 = vsel %vm906, %v2360, %v2368
      %v2375 = vsel %vm906, %v2362, %v2370
      %v2376 = vsel %vm906, %v2364, %v2372
      %v2377 = vsel %vm906, %v2366, %v2358
      %v2378 = vsel %vm906, %v2368, %v2360
      %v2379 = vsel %vm906, %v2370, %v2362
      %v2380 = vsel %vm906, %v2372, %v2364
      %v2381 = vmul.f32 %v2377, %v915
      %v2382 = vmul.f32 %v2373, %v919
      %v2383 = vmul.f32 %v2378, %v915
      %v2384 = vmul.f32 %v2374, %v919
      %v2385 = vmul.f32 %v2379, %v915
      %v2386 = vmul.f32 %v2375, %v919
      %v2387 = vmul.f32 %v2380, %v915
      %v2388 = vmul.f32 %v2376, %v919
      %s2389 = scalar_lea.vmem %s10, 4
      %v2390 = vld [vmem:[%s2389] sm:$0xf]
      %v2392 = vsel %vm2047, %v2390, 0
      %2394 = vmatprep.subr.mxu0 %v2382
      %2395 = vmatpush1.msra.mxu0 %v2381
      %2396 = vmatprep.subr.mxu0 %v2384
      %2397 = vmatpush1.msra.mxu0 %v2383
      %2398 = vmatprep.subr.mxu0 %v2386
      %2399 = vmatpush1.msra.mxu0 %v2385
      %2400 = vmatprep.subr.mxu0 %v2388
      %2401 = vmatpush1.msra.mxu0 %v2387
      %2402 = vmatprep.subr.mxu0 0.0
      %2403 = vmatpush1.msra.mxu0 0.0
      %2404 = vmatprep.subr.mxu0 0.0
      %2405 = vmatpush1.msra.mxu0 0.0
      %2406 = vmatprep.subr.mxu0 0.0
      %2407 = vmatpush1.msra.mxu0 0.0
      %2408 = vmatprep.subr.mxu0 0.0
      %2409 = vmatpush1.msra.mxu0 0.0
      %2410 = vmatprep.subr.mxu0 0.0
      %2411 = vmatpush1.msra.mxu0 0.0
      %2412 = vmatprep.subr.mxu0 0.0
      %2413 = vmatpush1.msra.mxu0 0.0
      %2414 = vmatprep.subr.mxu0 0.0
      %2415 = vmatpush1.msra.mxu0 0.0
      %2416 = vmatprep.subr.mxu0 0.0
      %2417 = vmatpush1.msra.mxu0 0.0
      %2418 = vmatprep.subr.mxu0 0.0
      %2419 = vmatpush1.msra.mxu0 0.0
      %2420 = vmatprep.subr.mxu0 0.0
      %2421 = vmatpush1.msra.mxu0 0.0
      %2422 = vmatprep.subr.mxu0 0.0
      %2423 = vmatpush1.msra.mxu0 0.0
      %2424 = vmatprep.subr.mxu0 0.0
      %2425 = vmatpush1.msra.mxu0 0.0
      %2426 = vmatprep.subr.mxu0 0.0
      %2427 = vmatpush1.msra.mxu0 0.0
      %2428 = vmatprep.subr.mxu0 0.0
      %2429 = vmatpush1.msra.mxu0 0.0
      %2430 = vmatprep.subr.mxu0 0.0
      %2431 = vmatpush1.msra.mxu0 0.0
      %2432 = vmatprep.subr.mxu0 0.0
      %2433 = vmatpush1.msra.mxu0 0.0
      %2434 = vmatprep.subr.mxu0 0.0
      %2435 = vmatpush1.msra.mxu0 0.0
      %2436 = vmatprep.subr.mxu0 0.0
      %2437 = vmatpush1.msra.mxu0 0.0
      %2438 = vmatprep.subr.mxu0 0.0
      %2439 = vmatpush1.msra.mxu0 0.0
      %2440 = vmatprep.subr.mxu0 0.0
      %2441 = vmatpush1.msra.mxu0 0.0
      %2442 = vmatprep.subr.mxu0 0.0
      %2443 = vmatpush1.msra.mxu0 0.0
      %2444 = vmatprep.subr.mxu0 0.0
      %2445 = vmatpush1.msra.mxu0 0.0
      %2446 = vmatprep.subr.mxu0 0.0
      %2447 = vmatpush1.msra.mxu0 0.0
      %2448 = vmatprep.subr.mxu0 0.0
      %2449 = vmatpush1.msra.mxu0 0.0
      %2450 = vmatprep.subr.mxu0 0.0
      %2451 = vmatpush1.msra.mxu0 0.0
      %2452 = vmatprep.subr.mxu0 0.0
      %2453 = vmatpush1.msra.mxu0 0.0
      %2454 = vmatprep.subr.mxu0 0.0
      %2455 = vmatpush1.msra.mxu0 0.0
      %2456 = vmatprep.subr.mxu0 0.0
      %2457 = vmatpush1.msra.mxu0 0.0
      %2458 = vmatprep.mubr.f32.mxu0 0.0
      %2459 = vmatmul.mubr.f32.gmra.mrb[0].mxu0 %v2392
      %v2460 = vpop.f32.mrb[0].mxu0
      %v2461 = vadd.f32 0.0, %v2460
      %v2462 = vpop.f32.mrb[0].mxu0
      %v2463 = vadd.f32 0.0, %v2462
      %2464 = vdwg.mxu0
      %v2465 = vadd.f32 %v2278, %v2461
      %v2466 = vadd.f32 %v2279, %v2463
      %s2467 = scalar_lea.vmem %s12, 4
      %v2468 = vld [vmem:[%s2467] sm:$0xf]
      %v2470 = vsel %vm2047, %v2468, 0
      %2472 = vmatprep.subr.mxu0 %v2382
      %2473 = vmatpush1.msra.mxu0 %v2381
      %2474 = vmatprep.subr.mxu0 %v2384
      %2475 = vmatpush1.msra.mxu0 %v2383
      %2476 = vmatprep.subr.mxu0 %v2386
      %2477 = vmatpush1.msra.mxu0 %v2385
      %2478 = vmatprep.subr.mxu0 %v2388
      %2479 = vmatpush1.msra.mxu0 %v2387
      %2480 = vmatprep.subr.mxu0 0.0
      %2481 = vmatpush1.msra.mxu0 0.0
      %2482 = vmatprep.subr.mxu0 0.0
      %2483 = vmatpush1.msra.mxu0 0.0
      %2484 = vmatprep.subr.mxu0 0.0
      %2485 = vmatpush1.msra.mxu0 0.0
      %2486 = vmatprep.subr.mxu0 0.0
      %2487 = vmatpush1.msra.mxu0 0.0
      %2488 = vmatprep.subr.mxu0 0.0
      %2489 = vmatpush1.msra.mxu0 0.0
      %2490 = vmatprep.subr.mxu0 0.0
      %2491 = vmatpush1.msra.mxu0 0.0
      %2492 = vmatprep.subr.mxu0 0.0
      %2493 = vmatpush1.msra.mxu0 0.0
      %2494 = vmatprep.subr.mxu0 0.0
      %2495 = vmatpush1.msra.mxu0 0.0
      %2496 = vmatprep.subr.mxu0 0.0
      %2497 = vmatpush1.msra.mxu0 0.0
      %2498 = vmatprep.subr.mxu0 0.0
      %2499 = vmatpush1.msra.mxu0 0.0
      %2500 = vmatprep.subr.mxu0 0.0
      %2501 = vmatpush1.msra.mxu0 0.0
      %2502 = vmatprep.subr.mxu0 0.0
      %2503 = vmatpush1.msra.mxu0 0.0
      %2504 = vmatprep.subr.mxu0 0.0
      %2505 = vmatpush1.msra.mxu0 0.0
      %2506 = vmatprep.subr.mxu0 0.0
      %2507 = vmatpush1.msra.mxu0 0.0
      %2508 = vmatprep.subr.mxu0 0.0
      %2509 = vmatpush1.msra.mxu0 0.0
      %2510 = vmatprep.subr.mxu0 0.0
      %2511 = vmatpush1.msra.mxu0 0.0
      %2512 = vmatprep.subr.mxu0 0.0
      %2513 = vmatpush1.msra.mxu0 0.0
      %2514 = vmatprep.subr.mxu0 0.0
      %2515 = vmatpush1.msra.mxu0 0.0
      %2516 = vmatprep.subr.mxu0 0.0
      %2517 = vmatpush1.msra.mxu0 0.0
      %2518 = vmatprep.subr.mxu0 0.0
      %2519 = vmatpush1.msra.mxu0 0.0
      %2520 = vmatprep.subr.mxu0 0.0
      %2521 = vmatpush1.msra.mxu0 0.0
      %2522 = vmatprep.subr.mxu0 0.0
      %2523 = vmatpush1.msra.mxu0 0.0
      %2524 = vmatprep.subr.mxu0 0.0
      %2525 = vmatpush1.msra.mxu0 0.0
      %2526 = vmatprep.subr.mxu0 0.0
      %2527 = vmatpush1.msra.mxu0 0.0
      %2528 = vmatprep.subr.mxu0 0.0
      %2529 = vmatpush1.msra.mxu0 0.0
      %2530 = vmatprep.subr.mxu0 0.0
      %2531 = vmatpush1.msra.mxu0 0.0
      %2532 = vmatprep.subr.mxu0 0.0
      %2533 = vmatpush1.msra.mxu0 0.0
      %2534 = vmatprep.subr.mxu0 0.0
      %2535 = vmatpush1.msra.mxu0 0.0
      %2536 = vmatprep.mubr.f32.mxu0 0.0
      %2537 = vmatmul.mubr.f32.gmra.mrb[0].mxu0 %v2470
      %v2538 = vpop.f32.mrb[0].mxu0
      %v2539 = vadd.f32 0.0, %v2538
      %v2540 = vpop.f32.mrb[0].mxu0
      %v2541 = vadd.f32 0.0, %v2540
      %2542 = vdwg.mxu0
      %v2543 = vadd.f32 %v2355, %v2539
      %v2544 = vadd.f32 %v2356, %v2541
      %2545 = vrot.lane.b32.xlu0 %v2149, 15
      %v2546 = vpop.permute.xlu0 %2545
      %2547 = vrot.lane.b32.xlu0 %v2151, 15
      %v2548 = vpop.permute.xlu0 %2547
      %2549 = vrot.lane.b32.xlu0 %v2153, 15
      %v2550 = vpop.permute.xlu0 %2549
      %2551 = vrot.lane.b32.xlu0 %v2155, 15
      %v2552 = vpop.permute.xlu0 %2551
      %2553 = vrot.lane.b32.xlu0 %v2150, 15
      %v2554 = vpop.permute.xlu0 %2553
      %2555 = vrot.lane.b32.xlu0 %v2152, 15
      %v2556 = vpop.permute.xlu0 %2555
      %2557 = vrot.lane.b32.xlu0 %v2154, 15
      %v2558 = vpop.permute.xlu0 %2557
      %2559 = vrot.lane.b32.xlu0 %v2156, 15
      %v2560 = vpop.permute.xlu0 %2559
      %v2561 = vsel %vm1048, %v2546, %v2554
      %v2562 = vsel %vm1048, %v2548, %v2556
      %v2563 = vsel %vm1048, %v2550, %v2558
      %v2564 = vsel %vm1048, %v2552, %v2560
      %v2565 = vsel %vm1048, %v2554, %v2546
      %v2566 = vsel %vm1048, %v2556, %v2548
      %v2567 = vsel %vm1048, %v2558, %v2550
      %v2568 = vsel %vm1048, %v2560, %v2552
      %v2569 = vmul.f32 %v2565, %v1057
      %v2570 = vmul.f32 %v2561, %v1061
      %v2571 = vmul.f32 %v2566, %v1057
      %v2572 = vmul.f32 %v2562, %v1061
      %v2573 = vmul.f32 %v2567, %v1057
      %v2574 = vmul.f32 %v2563, %v1061
      %v2575 = vmul.f32 %v2568, %v1057
      %v2576 = vmul.f32 %v2564, %v1061
      %s2577 = scalar_lea.vmem %s10, 8
      %v2578 = vld [vmem:[%s2577] sm:$0xf]
      %v2580 = vsel %vm2047, %v2578, 0
      %2582 = vmatprep.subr.mxu0 %v2570
      %2583 = vmatpush1.msra.mxu0 %v2569
      %2584 = vmatprep.subr.mxu0 %v2572
      %2585 = vmatpush1.msra.mxu0 %v2571
      %2586 = vmatprep.subr.mxu0 %v2574
      %2587 = vmatpush1.msra.mxu0 %v2573
      %2588 = vmatprep.subr.mxu0 %v2576
      %2589 = vmatpush1.msra.mxu0 %v2575
      %2590 = vmatprep.subr.mxu0 0.0
      %2591 = vmatpush1.msra.mxu0 0.0
      %2592 = vmatprep.subr.mxu0 0.0
      %2593 = vmatpush1.msra.mxu0 0.0
      %2594 = vmatprep.subr.mxu0 0.0
      %2595 = vmatpush1.msra.mxu0 0.0
      %2596 = vmatprep.subr.mxu0 0.0
      %2597 = vmatpush1.msra.mxu0 0.0
      %2598 = vmatprep.subr.mxu0 0.0
      %2599 = vmatpush1.msra.mxu0 0.0
      %2600 = vmatprep.subr.mxu0 0.0
      %2601 = vmatpush1.msra.mxu0 0.0
      %2602 = vmatprep.subr.mxu0 0.0
      %2603 = vmatpush1.msra.mxu0 0.0
      %2604 = vmatprep.subr.mxu0 0.0
      %2605 = vmatpush1.msra.mxu0 0.0
      %2606 = vmatprep.subr.mxu0 0.0
      %2607 = vmatpush1.msra.mxu0 0.0
      %2608 = vmatprep.subr.mxu0 0.0
      %2609 = vmatpush1.msra.mxu0 0.0
      %2610 = vmatprep.subr.mxu0 0.0
      %2611 = vmatpush1.msra.mxu0 0.0
      %2612 = vmatprep.subr.mxu0 0.0
      %2613 = vmatpush1.msra.mxu0 0.0
      %2614 = vmatprep.subr.mxu0 0.0
      %2615 = vmatpush1.msra.mxu0 0.0
      %2616 = vmatprep.subr.mxu0 0.0
      %2617 = vmatpush1.msra.mxu0 0.0
      %2618 = vmatprep.subr.mxu0 0.0
      %2619 = vmatpush1.msra.mxu0 0.0
      %2620 = vmatprep.subr.mxu0 0.0
      %2621 = vmatpush1.msra.mxu0 0.0
      %2622 = vmatprep.subr.mxu0 0.0
      %2623 = vmatpush1.msra.mxu0 0.0
      %2624 = vmatprep.subr.mxu0 0.0
      %2625 = vmatpush1.msra.mxu0 0.0
      %2626 = vmatprep.subr.mxu0 0.0
      %2627 = vmatpush1.msra.mxu0 0.0
      %2628 = vmatprep.subr.mxu0 0.0
      %2629 = vmatpush1.msra.mxu0 0.0
      %2630 = vmatprep.subr.mxu0 0.0
      %2631 = vmatpush1.msra.mxu0 0.0
      %2632 = vmatprep.subr.mxu0 0.0
      %2633 = vmatpush1.msra.mxu0 0.0
      %2634 = vmatprep.subr.mxu0 0.0
      %2635 = vmatpush1.msra.mxu0 0.0
      %2636 = vmatprep.subr.mxu0 0.0
      %2637 = vmatpush1.msra.mxu0 0.0
      %2638 = vmatprep.subr.mxu0 0.0
      %2639 = vmatpush1.msra.mxu0 0.0
      %2640 = vmatprep.subr.mxu0 0.0
      %2641 = vmatpush1.msra.mxu0 0.0
      %2642 = vmatprep.subr.mxu0 0.0
      %2643 = vmatpush1.msra.mxu0 0.0
      %2644 = vmatprep.subr.mxu0 0.0
      %2645 = vmatpush1.msra.mxu0 0.0
      %2646 = vmatprep.mubr.f32.mxu0 0.0
      %2647 = vmatmul.mubr.f32.gmra.mrb[0].mxu0 %v2580
      %v2648 = vpop.f32.mrb[0].mxu0
      %v2649 = vadd.f32 0.0, %v2648
      %v2650 = vpop.f32.mrb[0].mxu0
      %v2651 = vadd.f32 0.0, %v2650
      %2652 = vdwg.mxu0
      %v2653 = vadd.f32 %v2465, %v2649
      %v2654 = vadd.f32 %v2466, %v2651
      %s2655 = scalar_lea.vmem %s12, 8
      %v2656 = vld [vmem:[%s2655] sm:$0xf]
      %v2658 = vsel %vm2047, %v2656, 0
      %2660 = vmatprep.subr.mxu0 %v2570
      %2661 = vmatpush1.msra.mxu0 %v2569
      %2662 = vmatprep.subr.mxu0 %v2572
      %2663 = vmatpush1.msra.mxu0 %v2571
      %2664 = vmatprep.subr.mxu0 %v2574
      %2665 = vmatpush1.msra.mxu0 %v2573
      %2666 = vmatprep.subr.mxu0 %v2576
      %2667 = vmatpush1.msra.mxu0 %v2575
      %2668 = vmatprep.subr.mxu0 0.0
      %2669 = vmatpush1.msra.mxu0 0.0
      %2670 = vmatprep.subr.mxu0 0.0
      %2671 = vmatpush1.msra.mxu0 0.0
      %2672 = vmatprep.subr.mxu0 0.0
      %2673 = vmatpush1.msra.mxu0 0.0
      %2674 = vmatprep.subr.mxu0 0.0
      %2675 = vmatpush1.msra.mxu0 0.0
      %2676 = vmatprep.subr.mxu0 0.0
      %2677 = vmatpush1.msra.mxu0 0.0
      %2678 = vmatprep.subr.mxu0 0.0
      %2679 = vmatpush1.msra.mxu0 0.0
      %2680 = vmatprep.subr.mxu0 0.0
      %2681 = vmatpush1.msra.mxu0 0.0
      %2682 = vmatprep.subr.mxu0 0.0
      %2683 = vmatpush1.msra.mxu0 0.0
      %2684 = vmatprep.subr.mxu0 0.0
      %2685 = vmatpush1.msra.mxu0 0.0
      %2686 = vmatprep.subr.mxu0 0.0
      %2687 = vmatpush1.msra.mxu0 0.0
      %2688 = vmatprep.subr.mxu0 0.0
      %2689 = vmatpush1.msra.mxu0 0.0
      %2690 = vmatprep.subr.mxu0 0.0
      %2691 = vmatpush1.msra.mxu0 0.0
      %2692 = vmatprep.subr.mxu0 0.0
      %2693 = vmatpush1.msra.mxu0 0.0
      %2694 = vmatprep.subr.mxu0 0.0
      %2695 = vmatpush1.msra.mxu0 0.0
      %2696 = vmatprep.subr.mxu0 0.0
      %2697 = vmatpush1.msra.mxu0 0.0
      %2698 = vmatprep.subr.mxu0 0.0
      %2699 = vmatpush1.msra.mxu0 0.0
      %2700 = vmatprep.subr.mxu0 0.0
      %2701 = vmatpush1.msra.mxu0 0.0
      %2702 = vmatprep.subr.mxu0 0.0
      %2703 = vmatpush1.msra.mxu0 0.0
      %2704 = vmatprep.subr.mxu0 0.0
      %2705 = vmatpush1.msra.mxu0 0.0
      %2706 = vmatprep.subr.mxu0 0.0
      %2707 = vmatpush1.msra.mxu0 0.0
      %2708 = vmatprep.subr.mxu0 0.0
      %2709 = vmatpush1.msra.mxu0 0.0
      %2710 = vmatprep.subr.mxu0 0.0
      %2711 = vmatpush1.msra.mxu0 0.0
      %2712 = vmatprep.subr.mxu0 0.0
      %2713 = vmatpush1.msra.mxu0 0.0
      %2714 = vmatprep.subr.mxu0 0.0
      %2715 = vmatpush1.msra.mxu0 0.0
      %2716 = vmatprep.subr.mxu0 0.0
      %2717 = vmatpush1.msra.mxu0 0.0
      %2718 = vmatprep.subr.mxu0 0.0
      %2719 = vmatpush1.msra.mxu0 0.0
      %2720 = vmatprep.subr.mxu0 0.0
      %2721 = vmatpush1.msra.mxu0 0.0
      %2722 = vmatprep.subr.mxu0 0.0
      %2723 = vmatpush1.msra.mxu0 0.0
      %2724 = vmatprep.mubr.f32.mxu0 0.0
      %2725 = vmatmul.mubr.f32.gmra.mrb[0].mxu0 %v2658
      %v2726 = vpop.f32.mrb[0].mxu0
      %v2727 = vadd.f32 0.0, %v2726
      %v2728 = vpop.f32.mrb[0].mxu0
      %v2729 = vadd.f32 0.0, %v2728
      %2730 = vdwg.mxu0
      %v2731 = vadd.f32 %v2543, %v2727
      %v2732 = vadd.f32 %v2544, %v2729
      %2733 = vrot.lane.b32.xlu0 %v2149, 1
      %v2734 = vpop.permute.xlu0 %2733
      %2735 = vrot.lane.b32.xlu0 %v2151, 1
      %v2736 = vpop.permute.xlu0 %2735
      %2737 = vrot.lane.b32.xlu0 %v2153, 1
      %v2738 = vpop.permute.xlu0 %2737
      %2739 = vrot.lane.b32.xlu0 %v2155, 1
      %v2740 = vpop.permute.xlu0 %2739
      %2741 = vrot.lane.b32.xlu0 %v2150, 1
      %v2742 = vpop.permute.xlu0 %2741
      %2743 = vrot.lane.b32.xlu0 %v2152, 1
      %v2744 = vpop.permute.xlu0 %2743
      %2745 = vrot.lane.b32.xlu0 %v2154, 1
      %v2746 = vpop.permute.xlu0 %2745
      %2747 = vrot.lane.b32.xlu0 %v2156, 1
      %v2748 = vpop.permute.xlu0 %2747
      %v2749 = vsel %vm1190, %v2734, %v2742
      %v2750 = vsel %vm1190, %v2736, %v2744
      %v2751 = vsel %vm1190, %v2738, %v2746
      %v2752 = vsel %vm1190, %v2740, %v2748
      %v2753 = vsel %vm1190, %v2742, %v2734
      %v2754 = vsel %vm1190, %v2744, %v2736
      %v2755 = vsel %vm1190, %v2746, %v2738
      %v2756 = vsel %vm1190, %v2748, %v2740
      %v2757 = vmul.f32 %v2753, %v1199
      %v2758 = vmul.f32 %v2749, %v1203
      %v2759 = vmul.f32 %v2754, %v1199
      %v2760 = vmul.f32 %v2750, %v1203
      %v2761 = vmul.f32 %v2755, %v1199
      %v2762 = vmul.f32 %v2751, %v1203
      %v2763 = vmul.f32 %v2756, %v1199
      %v2764 = vmul.f32 %v2752, %v1203
      %s2765 = scalar_lea.vmem %s10, 12
      %v2766 = vld [vmem:[%s2765] sm:$0xf]
      %v2768 = vsel %vm2047, %v2766, 0
      %2770 = vmatprep.subr.mxu0 %v2758
      %2771 = vmatpush1.msra.mxu0 %v2757
      %2772 = vmatprep.subr.mxu0 %v2760
      %2773 = vmatpush1.msra.mxu0 %v2759
      %2774 = vmatprep.subr.mxu0 %v2762
      %2775 = vmatpush1.msra.mxu0 %v2761
      %2776 = vmatprep.subr.mxu0 %v2764
      %2777 = vmatpush1.msra.mxu0 %v2763
      %2778 = vmatprep.subr.mxu0 0.0
      %2779 = vmatpush1.msra.mxu0 0.0
      %2780 = vmatprep.subr.mxu0 0.0
      %2781 = vmatpush1.msra.mxu0 0.0
      %2782 = vmatprep.subr.mxu0 0.0
      %2783 = vmatpush1.msra.mxu0 0.0
      %2784 = vmatprep.subr.mxu0 0.0
      %2785 = vmatpush1.msra.mxu0 0.0
      %2786 = vmatprep.subr.mxu0 0.0
      %2787 = vmatpush1.msra.mxu0 0.0
      %2788 = vmatprep.subr.mxu0 0.0
      %2789 = vmatpush1.msra.mxu0 0.0
      %2790 = vmatprep.subr.mxu0 0.0
      %2791 = vmatpush1.msra.mxu0 0.0
      %2792 = vmatprep.subr.mxu0 0.0
      %2793 = vmatpush1.msra.mxu0 0.0
      %2794 = vmatprep.subr.mxu0 0.0
      %2795 = vmatpush1.msra.mxu0 0.0
      %2796 = vmatprep.subr.mxu0 0.0
      %2797 = vmatpush1.msra.mxu0 0.0
      %2798 = vmatprep.subr.mxu0 0.0
      %2799 = vmatpush1.msra.mxu0 0.0
      %2800 = vmatprep.subr.mxu0 0.0
      %2801 = vmatpush1.msra.mxu0 0.0
      %2802 = vmatprep.subr.mxu0 0.0
      %2803 = vmatpush1.msra.mxu0 0.0
      %2804 = vmatprep.subr.mxu0 0.0
      %2805 = vmatpush1.msra.mxu0 0.0
      %2806 = vmatprep.subr.mxu0 0.0
      %2807 = vmatpush1.msra.mxu0 0.0
      %2808 = vmatprep.subr.mxu0 0.0
      %2809 = vmatpush1.msra.mxu0 0.0
      %2810 = vmatprep.subr.mxu0 0.0
      %2811 = vmatpush1.msra.mxu0 0.0
      %2812 = vmatprep.subr.mxu0 0.0
      %2813 = vmatpush1.msra.mxu0 0.0
      %2814 = vmatprep.subr.mxu0 0.0
      %2815 = vmatpush1.msra.mxu0 0.0
      %2816 = vmatprep.subr.mxu0 0.0
      %2817 = vmatpush1.msra.mxu0 0.0
      %2818 = vmatprep.subr.mxu0 0.0
      %2819 = vmatpush1.msra.mxu0 0.0
      %2820 = vmatprep.subr.mxu0 0.0
      %2821 = vmatpush1.msra.mxu0 0.0
      %2822 = vmatprep.subr.mxu0 0.0
      %2823 = vmatpush1.msra.mxu0 0.0
      %2824 = vmatprep.subr.mxu0 0.0
      %2825 = vmatpush1.msra.mxu0 0.0
      %2826 = vmatprep.subr.mxu0 0.0
      %2827 = vmatpush1.msra.mxu0 0.0
      %2828 = vmatprep.subr.mxu0 0.0
      %2829 = vmatpush1.msra.mxu0 0.0
      %2830 = vmatprep.subr.mxu0 0.0
      %2831 = vmatpush1.msra.mxu0 0.0
      %2832 = vmatprep.subr.mxu0 0.0
      %2833 = vmatpush1.msra.mxu0 0.0
      %2834 = vmatprep.mubr.f32.mxu0 0.0
      %2835 = vmatmul.mubr.f32.gmra.mrb[0].mxu0 %v2768
      %v2836 = vpop.f32.mrb[0].mxu0
      %v2837 = vadd.f32 0.0, %v2836
      %v2838 = vpop.f32.mrb[0].mxu0
      %v2839 = vadd.f32 0.0, %v2838
      %2840 = vdwg.mxu0
      %v2841 = vadd.f32 %v2653, %v2837
      %v2842 = vadd.f32 %v2654, %v2839
      %s2843 = scalar_lea.vmem %s12, 12
      %v2844 = vld [vmem:[%s2843] sm:$0xf]
      %v2846 = vsel %vm2047, %v2844, 0
      %2848 = vmatprep.subr.mxu0 %v2758
      %2849 = vmatpush1.msra.mxu0 %v2757
      %2850 = vmatprep.subr.mxu0 %v2760
      %2851 = vmatpush1.msra.mxu0 %v2759
      %2852 = vmatprep.subr.mxu0 %v2762
      %2853 = vmatpush1.msra.mxu0 %v2761
      %2854 = vmatprep.subr.mxu0 %v2764
      %2855 = vmatpush1.msra.mxu0 %v2763
      %2856 = vmatprep.subr.mxu0 0.0
      %2857 = vmatpush1.msra.mxu0 0.0
      %2858 = vmatprep.subr.mxu0 0.0
      %2859 = vmatpush1.msra.mxu0 0.0
      %2860 = vmatprep.subr.mxu0 0.0
      %2861 = vmatpush1.msra.mxu0 0.0
      %2862 = vmatprep.subr.mxu0 0.0
      %2863 = vmatpush1.msra.mxu0 0.0
      %2864 = vmatprep.subr.mxu0 0.0
      %2865 = vmatpush1.msra.mxu0 0.0
      %2866 = vmatprep.subr.mxu0 0.0
      %2867 = vmatpush1.msra.mxu0 0.0
      %2868 = vmatprep.subr.mxu0 0.0
      %2869 = vmatpush1.msra.mxu0 0.0
      %2870 = vmatprep.subr.mxu0 0.0
      %2871 = vmatpush1.msra.mxu0 0.0
      %2872 = vmatprep.subr.mxu0 0.0
      %2873 = vmatpush1.msra.mxu0 0.0
      %2874 = vmatprep.subr.mxu0 0.0
      %2875 = vmatpush1.msra.mxu0 0.0
      %2876 = vmatprep.subr.mxu0 0.0
      %2877 = vmatpush1.msra.mxu0 0.0
      %2878 = vmatprep.subr.mxu0 0.0
      %2879 = vmatpush1.msra.mxu0 0.0
      %2880 = vmatprep.subr.mxu0 0.0
      %2881 = vmatpush1.msra.mxu0 0.0
      %2882 = vmatprep.subr.mxu0 0.0
      %2883 = vmatpush1.msra.mxu0 0.0
      %2884 = vmatprep.subr.mxu0 0.0
      %2885 = vmatpush1.msra.mxu0 0.0
      %2886 = vmatprep.subr.mxu0 0.0
      %2887 = vmatpush1.msra.mxu0 0.0
      %2888 = vmatprep.subr.mxu0 0.0
      %2889 = vmatpush1.msra.mxu0 0.0
      %2890 = vmatprep.subr.mxu0 0.0
      %2891 = vmatpush1.msra.mxu0 0.0
      %2892 = vmatprep.subr.mxu0 0.0
      %2893 = vmatpush1.msra.mxu0 0.0
      %2894 = vmatprep.subr.mxu0 0.0
      %2895 = vmatpush1.msra.mxu0 0.0
      %2896 = vmatprep.subr.mxu0 0.0
      %2897 = vmatpush1.msra.mxu0 0.0
      %2898 = vmatprep.subr.mxu0 0.0
      %2899 = vmatpush1.msra.mxu0 0.0
      %2900 = vmatprep.subr.mxu0 0.0
      %2901 = vmatpush1.msra.mxu0 0.0
      %2902 = vmatprep.subr.mxu0 0.0
      %2903 = vmatpush1.msra.mxu0 0.0
      %2904 = vmatprep.subr.mxu0 0.0
      %2905 = vmatpush1.msra.mxu0 0.0
      %2906 = vmatprep.subr.mxu0 0.0
      %2907 = vmatpush1.msra.mxu0 0.0
      %2908 = vmatprep.subr.mxu0 0.0
      %2909 = vmatpush1.msra.mxu0 0.0
      %2910 = vmatprep.subr.mxu0 0.0
      %2911 = vmatpush1.msra.mxu0 0.0
      %2912 = vmatprep.mubr.f32.mxu0 0.0
      %2913 = vmatmul.mubr.f32.gmra.mrb[0].mxu0 %v2846
      %v2914 = vpop.f32.mrb[0].mxu0
      %v2915 = vadd.f32 0.0, %v2914
      %v2916 = vpop.f32.mrb[0].mxu0
      %v2917 = vadd.f32 0.0, %v2916
      %2918 = vdwg.mxu0
      %v2919 = vadd.f32 %v2731, %v2915
      %v2920 = vadd.f32 %v2732, %v2917
      %s2921 = scalar_lea.vmem %s10, 16
      %v2922 = vld [vmem:[%s2921] sm:$0xf]
      %v2924 = vsel %vm2047, %v2922, 0
      %2926 = vmatprep.subr.mxu0 %v2150
      %2927 = vmatpush1.msra.mxu0 %v2149
      %2928 = vmatprep.subr.mxu0 %v2152
      %2929 = vmatpush1.msra.mxu0 %v2151
      %2930 = vmatprep.subr.mxu0 %v2154
      %2931 = vmatpush1.msra.mxu0 %v2153
      %2932 = vmatprep.subr.mxu0 %v2156
      %2933 = vmatpush1.msra.mxu0 %v2155
      %2934 = vmatprep.subr.mxu0 0.0
      %2935 = vmatpush1.msra.mxu0 0.0
      %2936 = vmatprep.subr.mxu0 0.0
      %2937 = vmatpush1.msra.mxu0 0.0
      %2938 = vmatprep.subr.mxu0 0.0
      %2939 = vmatpush1.msra.mxu0 0.0
      %2940 = vmatprep.subr.mxu0 0.0
      %2941 = vmatpush1.msra.mxu0 0.0
      %2942 = vmatprep.subr.mxu0 0.0
      %2943 = vmatpush1.msra.mxu0 0.0
      %2944 = vmatprep.subr.mxu0 0.0
      %2945 = vmatpush1.msra.mxu0 0.0
      %2946 = vmatprep.subr.mxu0 0.0
      %2947 = vmatpush1.msra.mxu0 0.0
      %2948 = vmatprep.subr.mxu0 0.0
      %2949 = vmatpush1.msra.mxu0 0.0
      %2950 = vmatprep.subr.mxu0 0.0
      %2951 = vmatpush1.msra.mxu0 0.0
      %2952 = vmatprep.subr.mxu0 0.0
      %2953 = vmatpush1.msra.mxu0 0.0
      %2954 = vmatprep.subr.mxu0 0.0
      %2955 = vmatpush1.msra.mxu0 0.0
      %2956 = vmatprep.subr.mxu0 0.0
      %2957 = vmatpush1.msra.mxu0 0.0
      %2958 = vmatprep.subr.mxu0 0.0
      %2959 = vmatpush1.msra.mxu0 0.0
      %2960 = vmatprep.subr.mxu0 0.0
      %2961 = vmatpush1.msra.mxu0 0.0
      %2962 = vmatprep.subr.mxu0 0.0
      %2963 = vmatpush1.msra.mxu0 0.0
      %2964 = vmatprep.subr.mxu0 0.0
      %2965 = vmatpush1.msra.mxu0 0.0
      %2966 = vmatprep.subr.mxu0 0.0
      %2967 = vmatpush1.msra.mxu0 0.0
      %2968 = vmatprep.subr.mxu0 0.0
      %2969 = vmatpush1.msra.mxu0 0.0
      %2970 = vmatprep.subr.mxu0 0.0
      %2971 = vmatpush1.msra.mxu0 0.0
      %2972 = vmatprep.subr.mxu0 0.0
      %2973 = vmatpush1.msra.mxu0 0.0
      %2974 = vmatprep.subr.mxu0 0.0
      %2975 = vmatpush1.msra.mxu0 0.0
      %2976 = vmatprep.subr.mxu0 0.0
      %2977 = vmatpush1.msra.mxu0 0.0
      %2978 = vmatprep.subr.mxu0 0.0
      %2979 = vmatpush1.msra.mxu0 0.0
      %2980 = vmatprep.subr.mxu0 0.0
      %2981 = vmatpush1.msra.mxu0 0.0
      %2982 = vmatprep.subr.mxu0 0.0
      %2983 = vmatpush1.msra.mxu0 0.0
      %2984 = vmatprep.subr.mxu0 0.0
      %2985 = vmatpush1.msra.mxu0 0.0
      %2986 = vmatprep.subr.mxu0 0.0
      %2987 = vmatpush1.msra.mxu0 0.0
      %2988 = vmatprep.subr.mxu0 0.0
      %2989 = vmatpush1.msra.mxu0 0.0
      %2990 = vmatprep.mubr.f32.mxu0 0.0
      %2991 = vmatmul.mubr.f32.gmra.mrb[0].mxu0 %v2924
      %v2992 = vpop.f32.mrb[0].mxu0
      %v2993 = vadd.f32 0.0, %v2992
      %v2994 = vpop.f32.mrb[0].mxu0
      %v2995 = vadd.f32 0.0, %v2994
      %2996 = vdwg.mxu0
      %v2997 = vadd.f32 %v2841, %v2993
      %v2998 = vadd.f32 %v2842, %v2995
      %s2999 = scalar_lea.vmem %s12, 16
      %v3000 = vld [vmem:[%s2999] sm:$0xf]
      %v3002 = vsel %vm2047, %v3000, 0
      %3004 = vmatprep.subr.mxu0 %v2150
      %3005 = vmatpush1.msra.mxu0 %v2149
      %3006 = vmatprep.subr.mxu0 %v2152
      %3007 = vmatpush1.msra.mxu0 %v2151
      %3008 = vmatprep.subr.mxu0 %v2154
      %3009 = vmatpush1.msra.mxu0 %v2153
      %3010 = vmatprep.subr.mxu0 %v2156
      %3011 = vmatpush1.msra.mxu0 %v2155
      %3012 = vmatprep.subr.mxu0 0.0
      %3013 = vmatpush1.msra.mxu0 0.0
      %3014 = vmatprep.subr.mxu0 0.0
      %3015 = vmatpush1.msra.mxu0 0.0
      %3016 = vmatprep.subr.mxu0 0.0
      %3017 = vmatpush1.msra.mxu0 0.0
      %3018 = vmatprep.subr.mxu0 0.0
      %3019 = vmatpush1.msra.mxu0 0.0
      %3020 = vmatprep.subr.mxu0 0.0
      %3021 = vmatpush1.msra.mxu0 0.0
      %3022 = vmatprep.subr.mxu0 0.0
      %3023 = vmatpush1.msra.mxu0 0.0
      %3024 = vmatprep.subr.mxu0 0.0
      %3025 = vmatpush1.msra.mxu0 0.0
      %3026 = vmatprep.subr.mxu0 0.0
      %3027 = vmatpush1.msra.mxu0 0.0
      %3028 = vmatprep.subr.mxu0 0.0
      %3029 = vmatpush1.msra.mxu0 0.0
      %3030 = vmatprep.subr.mxu0 0.0
      %3031 = vmatpush1.msra.mxu0 0.0
      %3032 = vmatprep.subr.mxu0 0.0
      %3033 = vmatpush1.msra.mxu0 0.0
      %3034 = vmatprep.subr.mxu0 0.0
      %3035 = vmatpush1.msra.mxu0 0.0
      %3036 = vmatprep.subr.mxu0 0.0
      %3037 = vmatpush1.msra.mxu0 0.0
      %3038 = vmatprep.subr.mxu0 0.0
      %3039 = vmatpush1.msra.mxu0 0.0
      %3040 = vmatprep.subr.mxu0 0.0
      %3041 = vmatpush1.msra.mxu0 0.0
      %3042 = vmatprep.subr.mxu0 0.0
      %3043 = vmatpush1.msra.mxu0 0.0
      %3044 = vmatprep.subr.mxu0 0.0
      %3045 = vmatpush1.msra.mxu0 0.0
      %3046 = vmatprep.subr.mxu0 0.0
      %3047 = vmatpush1.msra.mxu0 0.0
      %3048 = vmatprep.subr.mxu0 0.0
      %3049 = vmatpush1.msra.mxu0 0.0
      %3050 = vmatprep.subr.mxu0 0.0
      %3051 = vmatpush1.msra.mxu0 0.0
      %3052 = vmatprep.subr.mxu0 0.0
      %3053 = vmatpush1.msra.mxu0 0.0
      %3054 = vmatprep.subr.mxu0 0.0
      %3055 = vmatpush1.msra.mxu0 0.0
      %3056 = vmatprep.subr.mxu0 0.0
      %3057 = vmatpush1.msra.mxu0 0.0
      %3058 = vmatprep.subr.mxu0 0.0
      %3059 = vmatpush1.msra.mxu0 0.0
      %3060 = vmatprep.subr.mxu0 0.0
      %3061 = vmatpush1.msra.mxu0 0.0
      %3062 = vmatprep.subr.mxu0 0.0
      %3063 = vmatpush1.msra.mxu0 0.0
      %3064 = vmatprep.subr.mxu0 0.0
      %3065 = vmatpush1.msra.mxu0 0.0
      %3066 = vmatprep.subr.mxu0 0.0
      %3067 = vmatpush1.msra.mxu0 0.0
      %3068 = vmatprep.mubr.f32.mxu0 0.0
      %3069 = vmatmul.mubr.f32.gmra.mrb[0].mxu0 %v3002
      %v3070 = vpop.f32.mrb[0].mxu0
      %v3071 = vadd.f32 0.0, %v3070
      %v3072 = vpop.f32.mrb[0].mxu0
      %v3073 = vadd.f32 0.0, %v3072
      %3074 = vdwg.mxu0
      %v3075 = vadd.f32 %v2919, %v3071
      %v3076 = vadd.f32 %v2920, %v3073
      %3077 = vrot.lane.b32.xlu0 %v2149, 127
      %v3078 = vpop.permute.xlu0 %3077
      %3079 = vrot.lane.b32.xlu0 %v2151, 127
      %v3080 = vpop.permute.xlu0 %3079
      %3081 = vrot.lane.b32.xlu0 %v2153, 127
      %v3082 = vpop.permute.xlu0 %3081
      %3083 = vrot.lane.b32.xlu0 %v2155, 127
      %v3084 = vpop.permute.xlu0 %3083
      %3085 = vrot.lane.b32.xlu0 %v2150, 127
      %v3086 = vpop.permute.xlu0 %3085
      %3087 = vrot.lane.b32.xlu0 %v2152, 127
      %v3088 = vpop.permute.xlu0 %3087
      %3089 = vrot.lane.b32.xlu0 %v2154, 127
      %v3090 = vpop.permute.xlu0 %3089
      %3091 = vrot.lane.b32.xlu0 %v2156, 127
      %v3092 = vpop.permute.xlu0 %3091
      %v3093 = vsel %vm1452, %v3078, %v3086
      %v3094 = vsel %vm1452, %v3080, %v3088
      %v3095 = vsel %vm1452, %v3082, %v3090
      %v3096 = vsel %vm1452, %v3084, %v3092
      %v3097 = vsel %vm1452, %v3086, %v3078
      %v3098 = vsel %vm1452, %v3088, %v3080
      %v3099 = vsel %vm1452, %v3090, %v3082
      %v3100 = vsel %vm1452, %v3092, %v3084
      %v3101 = vmul.f32 %v3093, %v1461
      %v3102 = vmul.f32 %v3097, %v1465
      %v3103 = vmul.f32 %v3094, %v1461
      %v3104 = vmul.f32 %v3098, %v1465
      %v3105 = vmul.f32 %v3095, %v1461
      %v3106 = vmul.f32 %v3099, %v1465
      %v3107 = vmul.f32 %v3096, %v1461
      %v3108 = vmul.f32 %v3100, %v1465
      %s3109 = scalar_lea.vmem %s10, 20
      %v3110 = vld [vmem:[%s3109] sm:$0xf]
      %v3112 = vsel %vm2047, %v3110, 0
      %3114 = vmatprep.subr.mxu0 %v3102
      %3115 = vmatpush1.msra.mxu0 %v3101
      %3116 = vmatprep.subr.mxu0 %v3104
      %3117 = vmatpush1.msra.mxu0 %v3103
      %3118 = vmatprep.subr.mxu0 %v3106
      %3119 = vmatpush1.msra.mxu0 %v3105
      %3120 = vmatprep.subr.mxu0 %v3108
      %3121 = vmatpush1.msra.mxu0 %v3107
      %3122 = vmatprep.subr.mxu0 0.0
      %3123 = vmatpush1.msra.mxu0 0.0
      %3124 = vmatprep.subr.mxu0 0.0
      %3125 = vmatpush1.msra.mxu0 0.0
      %3126 = vmatprep.subr.mxu0 0.0
      %3127 = vmatpush1.msra.mxu0 0.0
      %3128 = vmatprep.subr.mxu0 0.0
      %3129 = vmatpush1.msra.mxu0 0.0
      %3130 = vmatprep.subr.mxu0 0.0
      %3131 = vmatpush1.msra.mxu0 0.0
      %3132 = vmatprep.subr.mxu0 0.0
      %3133 = vmatpush1.msra.mxu0 0.0
      %3134 = vmatprep.subr.mxu0 0.0
      %3135 = vmatpush1.msra.mxu0 0.0
      %3136 = vmatprep.subr.mxu0 0.0
      %3137 = vmatpush1.msra.mxu0 0.0
      %3138 = vmatprep.subr.mxu0 0.0
      %3139 = vmatpush1.msra.mxu0 0.0
      %3140 = vmatprep.subr.mxu0 0.0
      %3141 = vmatpush1.msra.mxu0 0.0
      %3142 = vmatprep.subr.mxu0 0.0
      %3143 = vmatpush1.msra.mxu0 0.0
      %3144 = vmatprep.subr.mxu0 0.0
      %3145 = vmatpush1.msra.mxu0 0.0
      %3146 = vmatprep.subr.mxu0 0.0
      %3147 = vmatpush1.msra.mxu0 0.0
      %3148 = vmatprep.subr.mxu0 0.0
      %3149 = vmatpush1.msra.mxu0 0.0
      %3150 = vmatprep.subr.mxu0 0.0
      %3151 = vmatpush1.msra.mxu0 0.0
      %3152 = vmatprep.subr.mxu0 0.0
      %3153 = vmatpush1.msra.mxu0 0.0
      %3154 = vmatprep.subr.mxu0 0.0
      %3155 = vmatpush1.msra.mxu0 0.0
      %3156 = vmatprep.subr.mxu0 0.0
      %3157 = vmatpush1.msra.mxu0 0.0
      %3158 = vmatprep.subr.mxu0 0.0
      %3159 = vmatpush1.msra.mxu0 0.0
      %3160 = vmatprep.subr.mxu0 0.0
      %3161 = vmatpush1.msra.mxu0 0.0
      %3162 = vmatprep.subr.mxu0 0.0
      %3163 = vmatpush1.msra.mxu0 0.0
      %3164 = vmatprep.subr.mxu0 0.0
      %3165 = vmatpush1.msra.mxu0 0.0
      %3166 = vmatprep.subr.mxu0 0.0
      %3167 = vmatpush1.msra.mxu0 0.0
      %3168 = vmatprep.subr.mxu0 0.0
      %3169 = vmatpush1.msra.mxu0 0.0
      %3170 = vmatprep.subr.mxu0 0.0
      %3171 = vmatpush1.msra.mxu0 0.0
      %3172 = vmatprep.subr.mxu0 0.0
      %3173 = vmatpush1.msra.mxu0 0.0
      %3174 = vmatprep.subr.mxu0 0.0
      %3175 = vmatpush1.msra.mxu0 0.0
      %3176 = vmatprep.subr.mxu0 0.0
      %3177 = vmatpush1.msra.mxu0 0.0
      %3178 = vmatprep.mubr.f32.mxu0 0.0
      %3179 = vmatmul.mubr.f32.gmra.mrb[0].mxu0 %v3112
      %v3180 = vpop.f32.mrb[0].mxu0
      %v3181 = vadd.f32 0.0, %v3180
      %v3182 = vpop.f32.mrb[0].mxu0
      %v3183 = vadd.f32 0.0, %v3182
      %3184 = vdwg.mxu0
      %v3185 = vadd.f32 %v2997, %v3181
      %v3186 = vadd.f32 %v2998, %v3183
      %s3187 = scalar_lea.vmem %s12, 20
      %v3188 = vld [vmem:[%s3187] sm:$0xf]
      %v3190 = vsel %vm2047, %v3188, 0
      %3192 = vmatprep.subr.mxu0 %v3102
      %3193 = vmatpush1.msra.mxu0 %v3101
      %3194 = vmatprep.subr.mxu0 %v3104
      %3195 = vmatpush1.msra.mxu0 %v3103
      %3196 = vmatprep.subr.mxu0 %v3106
      %3197 = vmatpush1.msra.mxu0 %v3105
      %3198 = vmatprep.subr.mxu0 %v3108
      %3199 = vmatpush1.msra.mxu0 %v3107
      %3200 = vmatprep.subr.mxu0 0.0
      %3201 = vmatpush1.msra.mxu0 0.0
      %3202 = vmatprep.subr.mxu0 0.0
      %3203 = vmatpush1.msra.mxu0 0.0
      %3204 = vmatprep.subr.mxu0 0.0
      %3205 = vmatpush1.msra.mxu0 0.0
      %3206 = vmatprep.subr.mxu0 0.0
      %3207 = vmatpush1.msra.mxu0 0.0
      %3208 = vmatprep.subr.mxu0 0.0
      %3209 = vmatpush1.msra.mxu0 0.0
      %3210 = vmatprep.subr.mxu0 0.0
      %3211 = vmatpush1.msra.mxu0 0.0
      %3212 = vmatprep.subr.mxu0 0.0
      %3213 = vmatpush1.msra.mxu0 0.0
      %3214 = vmatprep.subr.mxu0 0.0
      %3215 = vmatpush1.msra.mxu0 0.0
      %3216 = vmatprep.subr.mxu0 0.0
      %3217 = vmatpush1.msra.mxu0 0.0
      %3218 = vmatprep.subr.mxu0 0.0
      %3219 = vmatpush1.msra.mxu0 0.0
      %3220 = vmatprep.subr.mxu0 0.0
      %3221 = vmatpush1.msra.mxu0 0.0
      %3222 = vmatprep.subr.mxu0 0.0
      %3223 = vmatpush1.msra.mxu0 0.0
      %3224 = vmatprep.subr.mxu0 0.0
      %3225 = vmatpush1.msra.mxu0 0.0
      %3226 = vmatprep.subr.mxu0 0.0
      %3227 = vmatpush1.msra.mxu0 0.0
      %3228 = vmatprep.subr.mxu0 0.0
      %3229 = vmatpush1.msra.mxu0 0.0
      %3230 = vmatprep.subr.mxu0 0.0
      %3231 = vmatpush1.msra.mxu0 0.0
      %3232 = vmatprep.subr.mxu0 0.0
      %3233 = vmatpush1.msra.mxu0 0.0
      %3234 = vmatprep.subr.mxu0 0.0
      %3235 = vmatpush1.msra.mxu0 0.0
      %3236 = vmatprep.subr.mxu0 0.0
      %3237 = vmatpush1.msra.mxu0 0.0
      %3238 = vmatprep.subr.mxu0 0.0
      %3239 = vmatpush1.msra.mxu0 0.0
      %3240 = vmatprep.subr.mxu0 0.0
      %3241 = vmatpush1.msra.mxu0 0.0
      %3242 = vmatprep.subr.mxu0 0.0
      %3243 = vmatpush1.msra.mxu0 0.0
      %3244 = vmatprep.subr.mxu0 0.0
      %3245 = vmatpush1.msra.mxu0 0.0
      %3246 = vmatprep.subr.mxu0 0.0
      %3247 = vmatpush1.msra.mxu0 0.0
      %3248 = vmatprep.subr.mxu0 0.0
      %3249 = vmatpush1.msra.mxu0 0.0
      %3250 = vmatprep.subr.mxu0 0.0
      %3251 = vmatpush1.msra.mxu0 0.0
      %3252 = vmatprep.subr.mxu0 0.0
      %3253 = vmatpush1.msra.mxu0 0.0
      %3254 = vmatprep.subr.mxu0 0.0
      %3255 = vmatpush1.msra.mxu0 0.0
      %3256 = vmatprep.mubr.f32.mxu0 0.0
      %3257 = vmatmul.mubr.f32.gmra.mrb[0].mxu0 %v3190
      %v3258 = vpop.f32.mrb[0].mxu0
      %v3259 = vadd.f32 0.0, %v3258
      %v3260 = vpop.f32.mrb[0].mxu0
      %v3261 = vadd.f32 0.0, %v3260
      %3262 = vdwg.mxu0
      %v3263 = vadd.f32 %v3075, %v3259
      %v3264 = vadd.f32 %v3076, %v3261
      %3265 = vrot.lane.b32.xlu0 %v2149, 113
      %v3266 = vpop.permute.xlu0 %3265
      %3267 = vrot.lane.b32.xlu0 %v2151, 113
      %v3268 = vpop.permute.xlu0 %3267
      %3269 = vrot.lane.b32.xlu0 %v2153, 113
      %v3270 = vpop.permute.xlu0 %3269
      %3271 = vrot.lane.b32.xlu0 %v2155, 113
      %v3272 = vpop.permute.xlu0 %3271
      %3273 = vrot.lane.b32.xlu0 %v2150, 113
      %v3274 = vpop.permute.xlu0 %3273
      %3275 = vrot.lane.b32.xlu0 %v2152, 113
      %v3276 = vpop.permute.xlu0 %3275
      %3277 = vrot.lane.b32.xlu0 %v2154, 113
      %v3278 = vpop.permute.xlu0 %3277
      %3279 = vrot.lane.b32.xlu0 %v2156, 113
      %v3280 = vpop.permute.xlu0 %3279
      %v3281 = vsel %vm1594, %v3266, %v3274
      %v3282 = vsel %vm1594, %v3268, %v3276
      %v3283 = vsel %vm1594, %v3270, %v3278
      %v3284 = vsel %vm1594, %v3272, %v3280
      %v3285 = vsel %vm1594, %v3274, %v3266
      %v3286 = vsel %vm1594, %v3276, %v3268
      %v3287 = vsel %vm1594, %v3278, %v3270
      %v3288 = vsel %vm1594, %v3280, %v3272
      %v3289 = vmul.f32 %v3281, %v1603
      %v3290 = vmul.f32 %v3285, %v1607
      %v3291 = vmul.f32 %v3282, %v1603
      %v3292 = vmul.f32 %v3286, %v1607
      %v3293 = vmul.f32 %v3283, %v1603
      %v3294 = vmul.f32 %v3287, %v1607
      %v3295 = vmul.f32 %v3284, %v1603
      %v3296 = vmul.f32 %v3288, %v1607
      %s3297 = scalar_lea.vmem %s10, 24
      %v3298 = vld [vmem:[%s3297] sm:$0xf]
      %v3300 = vsel %vm2047, %v3298, 0
      %3302 = vmatprep.subr.mxu0 %v3290
      %3303 = vmatpush1.msra.mxu0 %v3289
      %3304 = vmatprep.subr.mxu0 %v3292
      %3305 = vmatpush1.msra.mxu0 %v3291
      %3306 = vmatprep.subr.mxu0 %v3294
      %3307 = vmatpush1.msra.mxu0 %v3293
      %3308 = vmatprep.subr.mxu0 %v3296
      %3309 = vmatpush1.msra.mxu0 %v3295
      %3310 = vmatprep.subr.mxu0 0.0
      %3311 = vmatpush1.msra.mxu0 0.0
      %3312 = vmatprep.subr.mxu0 0.0
      %3313 = vmatpush1.msra.mxu0 0.0
      %3314 = vmatprep.subr.mxu0 0.0
      %3315 = vmatpush1.msra.mxu0 0.0
      %3316 = vmatprep.subr.mxu0 0.0
      %3317 = vmatpush1.msra.mxu0 0.0
      %3318 = vmatprep.subr.mxu0 0.0
      %3319 = vmatpush1.msra.mxu0 0.0
      %3320 = vmatprep.subr.mxu0 0.0
      %3321 = vmatpush1.msra.mxu0 0.0
      %3322 = vmatprep.subr.mxu0 0.0
      %3323 = vmatpush1.msra.mxu0 0.0
      %3324 = vmatprep.subr.mxu0 0.0
      %3325 = vmatpush1.msra.mxu0 0.0
      %3326 = vmatprep.subr.mxu0 0.0
      %3327 = vmatpush1.msra.mxu0 0.0
      %3328 = vmatprep.subr.mxu0 0.0
      %3329 = vmatpush1.msra.mxu0 0.0
      %3330 = vmatprep.subr.mxu0 0.0
      %3331 = vmatpush1.msra.mxu0 0.0
      %3332 = vmatprep.subr.mxu0 0.0
      %3333 = vmatpush1.msra.mxu0 0.0
      %3334 = vmatprep.subr.mxu0 0.0
      %3335 = vmatpush1.msra.mxu0 0.0
      %3336 = vmatprep.subr.mxu0 0.0
      %3337 = vmatpush1.msra.mxu0 0.0
      %3338 = vmatprep.subr.mxu0 0.0
      %3339 = vmatpush1.msra.mxu0 0.0
      %3340 = vmatprep.subr.mxu0 0.0
      %3341 = vmatpush1.msra.mxu0 0.0
      %3342 = vmatprep.subr.mxu0 0.0
      %3343 = vmatpush1.msra.mxu0 0.0
      %3344 = vmatprep.subr.mxu0 0.0
      %3345 = vmatpush1.msra.mxu0 0.0
      %3346 = vmatprep.subr.mxu0 0.0
      %3347 = vmatpush1.msra.mxu0 0.0
      %3348 = vmatprep.subr.mxu0 0.0
      %3349 = vmatpush1.msra.mxu0 0.0
      %3350 = vmatprep.subr.mxu0 0.0
      %3351 = vmatpush1.msra.mxu0 0.0
      %3352 = vmatprep.subr.mxu0 0.0
      %3353 = vmatpush1.msra.mxu0 0.0
      %3354 = vmatprep.subr.mxu0 0.0
      %3355 = vmatpush1.msra.mxu0 0.0
      %3356 = vmatprep.subr.mxu0 0.0
      %3357 = vmatpush1.msra.mxu0 0.0
      %3358 = vmatprep.subr.mxu0 0.0
      %3359 = vmatpush1.msra.mxu0 0.0
      %3360 = vmatprep.subr.mxu0 0.0
      %3361 = vmatpush1.msra.mxu0 0.0
      %3362 = vmatprep.subr.mxu0 0.0
      %3363 = vmatpush1.msra.mxu0 0.0
      %3364 = vmatprep.subr.mxu0 0.0
      %3365 = vmatpush1.msra.mxu0 0.0
      %3366 = vmatprep.mubr.f32.mxu0 0.0
      %3367 = vmatmul.mubr.f32.gmra.mrb[0].mxu0 %v3300
      %v3368 = vpop.f32.mrb[0].mxu0
      %v3369 = vadd.f32 0.0, %v3368
      %v3370 = vpop.f32.mrb[0].mxu0
      %v3371 = vadd.f32 0.0, %v3370
      %3372 = vdwg.mxu0
      %v3373 = vadd.f32 %v3185, %v3369
      %v3374 = vadd.f32 %v3186, %v3371
      %s3375 = scalar_lea.vmem %s12, 24
      %v3376 = vld [vmem:[%s3375] sm:$0xf]
      %v3378 = vsel %vm2047, %v3376, 0
      %3380 = vmatprep.subr.mxu0 %v3290
      %3381 = vmatpush1.msra.mxu0 %v3289
      %3382 = vmatprep.subr.mxu0 %v3292
      %3383 = vmatpush1.msra.mxu0 %v3291
      %3384 = vmatprep.subr.mxu0 %v3294
      %3385 = vmatpush1.msra.mxu0 %v3293
      %3386 = vmatprep.subr.mxu0 %v3296
      %3387 = vmatpush1.msra.mxu0 %v3295
      %3388 = vmatprep.subr.mxu0 0.0
      %3389 = vmatpush1.msra.mxu0 0.0
      %3390 = vmatprep.subr.mxu0 0.0
      %3391 = vmatpush1.msra.mxu0 0.0
      %3392 = vmatprep.subr.mxu0 0.0
      %3393 = vmatpush1.msra.mxu0 0.0
      %3394 = vmatprep.subr.mxu0 0.0
      %3395 = vmatpush1.msra.mxu0 0.0
      %3396 = vmatprep.subr.mxu0 0.0
      %3397 = vmatpush1.msra.mxu0 0.0
      %3398 = vmatprep.subr.mxu0 0.0
      %3399 = vmatpush1.msra.mxu0 0.0
      %3400 = vmatprep.subr.mxu0 0.0
      %3401 = vmatpush1.msra.mxu0 0.0
      %3402 = vmatprep.subr.mxu0 0.0
      %3403 = vmatpush1.msra.mxu0 0.0
      %3404 = vmatprep.subr.mxu0 0.0
      %3405 = vmatpush1.msra.mxu0 0.0
      %3406 = vmatprep.subr.mxu0 0.0
      %3407 = vmatpush1.msra.mxu0 0.0
      %3408 = vmatprep.subr.mxu0 0.0
      %3409 = vmatpush1.msra.mxu0 0.0
      %3410 = vmatprep.subr.mxu0 0.0
      %3411 = vmatpush1.msra.mxu0 0.0
      %3412 = vmatprep.subr.mxu0 0.0
      %3413 = vmatpush1.msra.mxu0 0.0
      %3414 = vmatprep.subr.mxu0 0.0
      %3415 = vmatpush1.msra.mxu0 0.0
      %3416 = vmatprep.subr.mxu0 0.0
      %3417 = vmatpush1.msra.mxu0 0.0
      %3418 = vmatprep.subr.mxu0 0.0
      %3419 = vmatpush1.msra.mxu0 0.0
      %3420 = vmatprep.subr.mxu0 0.0
      %3421 = vmatpush1.msra.mxu0 0.0
      %3422 = vmatprep.subr.mxu0 0.0
      %3423 = vmatpush1.msra.mxu0 0.0
      %3424 = vmatprep.subr.mxu0 0.0
      %3425 = vmatpush1.msra.mxu0 0.0
      %3426 = vmatprep.subr.mxu0 0.0
      %3427 = vmatpush1.msra.mxu0 0.0
      %3428 = vmatprep.subr.mxu0 0.0
      %3429 = vmatpush1.msra.mxu0 0.0
      %3430 = vmatprep.subr.mxu0 0.0
      %3431 = vmatpush1.msra.mxu0 0.0
      %3432 = vmatprep.subr.mxu0 0.0
      %3433 = vmatpush1.msra.mxu0 0.0
      %3434 = vmatprep.subr.mxu0 0.0
      %3435 = vmatpush1.msra.mxu0 0.0
      %3436 = vmatprep.subr.mxu0 0.0
      %3437 = vmatpush1.msra.mxu0 0.0
      %3438 = vmatprep.subr.mxu0 0.0
      %3439 = vmatpush1.msra.mxu0 0.0
      %3440 = vmatprep.subr.mxu0 0.0
      %3441 = vmatpush1.msra.mxu0 0.0
      %3442 = vmatprep.subr.mxu0 0.0
      %3443 = vmatpush1.msra.mxu0 0.0
      %3444 = vmatprep.mubr.f32.mxu0 0.0
      %3445 = vmatmul.mubr.f32.gmra.mrb[0].mxu0 %v3378
      %v3446 = vpop.f32.mrb[0].mxu0
      %v3447 = vadd.f32 0.0, %v3446
      %v3448 = vpop.f32.mrb[0].mxu0
      %v3449 = vadd.f32 0.0, %v3448
      %3450 = vdwg.mxu0
      %v3451 = vadd.f32 %v3263, %v3447
      %v3452 = vadd.f32 %v3264, %v3449
      %3453 = vrot.lane.b32.xlu0 %v2149, 112
      %v3454 = vpop.permute.xlu0 %3453
      %3455 = vrot.lane.b32.xlu0 %v2151, 112
      %v3456 = vpop.permute.xlu0 %3455
      %3457 = vrot.lane.b32.xlu0 %v2153, 112
      %v3458 = vpop.permute.xlu0 %3457
      %3459 = vrot.lane.b32.xlu0 %v2155, 112
      %v3460 = vpop.permute.xlu0 %3459
      %3461 = vrot.lane.b32.xlu0 %v2150, 112
      %v3462 = vpop.permute.xlu0 %3461
      %3463 = vrot.lane.b32.xlu0 %v2152, 112
      %v3464 = vpop.permute.xlu0 %3463
      %3465 = vrot.lane.b32.xlu0 %v2154, 112
      %v3466 = vpop.permute.xlu0 %3465
      %3467 = vrot.lane.b32.xlu0 %v2156, 112
      %v3468 = vpop.permute.xlu0 %3467
      %v3469 = vsel %vm1736, %v3454, %v3462
      %v3470 = vsel %vm1736, %v3456, %v3464
      %v3471 = vsel %vm1736, %v3458, %v3466
      %v3472 = vsel %vm1736, %v3460, %v3468
      %v3473 = vsel %vm1736, %v3462, %v3454
      %v3474 = vsel %vm1736, %v3464, %v3456
      %v3475 = vsel %vm1736, %v3466, %v3458
      %v3476 = vsel %vm1736, %v3468, %v3460
      %v3477 = vmul.f32 %v3469, %v1745
      %v3478 = vmul.f32 %v3473, %v1749
      %v3479 = vmul.f32 %v3470, %v1745
      %v3480 = vmul.f32 %v3474, %v1749
      %v3481 = vmul.f32 %v3471, %v1745
      %v3482 = vmul.f32 %v3475, %v1749
      %v3483 = vmul.f32 %v3472, %v1745
      %v3484 = vmul.f32 %v3476, %v1749
      %s3485 = scalar_lea.vmem %s10, 28
      %v3486 = vld [vmem:[%s3485] sm:$0xf]
      %v3488 = vsel %vm2047, %v3486, 0
      %3490 = vmatprep.subr.mxu0 %v3478
      %3491 = vmatpush1.msra.mxu0 %v3477
      %3492 = vmatprep.subr.mxu0 %v3480
      %3493 = vmatpush1.msra.mxu0 %v3479
      %3494 = vmatprep.subr.mxu0 %v3482
      %3495 = vmatpush1.msra.mxu0 %v3481
      %3496 = vmatprep.subr.mxu0 %v3484
      %3497 = vmatpush1.msra.mxu0 %v3483
      %3498 = vmatprep.subr.mxu0 0.0
      %3499 = vmatpush1.msra.mxu0 0.0
      %3500 = vmatprep.subr.mxu0 0.0
      %3501 = vmatpush1.msra.mxu0 0.0
      %3502 = vmatprep.subr.mxu0 0.0
      %3503 = vmatpush1.msra.mxu0 0.0
      %3504 = vmatprep.subr.mxu0 0.0
      %3505 = vmatpush1.msra.mxu0 0.0
      %3506 = vmatprep.subr.mxu0 0.0
      %3507 = vmatpush1.msra.mxu0 0.0
      %3508 = vmatprep.subr.mxu0 0.0
      %3509 = vmatpush1.msra.mxu0 0.0
      %3510 = vmatprep.subr.mxu0 0.0
      %3511 = vmatpush1.msra.mxu0 0.0
      %3512 = vmatprep.subr.mxu0 0.0
      %3513 = vmatpush1.msra.mxu0 0.0
      %3514 = vmatprep.subr.mxu0 0.0
      %3515 = vmatpush1.msra.mxu0 0.0
      %3516 = vmatprep.subr.mxu0 0.0
      %3517 = vmatpush1.msra.mxu0 0.0
      %3518 = vmatprep.subr.mxu0 0.0
      %3519 = vmatpush1.msra.mxu0 0.0
      %3520 = vmatprep.subr.mxu0 0.0
      %3521 = vmatpush1.msra.mxu0 0.0
      %3522 = vmatprep.subr.mxu0 0.0
      %3523 = vmatpush1.msra.mxu0 0.0
      %3524 = vmatprep.subr.mxu0 0.0
      %3525 = vmatpush1.msra.mxu0 0.0
      %3526 = vmatprep.subr.mxu0 0.0
      %3527 = vmatpush1.msra.mxu0 0.0
      %3528 = vmatprep.subr.mxu0 0.0
      %3529 = vmatpush1.msra.mxu0 0.0
      %3530 = vmatprep.subr.mxu0 0.0
      %3531 = vmatpush1.msra.mxu0 0.0
      %3532 = vmatprep.subr.mxu0 0.0
      %3533 = vmatpush1.msra.mxu0 0.0
      %3534 = vmatprep.subr.mxu0 0.0
      %3535 = vmatpush1.msra.mxu0 0.0
      %3536 = vmatprep.subr.mxu0 0.0
      %3537 = vmatpush1.msra.mxu0 0.0
      %3538 = vmatprep.subr.mxu0 0.0
      %3539 = vmatpush1.msra.mxu0 0.0
      %3540 = vmatprep.subr.mxu0 0.0
      %3541 = vmatpush1.msra.mxu0 0.0
      %3542 = vmatprep.subr.mxu0 0.0
      %3543 = vmatpush1.msra.mxu0 0.0
      %3544 = vmatprep.subr.mxu0 0.0
      %3545 = vmatpush1.msra.mxu0 0.0
      %3546 = vmatprep.subr.mxu0 0.0
      %3547 = vmatpush1.msra.mxu0 0.0
      %3548 = vmatprep.subr.mxu0 0.0
      %3549 = vmatpush1.msra.mxu0 0.0
      %3550 = vmatprep.subr.mxu0 0.0
      %3551 = vmatpush1.msra.mxu0 0.0
      %3552 = vmatprep.subr.mxu0 0.0
      %3553 = vmatpush1.msra.mxu0 0.0
      %3554 = vmatprep.mubr.f32.mxu0 0.0
      %3555 = vmatmul.mubr.f32.gmra.mrb[0].mxu0 %v3488
      %v3556 = vpop.f32.mrb[0].mxu0
      %v3557 = vadd.f32 0.0, %v3556
      %v3558 = vpop.f32.mrb[0].mxu0
      %v3559 = vadd.f32 0.0, %v3558
      %3560 = vdwg.mxu0
      %v3561 = vadd.f32 %v3373, %v3557
      %v3562 = vadd.f32 %v3374, %v3559
      %s3563 = scalar_lea.vmem %s12, 28
      %v3564 = vld [vmem:[%s3563] sm:$0xf]
      %v3566 = vsel %vm2047, %v3564, 0
      %3568 = vmatprep.subr.mxu0 %v3478
      %3569 = vmatpush1.msra.mxu0 %v3477
      %3570 = vmatprep.subr.mxu0 %v3480
      %3571 = vmatpush1.msra.mxu0 %v3479
      %3572 = vmatprep.subr.mxu0 %v3482
      %3573 = vmatpush1.msra.mxu0 %v3481
      %3574 = vmatprep.subr.mxu0 %v3484
      %3575 = vmatpush1.msra.mxu0 %v3483
      %3576 = vmatprep.subr.mxu0 0.0
      %3577 = vmatpush1.msra.mxu0 0.0
      %3578 = vmatprep.subr.mxu0 0.0
      %3579 = vmatpush1.msra.mxu0 0.0
      %3580 = vmatprep.subr.mxu0 0.0
      %3581 = vmatpush1.msra.mxu0 0.0
      %3582 = vmatprep.subr.mxu0 0.0
      %3583 = vmatpush1.msra.mxu0 0.0
      %3584 = vmatprep.subr.mxu0 0.0
      %3585 = vmatpush1.msra.mxu0 0.0
      %3586 = vmatprep.subr.mxu0 0.0
      %3587 = vmatpush1.msra.mxu0 0.0
      %3588 = vmatprep.subr.mxu0 0.0
      %3589 = vmatpush1.msra.mxu0 0.0
      %3590 = vmatprep.subr.mxu0 0.0
      %3591 = vmatpush1.msra.mxu0 0.0
      %3592 = vmatprep.subr.mxu0 0.0
      %3593 = vmatpush1.msra.mxu0 0.0
      %3594 = vmatprep.subr.mxu0 0.0
      %3595 = vmatpush1.msra.mxu0 0.0
      %3596 = vmatprep.subr.mxu0 0.0
      %3597 = vmatpush1.msra.mxu0 0.0
      %3598 = vmatprep.subr.mxu0 0.0
      %3599 = vmatpush1.msra.mxu0 0.0
      %3600 = vmatprep.subr.mxu0 0.0
      %3601 = vmatpush1.msra.mxu0 0.0
      %3602 = vmatprep.subr.mxu0 0.0
      %3603 = vmatpush1.msra.mxu0 0.0
      %3604 = vmatprep.subr.mxu0 0.0
      %3605 = vmatpush1.msra.mxu0 0.0
      %3606 = vmatprep.subr.mxu0 0.0
      %3607 = vmatpush1.msra.mxu0 0.0
      %3608 = vmatprep.subr.mxu0 0.0
      %3609 = vmatpush1.msra.mxu0 0.0
      %3610 = vmatprep.subr.mxu0 0.0
      %3611 = vmatpush1.msra.mxu0 0.0
      %3612 = vmatprep.subr.mxu0 0.0
      %3613 = vmatpush1.msra.mxu0 0.0
      %3614 = vmatprep.subr.mxu0 0.0
      %3615 = vmatpush1.msra.mxu0 0.0
      %3616 = vmatprep.subr.mxu0 0.0
      %3617 = vmatpush1.msra.mxu0 0.0
      %3618 = vmatprep.subr.mxu0 0.0
      %3619 = vmatpush1.msra.mxu0 0.0
      %3620 = vmatprep.subr.mxu0 0.0
      %3621 = vmatpush1.msra.mxu0 0.0
      %3622 = vmatprep.subr.mxu0 0.0
      %3623 = vmatpush1.msra.mxu0 0.0
      %3624 = vmatprep.subr.mxu0 0.0
      %3625 = vmatpush1.msra.mxu0 0.0
      %3626 = vmatprep.subr.mxu0 0.0
      %3627 = vmatpush1.msra.mxu0 0.0
      %3628 = vmatprep.subr.mxu0 0.0
      %3629 = vmatpush1.msra.mxu0 0.0
      %3630 = vmatprep.subr.mxu0 0.0
      %3631 = vmatpush1.msra.mxu0 0.0
      %3632 = vmatprep.mubr.f32.mxu0 0.0
      %3633 = vmatmul.mubr.f32.gmra.mrb[0].mxu0 %v3566
      %v3634 = vpop.f32.mrb[0].mxu0
      %v3635 = vadd.f32 0.0, %v3634
      %v3636 = vpop.f32.mrb[0].mxu0
      %v3637 = vadd.f32 0.0, %v3636
      %3638 = vdwg.mxu0
      %v3639 = vadd.f32 %v3451, %v3635
      %v3640 = vadd.f32 %v3452, %v3637
      %3641 = vrot.lane.b32.xlu0 %v2149, 111
      %v3642 = vpop.permute.xlu0 %3641
      %3643 = vrot.lane.b32.xlu0 %v2151, 111
      %v3644 = vpop.permute.xlu0 %3643
      %3645 = vrot.lane.b32.xlu0 %v2153, 111
      %v3646 = vpop.permute.xlu0 %3645
      %3647 = vrot.lane.b32.xlu0 %v2155, 111
      %v3648 = vpop.permute.xlu0 %3647
      %3649 = vrot.lane.b32.xlu0 %v2150, 111
      %v3650 = vpop.permute.xlu0 %3649
      %3651 = vrot.lane.b32.xlu0 %v2152, 111
      %v3652 = vpop.permute.xlu0 %3651
      %3653 = vrot.lane.b32.xlu0 %v2154, 111
      %v3654 = vpop.permute.xlu0 %3653
      %3655 = vrot.lane.b32.xlu0 %v2156, 111
      %v3656 = vpop.permute.xlu0 %3655
      %v3657 = vsel %vm1878, %v3642, %v3650
      %v3658 = vsel %vm1878, %v3644, %v3652
      %v3659 = vsel %vm1878, %v3646, %v3654
      %v3660 = vsel %vm1878, %v3648, %v3656
      %v3661 = vsel %vm1878, %v3650, %v3642
      %v3662 = vsel %vm1878, %v3652, %v3644
      %v3663 = vsel %vm1878, %v3654, %v3646
      %v3664 = vsel %vm1878, %v3656, %v3648
      %v3665 = vmul.f32 %v3657, %v1887
      %v3666 = vmul.f32 %v3661, %v1891
      %v3667 = vmul.f32 %v3658, %v1887
      %v3668 = vmul.f32 %v3662, %v1891
      %v3669 = vmul.f32 %v3659, %v1887
      %v3670 = vmul.f32 %v3663, %v1891
      %v3671 = vmul.f32 %v3660, %v1887
      %v3672 = vmul.f32 %v3664, %v1891
      %s3673 = scalar_lea.vmem %s10, 32
      %v3674 = vld [vmem:[%s3673] sm:$0xf]
      %v3676 = vsel %vm2047, %v3674, 0
      %3678 = vmatprep.subr.mxu0 %v3666
      %3679 = vmatpush1.msra.mxu0 %v3665
      %3680 = vmatprep.subr.mxu0 %v3668
      %3681 = vmatpush1.msra.mxu0 %v3667
      %3682 = vmatprep.subr.mxu0 %v3670
      %3683 = vmatpush1.msra.mxu0 %v3669
      %3684 = vmatprep.subr.mxu0 %v3672
      %3685 = vmatpush1.msra.mxu0 %v3671
      %3686 = vmatprep.subr.mxu0 0.0
      %3687 = vmatpush1.msra.mxu0 0.0
      %3688 = vmatprep.subr.mxu0 0.0
      %3689 = vmatpush1.msra.mxu0 0.0
      %3690 = vmatprep.subr.mxu0 0.0
      %3691 = vmatpush1.msra.mxu0 0.0
      %3692 = vmatprep.subr.mxu0 0.0
      %3693 = vmatpush1.msra.mxu0 0.0
      %3694 = vmatprep.subr.mxu0 0.0
      %3695 = vmatpush1.msra.mxu0 0.0
      %3696 = vmatprep.subr.mxu0 0.0
      %3697 = vmatpush1.msra.mxu0 0.0
      %3698 = vmatprep.subr.mxu0 0.0
      %3699 = vmatpush1.msra.mxu0 0.0
      %3700 = vmatprep.subr.mxu0 0.0
      %3701 = vmatpush1.msra.mxu0 0.0
      %3702 = vmatprep.subr.mxu0 0.0
      %3703 = vmatpush1.msra.mxu0 0.0
      %3704 = vmatprep.subr.mxu0 0.0
      %3705 = vmatpush1.msra.mxu0 0.0
      %3706 = vmatprep.subr.mxu0 0.0
      %3707 = vmatpush1.msra.mxu0 0.0
      %3708 = vmatprep.subr.mxu0 0.0
      %3709 = vmatpush1.msra.mxu0 0.0
      %3710 = vmatprep.subr.mxu0 0.0
      %3711 = vmatpush1.msra.mxu0 0.0
      %3712 = vmatprep.subr.mxu0 0.0
      %3713 = vmatpush1.msra.mxu0 0.0
      %3714 = vmatprep.subr.mxu0 0.0
      %3715 = vmatpush1.msra.mxu0 0.0
      %3716 = vmatprep.subr.mxu0 0.0
      %3717 = vmatpush1.msra.mxu0 0.0
      %3718 = vmatprep.subr.mxu0 0.0
      %3719 = vmatpush1.msra.mxu0 0.0
      %3720 = vmatprep.subr.mxu0 0.0
      %3721 = vmatpush1.msra.mxu0 0.0
      %3722 = vmatprep.subr.mxu0 0.0
      %3723 = vmatpush1.msra.mxu0 0.0
      %3724 = vmatprep.subr.mxu0 0.0
      %3725 = vmatpush1.msra.mxu0 0.0
      %3726 = vmatprep.subr.mxu0 0.0
      %3727 = vmatpush1.msra.mxu0 0.0
      %3728 = vmatprep.subr.mxu0 0.0
      %3729 = vmatpush1.msra.mxu0 0.0
      %3730 = vmatprep.subr.mxu0 0.0
      %3731 = vmatpush1.msra.mxu0 0.0
      %3732 = vmatprep.subr.mxu0 0.0
      %3733 = vmatpush1.msra.mxu0 0.0
      %3734 = vmatprep.subr.mxu0 0.0
      %3735 = vmatpush1.msra.mxu0 0.0
      %3736 = vmatprep.subr.mxu0 0.0
      %3737 = vmatpush1.msra.mxu0 0.0
      %3738 = vmatprep.subr.mxu0 0.0
      %3739 = vmatpush1.msra.mxu0 0.0
      %3740 = vmatprep.subr.mxu0 0.0
      %3741 = vmatpush1.msra.mxu0 0.0
      %3742 = vmatprep.mubr.f32.mxu0 0.0
      %3743 = vmatmul.mubr.f32.gmra.mrb[0].mxu0 %v3676
      %v3744 = vpop.f32.mrb[0].mxu0
      %v3745 = vadd.f32 0.0, %v3744
      %v3746 = vpop.f32.mrb[0].mxu0
      %v3747 = vadd.f32 0.0, %v3746
      %3748 = vdwg.mxu0
      %v3749 = vadd.f32 %v3561, %v3745
      %v3750 = vadd.f32 %v3562, %v3747
      %s3751 = scalar_lea.vmem %s12, 32
      %v3752 = vld [vmem:[%s3751] sm:$0xf]
      %v3754 = vsel %vm2047, %v3752, 0
      %3756 = vmatprep.subr.mxu0 %v3666
      %3757 = vmatpush1.msra.mxu0 %v3665
      %3758 = vmatprep.subr.mxu0 %v3668
      %3759 = vmatpush1.msra.mxu0 %v3667
      %3760 = vmatprep.subr.mxu0 %v3670
      %3761 = vmatpush1.msra.mxu0 %v3669
      %3762 = vmatprep.subr.mxu0 %v3672
      %3763 = vmatpush1.msra.mxu0 %v3671
      %3764 = vmatprep.subr.mxu0 0.0
      %3765 = vmatpush1.msra.mxu0 0.0
      %3766 = vmatprep.subr.mxu0 0.0
      %3767 = vmatpush1.msra.mxu0 0.0
      %3768 = vmatprep.subr.mxu0 0.0
      %3769 = vmatpush1.msra.mxu0 0.0
      %3770 = vmatprep.subr.mxu0 0.0
      %3771 = vmatpush1.msra.mxu0 0.0
      %3772 = vmatprep.subr.mxu0 0.0
      %3773 = vmatpush1.msra.mxu0 0.0
      %3774 = vmatprep.subr.mxu0 0.0
      %3775 = vmatpush1.msra.mxu0 0.0
      %3776 = vmatprep.subr.mxu0 0.0
      %3777 = vmatpush1.msra.mxu0 0.0
      %3778 = vmatprep.subr.mxu0 0.0
      %3779 = vmatpush1.msra.mxu0 0.0
      %3780 = vmatprep.subr.mxu0 0.0
      %3781 = vmatpush1.msra.mxu0 0.0
      %3782 = vmatprep.subr.mxu0 0.0
      %3783 = vmatpush1.msra.mxu0 0.0
      %3784 = vmatprep.subr.mxu0 0.0
      %3785 = vmatpush1.msra.mxu0 0.0
      %3786 = vmatprep.subr.mxu0 0.0
      %3787 = vmatpush1.msra.mxu0 0.0
      %3788 = vmatprep.subr.mxu0 0.0
      %3789 = vmatpush1.msra.mxu0 0.0
      %3790 = vmatprep.subr.mxu0 0.0
      %3791 = vmatpush1.msra.mxu0 0.0
      %3792 = vmatprep.subr.mxu0 0.0
      %3793 = vmatpush1.msra.mxu0 0.0
      %3794 = vmatprep.subr.mxu0 0.0
      %3795 = vmatpush1.msra.mxu0 0.0
      %3796 = vmatprep.subr.mxu0 0.0
      %3797 = vmatpush1.msra.mxu0 0.0
      %3798 = vmatprep.subr.mxu0 0.0
      %3799 = vmatpush1.msra.mxu0 0.0
      %3800 = vmatprep.subr.mxu0 0.0
      %3801 = vmatpush1.msra.mxu0 0.0
      %3802 = vmatprep.subr.mxu0 0.0
      %3803 = vmatpush1.msra.mxu0 0.0
      %3804 = vmatprep.subr.mxu0 0.0
      %3805 = vmatpush1.msra.mxu0 0.0
      %3806 = vmatprep.subr.mxu0 0.0
      %3807 = vmatpush1.msra.mxu0 0.0
      %3808 = vmatprep.subr.mxu0 0.0
      %3809 = vmatpush1.msra.mxu0 0.0
      %3810 = vmatprep.subr.mxu0 0.0
      %3811 = vmatpush1.msra.mxu0 0.0
      %3812 = vmatprep.subr.mxu0 0.0
      %3813 = vmatpush1.msra.mxu0 0.0
      %3814 = vmatprep.subr.mxu0 0.0
      %3815 = vmatpush1.msra.mxu0 0.0
      %3816 = vmatprep.subr.mxu0 0.0
      %3817 = vmatpush1.msra.mxu0 0.0
      %3818 = vmatprep.subr.mxu0 0.0
      %3819 = vmatpush1.msra.mxu0 0.0
      %3820 = vmatprep.mubr.f32.mxu0 0.0
      %3821 = vmatmul.mubr.f32.gmra.mrb[0].mxu0 %v3754
      %v3822 = vpop.f32.mrb[0].mxu0
      %v3823 = vadd.f32 0.0, %v3822
      %v3824 = vpop.f32.mrb[0].mxu0
      %v3825 = vadd.f32 0.0, %v3824
      %3826 = vdwg.mxu0
      %v3827 = vadd.f32 %v3639, %v3823
      %v3828 = vadd.f32 %v3640, %v3825
      %v3829 = vadd.f32 %v3827, 2.0
      %v3830 = vadd.f32 %v3828, 2.0
      %v3831 = vsub.f32 0.0, %v3829
      %v3832 = vsub.f32 0.0, %v3830
      %v3833 = vmul.f32 %v3831, 1.442695
      %v3834 = vpow.pop %v3833
      %v3835 = vmul.f32 %v3832, 1.442695
      %v3836 = vpow.pop %v3835
      %v3837 = vadd.f32 %v3834, 1.0
      %v3838 = vadd.f32 %v3836, 1.0
      %v3839 = vrcp.pop %v3837
      %v3840 = vmul.f32 1.0, %v3839
      %v3841 = vrcp.pop %v3838
      %v3842 = vmul.f32 1.0, %v3841
      %v3843 = vadd.f32 %v721, %v3749
      %v3844 = vadd.f32 %v723, %v3750
      %v3845 = vmul.f32 %v3843, %v3840
      %v3846 = vmul.f32 %v3844, %v3842
      %v3847 = vlog2.pop %v3837
      %v3848 = vmul.f32 %v3847, 0.6931472
      %v3849 = vlog2.pop %v3838
      %v3850 = vmul.f32 %v3849, 0.6931472
      %v3851 = vsel %vm793, %v3848, 0.0
      %v3852 = vsel %vm793, %v3850, 0.0
      %v3853 = vadd.f32 %v3851, %v3852
      %3854 = vadd.xlane.f32.xlu0 %v3853
      %v3855 = vpop.xlane.xlu0 %3854
      %v3856 = vrot.slane %v3855, 4
      %v3857 = vadd.f32 %v3855, %v3856
      %v3858 = vrot.slane %v3857, 2
      %v3859 = vadd.f32 %v3857, %v3858
      %v3860 = vrot.slane %v3859, 1
      %v3861 = vadd.f32 %v3859, %v3860
      %s3862 = vtos %v3861
      %s3863 = ssub.f32 0.0, %s3862
      %v3864 = vld [vmem:[%s14] sm:$0xff]
      %v3865 = vld [vmem:[%s15] sm:$0xff]
      %v3867 = vsel %vm780, %v3865, 0
      %v3870 = vsel %vm793, %v3845, 0
      %v3873 = vsel %vm793, %v3846, 0
      %3875 = vmatprep.subr.mxu0 %v3873
      %3876 = vmatpush1.msra.mxu0 %v3870
      %3877 = vmatprep.subr.mxu0 0.0
      %3878 = vmatpush1.msra.mxu0 0.0
      %3879 = vmatprep.subr.mxu0 0.0
      %3880 = vmatpush1.msra.mxu0 0.0
      %3881 = vmatprep.subr.mxu0 0.0
      %3882 = vmatpush1.msra.mxu0 0.0
      %3883 = vmatprep.subr.mxu0 0.0
      %3884 = vmatpush1.msra.mxu0 0.0
      %3885 = vmatprep.subr.mxu0 0.0
      %3886 = vmatpush1.msra.mxu0 0.0
      %3887 = vmatprep.subr.mxu0 0.0
      %3888 = vmatpush1.msra.mxu0 0.0
      %3889 = vmatprep.subr.mxu0 0.0
      %3890 = vmatpush1.msra.mxu0 0.0
      %3891 = vmatprep.subr.mxu0 0.0
      %3892 = vmatpush1.msra.mxu0 0.0
      %3893 = vmatprep.subr.mxu0 0.0
      %3894 = vmatpush1.msra.mxu0 0.0
      %3895 = vmatprep.subr.mxu0 0.0
      %3896 = vmatpush1.msra.mxu0 0.0
      %3897 = vmatprep.subr.mxu0 0.0
      %3898 = vmatpush1.msra.mxu0 0.0
      %3899 = vmatprep.subr.mxu0 0.0
      %3900 = vmatpush1.msra.mxu0 0.0
      %3901 = vmatprep.subr.mxu0 0.0
      %3902 = vmatpush1.msra.mxu0 0.0
      %3903 = vmatprep.subr.mxu0 0.0
      %3904 = vmatpush1.msra.mxu0 0.0
      %3905 = vmatprep.subr.mxu0 0.0
      %3906 = vmatpush1.msra.mxu0 0.0
      %3907 = vmatprep.subr.mxu0 0.0
      %3908 = vmatpush1.msra.mxu0 0.0
      %3909 = vmatprep.subr.mxu0 0.0
      %3910 = vmatpush1.msra.mxu0 0.0
      %3911 = vmatprep.subr.mxu0 0.0
      %3912 = vmatpush1.msra.mxu0 0.0
      %3913 = vmatprep.subr.mxu0 0.0
      %3914 = vmatpush1.msra.mxu0 0.0
      %3915 = vmatprep.subr.mxu0 0.0
      %3916 = vmatpush1.msra.mxu0 0.0
      %3917 = vmatprep.subr.mxu0 0.0
      %3918 = vmatpush1.msra.mxu0 0.0
      %3919 = vmatprep.subr.mxu0 0.0
      %3920 = vmatpush1.msra.mxu0 0.0
      %3921 = vmatprep.subr.mxu0 0.0
      %3922 = vmatpush1.msra.mxu0 0.0
      %3923 = vmatprep.subr.mxu0 0.0
      %3924 = vmatpush1.msra.mxu0 0.0
      %3925 = vmatprep.subr.mxu0 0.0
      %3926 = vmatpush1.msra.mxu0 0.0
      %3927 = vmatprep.subr.mxu0 0.0
      %3928 = vmatpush1.msra.mxu0 0.0
      %3929 = vmatprep.subr.mxu0 0.0
      %3930 = vmatpush1.msra.mxu0 0.0
      %3931 = vmatprep.subr.mxu0 0.0
      %3932 = vmatpush1.msra.mxu0 0.0
      %3933 = vmatprep.subr.mxu0 0.0
      %3934 = vmatpush1.msra.mxu0 0.0
      %3935 = vmatprep.subr.mxu0 0.0
      %3936 = vmatpush1.msra.mxu0 0.0
      %3937 = vmatprep.subr.mxu0 0.0
      %3938 = vmatpush1.msra.mxu0 0.0
      %3939 = vmatprep.mubr.f32.mxu0 0.0
      %3940 = vmatmul.mubr.f32.gmra.mrb[0].mxu0 %v3867
      %v3941 = vpop.f32.mrb[0].mxu0
      %v3942 = vadd.f32 0.0, %v3941
      %v3943 = vpop.f32.mrb[0].mxu0
      %v3944 = vadd.f32 0.0, %v3943
      %3945 = vdwg.mxu0
      %v3947 = vsel %vm780, %v3864, 0
      %3949 = vmatprep.subr.mxu0 %v1344
      %3950 = vmatpush1.msra.mxu0 %v1341
      %3951 = vmatprep.subr.mxu0 0.0
      %3952 = vmatpush1.msra.mxu0 0.0
      %3953 = vmatprep.subr.mxu0 0.0
      %3954 = vmatpush1.msra.mxu0 0.0
      %3955 = vmatprep.subr.mxu0 0.0
      %3956 = vmatpush1.msra.mxu0 0.0
      %3957 = vmatprep.subr.mxu0 0.0
      %3958 = vmatpush1.msra.mxu0 0.0
      %3959 = vmatprep.subr.mxu0 0.0
      %3960 = vmatpush1.msra.mxu0 0.0
      %3961 = vmatprep.subr.mxu0 0.0
      %3962 = vmatpush1.msra.mxu0 0.0
      %3963 = vmatprep.subr.mxu0 0.0
      %3964 = vmatpush1.msra.mxu0 0.0
      %3965 = vmatprep.subr.mxu0 0.0
      %3966 = vmatpush1.msra.mxu0 0.0
      %3967 = vmatprep.subr.mxu0 0.0
      %3968 = vmatpush1.msra.mxu0 0.0
      %3969 = vmatprep.subr.mxu0 0.0
      %3970 = vmatpush1.msra.mxu0 0.0
      %3971 = vmatprep.subr.mxu0 0.0
      %3972 = vmatpush1.msra.mxu0 0.0
      %3973 = vmatprep.subr.mxu0 0.0
      %3974 = vmatpush1.msra.mxu0 0.0
      %3975 = vmatprep.subr.mxu0 0.0
      %3976 = vmatpush1.msra.mxu0 0.0
      %3977 = vmatprep.subr.mxu0 0.0
      %3978 = vmatpush1.msra.mxu0 0.0
      %3979 = vmatprep.subr.mxu0 0.0
      %3980 = vmatpush1.msra.mxu0 0.0
      %3981 = vmatprep.subr.mxu0 0.0
      %3982 = vmatpush1.msra.mxu0 0.0
      %3983 = vmatprep.subr.mxu0 0.0
      %3984 = vmatpush1.msra.mxu0 0.0
      %3985 = vmatprep.subr.mxu0 0.0
      %3986 = vmatpush1.msra.mxu0 0.0
      %3987 = vmatprep.subr.mxu0 0.0
      %3988 = vmatpush1.msra.mxu0 0.0
      %3989 = vmatprep.subr.mxu0 0.0
      %3990 = vmatpush1.msra.mxu0 0.0
      %3991 = vmatprep.subr.mxu0 0.0
      %3992 = vmatpush1.msra.mxu0 0.0
      %3993 = vmatprep.subr.mxu0 0.0
      %3994 = vmatpush1.msra.mxu0 0.0
      %3995 = vmatprep.subr.mxu0 0.0
      %3996 = vmatpush1.msra.mxu0 0.0
      %3997 = vmatprep.subr.mxu0 0.0
      %3998 = vmatpush1.msra.mxu0 0.0
      %3999 = vmatprep.subr.mxu0 0.0
      %4000 = vmatpush1.msra.mxu0 0.0
      %4001 = vmatprep.subr.mxu0 0.0
      %4002 = vmatpush1.msra.mxu0 0.0
      %4003 = vmatprep.subr.mxu0 0.0
      %4004 = vmatpush1.msra.mxu0 0.0
      %4005 = vmatprep.subr.mxu0 0.0
      %4006 = vmatpush1.msra.mxu0 0.0
      %4007 = vmatprep.subr.mxu0 0.0
      %4008 = vmatpush1.msra.mxu0 0.0
      %4009 = vmatprep.subr.mxu0 0.0
      %4010 = vmatpush1.msra.mxu0 0.0
      %4011 = vmatprep.subr.mxu0 0.0
      %4012 = vmatpush1.msra.mxu0 0.0
      %4013 = vmatprep.mubr.f32.mxu0 0.0
      %4014 = vmatmul.mubr.f32.gmra.mrb[0].mxu0 %v3947
      %v4015 = vpop.f32.mrb[0].mxu0
      %v4016 = vadd.f32 %v3942, %v4015
      %v4017 = vpop.f32.mrb[0].mxu0
      %v4018 = vadd.f32 %v3944, %v4017
      %4019 = vdwg.mxu0
      %4020 = vst [vmem:[%s555] sm:$0xff] %v4016
      %4021 = vst [vmem:[%s555 + $0x8] sm:$0xff] %v4018
      %v4022 = vstv %s3863
      %v4023 = vadd.f32 %v4022, 0.0
      %4024 = vst [vmem:[%s559] sm:$0xff] %v4023
      %p4025 = scmp.lt.s32.totalorder %s29, 1
      %s4026 = scalar_select %p4025, %s29, 1
      %s4027 = smul.addr %s4026, 2
      %s4028 = smul.addr %s4027, 8
      %s4029 = scalar_lea.vmem %s16, %s4028
      %p4030 = scmp.lt.s32.totalorder %s29, 1
      %s4031 = scalar_select %p4030, %s29, 1
      %s4032 = smul.addr %s4031, 8
      %s4033 = scalar_lea.vmem %s17, %s4032
      // Predicated region
      $region85: #{flow_step_forward.1} parent=83 // pred_check
        %p4034 = pneg %p388
      $region86: #{flow_step_forward.1} parent=83 // pred_check_branch
        %4036 = sbr.rel (%p4034) target = $region88
      $region87: #{flow_step_forward.1} parent=83 // pred_region
        _
      $region88: #{flow_step_forward.1} parent=83 // pred_fallthru
        _
      // Predicated region
      $region89: #{flow_step_forward.1} parent=83 // pred_check
        %p4037 = pneg %p414
      $region90: #{flow_step_forward.1} parent=83 // pred_check_branch
        %4039 = sbr.rel (%p4037) target = $region92
      $region91: #{flow_step_forward.1} parent=83 // pred_region
        _
      $region92: #{flow_step_forward.1} parent=83 // pred_fallthru
        _
    $region84: #{flow_step_forward.1} parent=5 // pred_fallthru
      _
    %p4040 = scmp.le.s32.totalorder 2, %s24
    // Predicated region
    $region93: #{flow_step_forward.1} parent=5 // pred_check
      %p4041 = pneg %p4040
    $region94: #{flow_step_forward.1} parent=5 // pred_check_branch
      %4043 = sbr.rel (%p4041) target = $region96
    $region95: #{flow_step_forward.1} parent=5 // pred_region
      %s4044 = ssub.s32 %s24, 2
      // Predicated region
      $region97: #{flow_step_forward.1} parent=95 // pred_check
        %p4045 = pneg %p394
      $region98: #{flow_step_forward.1} parent=95 // pred_check_branch
        %4047 = sbr.rel (%p4045) target = $region100
      $region99: #{flow_step_forward.1} parent=95 // pred_region
        %p4048 = scmp.lt.s32.totalorder %s30, 1
        %s4049 = scalar_select %p4048, %s30, 1
        %s4050 = smul.addr %s4049, 2
        %s4051 = smul.addr %s4050, 8
        %s4052 = scalar_lea.vmem %s16, %s4051
      $region100: #{flow_step_forward.1} parent=95 // pred_fallthru
        _
      // Predicated region
      $region101: #{flow_step_forward.1} parent=95 // pred_check
        %p4053 = pneg %p420
      $region102: #{flow_step_forward.1} parent=95 // pred_check_branch
        %4055 = sbr.rel (%p4053) target = $region104
      $region103: #{flow_step_forward.1} parent=95 // pred_region
        %p4056 = scmp.lt.s32.totalorder %s30, 1
        %s4057 = scalar_select %p4056, %s30, 1
        %s4058 = smul.addr %s4057, 8
        %s4059 = scalar_lea.vmem %s17, %s4058
      $region104: #{flow_step_forward.1} parent=95 // pred_fallthru
        _
    $region96: #{flow_step_forward.1} parent=5 // pred_fallthru
      _
  $region6: #{flow_step_forward.1} parent=0 // loop_footer
    %s28 = sadd.s32 1, %s24
  $region7: #{flow_step_forward.1} parent=0 // loop_footer_branch
    %23 = sbr.rel target = $region3
  $region8: #{flow_step_forward.1} parent=0 // loop_exit
    _

</llo_original>
